<compile_context>
chip_gen: v7x
topology: tpu7x:2x2x1
jax: 0.10.0
libtpu: 0.0.40
codegen_flags: <defaults>
</compile_context>

<pallas_src>
import functools

import jax
import jax.numpy as jnp
import numpy as np
from jax.experimental import pallas as pl
from jax.experimental.pallas import tpu as pltpu


_VMEM = functools.partial(pl.BlockSpec, memory_space=pltpu.MemorySpace.VMEM)

# Order in which the packed parameters are passed to the fused kernel (after x2d, u).
_PARAM_ORDER = (
    "enc1_S", "enc1_G", "enc1_b",
    "enc2_S", "enc2_G", "enc2_b",
    "enc3_S", "enc3_G", "enc3_b",
    "Eh", "W1s", "b_heads1",
    "Wmn2", "bmn2", "Wstd2", "bstd2",
    "Wd1", "bd1", "Wd2s", "bd2s", "Fh",
    "dec1_T", "dec1_G", "dec1_b",
    "dec2_T", "dec2_G", "dec2_b",
    "dec3_T", "dec3_G", "dec3_b",
)


# ----------------------------------------------------------------------------
# The single fused Pallas kernel
# ----------------------------------------------------------------------------
def _vae_fused_kernel(
    x_ref, u_ref,
    e1s_ref, e1g_ref, e1b_ref,
    e2s_ref, e2g_ref, e2b_ref,
    e3s_ref, e3g_ref, e3b_ref,
    eh_ref, w1s_ref, b1_ref,
    wmn2_ref, bmn2_ref, wstd2_ref, bstd2_ref,
    wd1_ref, bd1_ref, wd2s_ref, bd2s_ref, fh_ref,
    d1t_ref, d1g_ref, d1b_ref,
    d2t_ref, d2g_ref, d2b_ref,
    d3t_ref, d3g_ref, d3b_ref,
    dec_ref, mn_ref, std_ref,
):
    f32 = jnp.float32

    def spatial_layer(a, s_ref, g_ref, b_ref, relu):
        # Y = act( sum_kh  G_kh @ (A @ S_kh) + bias_row )
        # Works for both Conv2d and ConvTranspose2d (the difference is entirely
        # encoded in the precomputed S / G constants).
        acc = None
        for kh in range(3):
            z = jnp.dot(a, s_ref[kh], preferred_element_type=f32)
            y = jnp.dot(g_ref[kh], z, preferred_element_type=f32)
            acc = y if acc is None else acc + y
        acc = acc + b_ref[...]
        if relu:
            acc = jnp.maximum(acc, 0.0)
        return acc

    # ---- encoder: (B*28, 28) -> (B*14, 56) -> (B*7, 56) -> (B*3, 48) --------
    h = x_ref[...]
    h = spatial_layer(h, e1s_ref, e1g_ref, e1b_ref, relu=True)
    h = spatial_layer(h, e2s_ref, e2g_ref, e2b_ref, relu=True)
    h = spatial_layer(h, e3s_ref, e3g_ref, e3b_ref, relu=True)

    # ---- NCHW flatten folded into the first FC stage:
    #      hid = ReLU( flat @ [W_mn1 | W_std1] + [b_mn1 | b_std1] )   (B, 128)
    hid = None
    for hh in range(3):
        t = jnp.dot(eh_ref[hh], h, preferred_element_type=f32)      # pick rows (b, hh) -> (B, 48)
        t = jnp.dot(t, w1s_ref[hh], preferred_element_type=f32)     # (B, 128)
        hid = t if hid is None else hid + t
    hid = jnp.maximum(hid + b1_ref[...], 0.0)

    # second-stage heads (zero-padded K=128 so no in-kernel slicing of `hid`)
    mn = jnp.dot(hid, wmn2_ref[...], preferred_element_type=f32) + bmn2_ref[...]
    std = jnp.dot(hid, wstd2_ref[...], preferred_element_type=f32) + bstd2_ref[...]

    # reparameterization exactly as in the PyTorch module:
    #   sample = mu + exp(sigma / 2) * rand_like(mu)    (U[0,1) noise, NOT randn)
    z = mn + jnp.exp(std * 0.5) * u_ref[...]

    # ---- decoder FCs + unflatten scatter -------------------------------------
    hd = jnp.maximum(
        jnp.dot(z, wd1_ref[...], preferred_element_type=f32) + bd1_ref[...], 0.0)
    d = None
    for hh in range(3):
        r = jnp.dot(hd, wd2s_ref[hh], preferred_element_type=f32) + bd2s_ref[hh]
        r = jnp.maximum(r, 0.0)
        r = jnp.dot(fh_ref[hh], r, preferred_element_type=f32)      # scatter row b -> row b*3+hh
        d = r if d is None else d + r

    # ---- decoder conv-transposes (sub-pixel): (B*3,48)->(B*7,56)->(B*14,56)->(B*28,28)
    d = spatial_layer(d, d1t_ref, d1g_ref, d1b_ref, relu=True)
    d = spatial_layer(d, d2t_ref, d2g_ref, d2b_ref, relu=True)
    d = spatial_layer(d, d3t_ref, d3g_ref, d3b_ref, relu=False)

    dec_ref[...] = d.astype(dec_ref.dtype)
    mn_ref[...] = mn.astype(mn_ref.dtype)
    std_ref[...] = std.astype(std_ref.dtype)


# ----------------------------------------------------------------------------
# Forward wrapper: ONE pallas_call, whole-array VMEM blocks, no grid
# ----------------------------------------------------------------------------
def vae_forward(params, x_nchw, rng_key, mode="Test"):
    """Matches Variational_Autoencoder.forward: returns (decoded, mn, std)."""
    del mode  # train()/eval() toggles are no-ops (module has no dropout / batchnorm)
    B, _, H, W = x_nchw.shape                 # architecture requires H = W = 28
    x2d = x_nchw.reshape(B * H, W)            # rows=(b, image_row), cols=image_col (C_in == 1)
    enc_dim = params["bmn2"].shape[1]
    u = jax.random.uniform(rng_key, (B, enc_dim), jnp.float32)   # torch.rand_like -> U[0,1)

    dec2d, mn, std = pl.pallas_call(
        _vae_fused_kernel,
        out_shape=(
            jax.ShapeDtypeStruct((B * H, W), jnp.float32),   # decoded, rows=(b,oh), cols=ow
            jax.ShapeDtypeStruct((B, enc_dim), jnp.float32),
            jax.ShapeDtypeStruct((B, enc_dim), jnp.float32),
        ),
        in_specs=[_VMEM() for _ in range(2 + len(_PARAM_ORDER))],
        out_specs=(_VMEM(), _VMEM(), _VMEM()),
    )(x2d, u, *[params[k] for k in _PARAM_ORDER])

    decoded = dec2d.reshape(B, 1, H, W)       # free metadata reshape (C == 1)
    return decoded, mn, std


# ----------------------------------------------------------------------------
# Parameter init (PyTorch-layout shapes) and one-time packing into the
# tap / gather / permutation-folded matrices consumed by the kernel.
# ----------------------------------------------------------------------------
def init_params(key, nf, enc_dim):
    def conv_p(k_, o, i, ks):
        bound = 1.0 / (i * ks * ks) ** 0.5
        k1, k2 = jax.random.split(k_)
        return (jax.random.uniform(k1, (o, i, ks, ks), jnp.float32, -bound, bound),
                jax.random.uniform(k2, (o,), jnp.float32, -bound, bound))

    def convT_p(k_, i, o, ks):
        bound = 1.0 / (o * ks * ks) ** 0.5
        k1, k2 = jax.random.split(k_)
        return (jax.random.uniform(k1, (i, o, ks, ks), jnp.float32, -bound, bound),
                jax.random.uniform(k2, (o,), jnp.float32, -bound, bound))

    def lin_p(k_, i, o):
        bound = 1.0 / i ** 0.5
        k1, k2 = jax.random.split(k_)
        return (jax.random.uniform(k1, (i, o), jnp.float32, -bound, bound),
                jax.random.uniform(k2, (o,), jnp.float32, -bound, bound))

    ks = jax.random.split(key, 12)
    return {
        "enc_conv1": conv_p(ks[0], nf, 1, 3),
        "enc_conv2": conv_p(ks[1], 2 * nf, nf, 3),
        "enc_conv3": conv_p(ks[2], 4 * nf, 2 * nf, 3),
        "fc_mn1":    lin_p(ks[3], 4 * nf * 9, 64),
        "fc_mn2":    lin_p(ks[4], 64, enc_dim),
        "fc_std1":   lin_p(ks[5], 4 * nf * 9, 64),
        "fc_std2":   lin_p(ks[6], 64, enc_dim),
        "dec_fc1":   lin_p(ks[7], enc_dim, 64),
        "dec_fc2":   lin_p(ks[8], 64, 4 * nf * 9),
        "dec_convT1": convT_p(ks[9], 4 * nf, 2 * nf, 3),
        "dec_convT2": convT_p(ks[10], 2 * nf, nf, 3),
        "dec_convT3": convT_p(ks[11], nf, 1, 3),
    }


def _conv_tap_mats(w_oikk, W, OW, stride, pad):
    """(k, W*Cin, OW*Cout): Conv2d horizontal taps + weights, one matrix per vertical tap kh."""
    w = np.asarray(w_oikk)
    O, I, k, _ = w.shape
    S = np.zeros((k, W * I, OW * O), np.float32)
    for kh in range(k):
        for ow in range(OW):
            for kw in range(k):
                iw = ow * stride - pad + kw
                if 0 <= iw < W:
                    S[kh, iw * I:(iw + 1) * I, ow * O:(ow + 1) * O] = w[:, :, kh, kw].T
    return jnp.asarray(S)


def _conv_row_gather(batch, H, OH, stride, pad, k=3):
    """(k, B*OH, B*H) 0/1 gather: output row (b,oh) <- input row (b, oh*s - p + kh)."""
    G = np.zeros((k, batch * OH, batch * H), np.float32)
    for kh in range(k):
        for b in range(batch):
            for oh in range(OH):
                ih = oh * stride - pad + kh
                if 0 <= ih < H:
                    G[kh, b * OH + oh, b * H + ih] = 1.0
    return jnp.asarray(G)


def _deconv_tap_mats(w_iokk, W, OW, stride, pad):
    """(k, W*Cin, OW*Cout): ConvTranspose2d horizontal taps on the UNDILATED input (sub-pixel)."""
    w = np.asarray(w_iokk)
    I, O, k, _ = w.shape
    T = np.zeros((k, W * I, OW * O), np.float32)
    for kh in range(k):
        for iw in range(W):
            for ow in range(OW):
                kw = ow + pad - stride * iw
                if 0 <= kw < k:
                    T[kh, iw * I:(iw + 1) * I, ow * O:(ow + 1) * O] = w[:, :, kh, kw]
    return jnp.asarray(T)


def _deconv_row_gather(batch, H, OH, stride, pad, k=3):
    """(k, B*OH, B*H) 0/1 gather: output row (b,oh) <- input row ih iff oh = ih*s - p + kh."""
    G = np.zeros((k, batch * OH, batch * H), np.float32)
    for kh in range(k):
        for b in range(batch):
            for oh in range(OH):
                num = oh + pad - kh
                if num % stride == 0 and 0 <= num // stride < H:
                    G[kh, b * OH + oh, b * H + num // stride] = 1.0
    return jnp.asarray(G)


def _bias_row(b, OW):
    """(1, OW*Cout) bias row for the (image_col, channel) column layout (channel minor)."""
    return jnp.asarray(np.tile(np.asarray(b), OW)[None, :])


def prepare_params(raw, nf, enc_dim, batch):
    """Fold im2col, deconv up-sampling and all NCHW<->rowcol permutations into constants."""
    C3 = 4 * nf

    # ----- NCHW flatten (c, h, w) -> our (row=h, col=w*C+c) layout, folded into FC weights
    w_mn1, b_mn1 = raw["fc_mn1"]
    w_std1, b_std1 = raw["fc_std1"]
    w_cat = np.concatenate([np.asarray(w_mn1), np.asarray(w_std1)], axis=1)      # (144, 128)
    W1s = np.zeros((3, 3 * C3, 128), np.float32)
    for hh in range(3):
        for ww in range(3):
            for c in range(C3):
                W1s[hh, ww * C3 + c, :] = w_cat[c * 9 + hh * 3 + ww, :]

    w_d2, b_d2 = raw["dec_fc2"]
    w_d2 = np.asarray(w_d2)
    b_d2 = np.asarray(b_d2)
    Wd2s = np.zeros((3, 64, 3 * C3), np.float32)
    bd2s = np.zeros((3, 1, 3 * C3), np.float32)
    for hh in range(3):
        for ww in range(3):
            for c in range(C3):
                Wd2s[hh, :, ww * C3 + c] = w_d2[:, c * 9 + hh * 3 + ww]
                bd2s[hh, 0, ww * C3 + c] = b_d2[c * 9 + hh * 3 + ww]

    Eh = np.zeros((3, batch, 3 * batch), np.float32)   # pick encoder row (b, hh)
    Fh = np.zeros((3, 3 * batch, batch), np.float32)   # scatter decoder row b -> (b, hh)
    for hh in range(3):
        for b in range(batch):
            Eh[hh, b, b * 3 + hh] = 1.0
            Fh[hh, b * 3 + hh, b] = 1.0

    w_mn2, b_mn2 = raw["fc_mn2"]
    w_std2, b_std2 = raw["fc_std2"]
    zeros64 = jnp.zeros((64, enc_dim), jnp.float32)
    w_d1, b_d1 = raw["dec_fc1"]

    return {
        # encoder convs: 28 -> 14 -> 7 -> 3
        "enc1_S": _conv_tap_mats(raw["enc_conv1"][0], 28, 14, 2, 1),
        "enc1_G": _conv_row_gather(batch, 28, 14, 2, 1),
        "enc1_b": _bias_row(raw["enc_conv1"][1], 14),
        "enc2_S": _conv_tap_mats(raw["enc_conv2"][0], 14, 7, 2, 1),
        "enc2_G": _conv_row_gather(batch, 14, 7, 2, 1),
        "enc2_b": _bias_row(raw["enc_conv2"][1], 7),
        "enc3_S": _conv_tap_mats(raw["enc_conv3"][0], 7, 3, 2, 0),
        "enc3_G": _conv_row_gather(batch, 7, 3, 2, 0),
        "enc3_b": _bias_row(raw["enc_conv3"][1], 3),
        # latent block
        "Eh": jnp.asarray(Eh),
        "W1s": jnp.asarray(W1s),
        "b_heads1": jnp.concatenate([b_mn1, b_std1]).reshape(1, -1),
        "Wmn2": jnp.concatenate([w_mn2, zeros64], axis=0),          # (128, enc_dim)
        "bmn2": b_mn2.reshape(1, -1),
        "Wstd2": jnp.concatenate([zeros64, w_std2], axis=0),        # (128, enc_dim)
        "bstd2": b_std2.reshape(1, -1),
        "Wd1": w_d1,
        "bd1": b_d1.reshape(1, -1),
        "Wd2s": jnp.asarray(Wd2s),
        "bd2s": jnp.asarray(bd2s),
        "Fh": jnp.asarray(Fh),
        # decoder conv-transposes (sub-pixel form): 3 -> 7 -> 14 -> 28
        "dec1_T": _deconv_tap_mats(raw["dec_convT1"][0], 3, 7, 2, 0),
        "dec1_G": _deconv_row_gather(batch, 3, 7, 2, 0),
        "dec1_b": _bias_row(raw["dec_convT1"][1], 7),
        "dec2_T": _deconv_tap_mats(raw["dec_convT2"][0], 7, 14, 2, 1),
        "dec2_G": _deconv_row_gather(batch, 7, 14, 2, 1),
        "dec2_b": _bias_row(raw["dec_convT2"][1], 14),
        "dec3_T": _deconv_tap_mats(raw["dec_convT3"][0], 14, 28, 2, 1),
        "dec3_G": _deconv_row_gather(batch, 14, 28, 2, 1),
        "dec3_b": _bias_row(raw["dec_convT3"][1], 28),
    }


# ----------------------------------------------------------------------------
# Pure-JAX reference (plain XLA) of the PyTorch module, used only for a
# correctness check in __main__ (same U[0,1) noise passed explicitly).
# ----------------------------------------------------------------------------
def _vae_reference(raw, x, u):
    relu = lambda t: jnp.maximum(t, 0.0)

    def conv(xin, w, b, stride, pad):
        B, _, H, W = xin.shape
        _, _, k, _ = w.shape
        xp = jnp.pad(xin, ((0, 0), (0, 0), (pad, pad), (pad, pad)))
        OH = (H + 2 * pad - k) // stride + 1
        OW = (W + 2 * pad - k) // stride + 1
        out = jnp.zeros((B, w.shape[0], OH, OW), jnp.float32)
        for kh in range(k):
            for kw in range(k):
                patch = xp[:, :, kh:kh + (OH - 1) * stride + 1:stride,
                              kw:kw + (OW - 1) * stride + 1:stride]
                out = out + jnp.einsum('bchw,oc->bohw', patch, w[:, :, kh, kw])
        return out + b[None, :, None, None]

    def deconv(xin, w, b, stride, pad, out_pad):
        B, _, H, W = xin.shape
        _, Co, k, _ = w.shape
        OH = (H - 1) * stride - 2 * pad + k + out_pad
        OW = (W - 1) * stride - 2 * pad + k + out_pad
        full = jnp.zeros((B, Co, (H - 1) * stride + k, (W - 1) * stride + k), jnp.float32)
        for kh in range(k):
            for kw in range(k):
                contrib = jnp.einsum('bchw,co->bohw', xin, w[:, :, kh, kw])
                full = full.at[:, :, kh:kh + (H - 1) * stride + 1:stride,
                                  kw:kw + (W - 1) * stride + 1:stride].add(contrib)
        return full[:, :, pad:pad + OH, pad:pad + OW] + b[None, :, None, None]

    h = relu(conv(x, *raw["enc_conv1"], 2, 1))
    h = relu(conv(h, *raw["enc_conv2"], 2, 1))
    h = relu(conv(h, *raw["enc_conv3"], 2, 0))
    flat = h.reshape(x.shape[0], -1)

    w_mn1, b_mn1 = raw["fc_mn1"]; w_mn2, b_mn2 = raw["fc_mn2"]
    w_std1, b_std1 = raw["fc_std1"]; w_std2, b_std2 = raw["fc_std2"]
    mn = relu(flat @ w_mn1 + b_mn1) @ w_mn2 + b_mn2
    std = relu(flat @ w_std1 + b_std1) @ w_std2 + b_std2
    z = mn + jnp.exp(std * 0.5) * u

    w_d1, b_d1 = raw["dec_fc1"]; w_d2, b_d2 = raw["dec_fc2"]
    d = relu(relu(z @ w_d1 + b_d1) @ w_d2 + b_d2)
    d = d.reshape(x.shape[0], -1, 3, 3)
    d = relu(deconv(d, *raw["dec_convT1"], 2, 0, 0))
    d = relu(deconv(d, *raw["dec_convT2"], 2, 1, 1))
    d = deconv(d, *raw["dec_convT3"], 2, 1, 1)
    return d, mn, std


if __name__ == "__main__":
    nf = 4
    enc_dim = 8
    B = 2

    key = jax.random.PRNGKey(0)
    pkey, xkey, skey = jax.random.split(key, 3)

    raw_params = init_params(pkey, nf, enc_dim)
    params = prepare_params(raw_params, nf, enc_dim, B)
    x = jax.random.uniform(xkey, (B, 1, 28, 28), jnp.float32)

    fwd = jax.jit(vae_forward, static_argnames=("mode",))
    decoded, mn, std = fwd(params, x, skey, mode="Test")
    jax.block_until_ready((decoded, mn, std))

    assert decoded.shape == (B, 1, 28, 28)
    assert mn.shape == (B, enc_dim)
    assert std.shape == (B, enc_dim)
    assert decoded.dtype == jnp.float32

    # Correctness check vs a pure-JAX reference using the identical U[0,1) noise draw.
    # Loose tolerance (normalized max-abs) absorbs MXU default-precision rounding while
    # still catching any layout / packing error (those show up as O(1) mismatches).
    u_same = jax.random.uniform(skey, (B, enc_dim), jnp.float32)
    ref_dec, ref_mn, ref_std = jax.jit(_vae_reference)(raw_params, x, u_same)

    def _max_norm_err(got, want):
        got = np.asarray(got)
        want = np.asarray(want)
        scale = max(float(np.max(np.abs(want))), 1e-6)
        return float(np.max(np.abs(got - want))) / scale

    assert _max_norm_err(mn, ref_mn) < 0.08, "mn mismatch vs pure-JAX reference"
    assert _max_norm_err(std, ref_std) < 0.08, "std mismatch vs pure-JAX reference"
    assert _max_norm_err(decoded, ref_dec) < 0.08, "decoded mismatch vs pure-JAX reference"

    print("KERNEL_OK")
</pallas_src>

<mosaic_0001>
module attributes {stable_mosaic.version = 11 : i64} {
  func.func @_vae_fused_kernel(%arg0: memref<56x28xf32, #tpu.memory_space<vmem>>, %arg1: memref<2x8xf32, #tpu.memory_space<vmem>>, %arg2: memref<3x28x56xf32, #tpu.memory_space<vmem>>, %arg3: memref<3x28x56xf32, #tpu.memory_space<vmem>>, %arg4: memref<1x56xf32, #tpu.memory_space<vmem>>, %arg5: memref<3x56x56xf32, #tpu.memory_space<vmem>>, %arg6: memref<3x14x28xf32, #tpu.memory_space<vmem>>, %arg7: memref<1x56xf32, #tpu.memory_space<vmem>>, %arg8: memref<3x56x48xf32, #tpu.memory_space<vmem>>, %arg9: memref<3x6x14xf32, #tpu.memory_space<vmem>>, %arg10: memref<1x48xf32, #tpu.memory_space<vmem>>, %arg11: memref<3x2x6xf32, #tpu.memory_space<vmem>>, %arg12: memref<3x48x128xf32, #tpu.memory_space<vmem>>, %arg13: memref<1x128xf32, #tpu.memory_space<vmem>>, %arg14: memref<128x8xf32, #tpu.memory_space<vmem>>, %arg15: memref<1x8xf32, #tpu.memory_space<vmem>>, %arg16: memref<128x8xf32, #tpu.memory_space<vmem>>, %arg17: memref<1x8xf32, #tpu.memory_space<vmem>>, %arg18: memref<8x64xf32, #tpu.memory_space<vmem>>, %arg19: memref<1x64xf32, #tpu.memory_space<vmem>>, %arg20: memref<3x64x48xf32, #tpu.memory_space<vmem>>, %arg21: memref<3x1x48xf32, #tpu.memory_space<vmem>>, %arg22: memref<3x6x2xf32, #tpu.memory_space<vmem>>, %arg23: memref<3x48x56xf32, #tpu.memory_space<vmem>>, %arg24: memref<3x14x6xf32, #tpu.memory_space<vmem>>, %arg25: memref<1x56xf32, #tpu.memory_space<vmem>>, %arg26: memref<3x56x56xf32, #tpu.memory_space<vmem>>, %arg27: memref<3x28x14xf32, #tpu.memory_space<vmem>>, %arg28: memref<1x56xf32, #tpu.memory_space<vmem>>, %arg29: memref<3x56x28xf32, #tpu.memory_space<vmem>>, %arg30: memref<3x56x28xf32, #tpu.memory_space<vmem>>, %arg31: memref<1x28xf32, #tpu.memory_space<vmem>>, %arg32: memref<56x28xf32, #tpu.memory_space<vmem>>, %arg33: memref<2x8xf32, #tpu.memory_space<vmem>>, %arg34: memref<2x8xf32, #tpu.memory_space<vmem>>) attributes {dimension_semantics = [], scalar_prefetch = 0 : i64, scratch_operands = 0 : i64, tpu.core_type = #tpu.core_type<tc>} {
    %c0 = arith.constant 0 : index
    %c0_0 = arith.constant 0 : index
    %0 = vector.load %arg0[%c0, %c0_0] : memref<56x28xf32, #tpu.memory_space<vmem>>, vector<56x28xf32>
    %c0_1 = arith.constant 0 : index
    %c0_2 = arith.constant 0 : index
    %c0_3 = arith.constant 0 : index
    %1 = vector.load %arg2[%c0_1, %c0_2, %c0_3] : memref<3x28x56xf32, #tpu.memory_space<vmem>>, vector<1x28x56xf32>
    %2 = vector.shape_cast %1 : vector<1x28x56xf32> to vector<28x56xf32>
    %cst = arith.constant dense<0.000000e+00> : vector<56x56xf32>
    %3 = tpu.matmul %0, %2, %cst {dimension_numbers = #tpu.dot_dimension_numbers<[1], [0], [0], [1], [0, 0, 1, 1], [], []>} : vector<56x28xf32>, vector<28x56xf32>, vector<56x56xf32> -> vector<56x56xf32>
    %c0_4 = arith.constant 0 : index
    %c0_5 = arith.constant 0 : index
    %c0_6 = arith.constant 0 : index
    %4 = vector.load %arg3[%c0_4, %c0_5, %c0_6] : memref<3x28x56xf32, #tpu.memory_space<vmem>>, vector<1x28x56xf32>
    %5 = vector.shape_cast %4 : vector<1x28x56xf32> to vector<28x56xf32>
    %cst_7 = arith.constant dense<0.000000e+00> : vector<28x56xf32>
    %6 = tpu.matmul %5, %3, %cst_7 {dimension_numbers = #tpu.dot_dimension_numbers<[1], [0], [0], [1], [0, 0, 1, 1], [], []>} : vector<28x56xf32>, vector<56x56xf32>, vector<28x56xf32> -> vector<28x56xf32>
    %c1 = arith.constant 1 : index
    %c0_8 = arith.constant 0 : index
    %c0_9 = arith.constant 0 : index
    %7 = vector.load %arg2[%c1, %c0_8, %c0_9] : memref<3x28x56xf32, #tpu.memory_space<vmem>>, vector<1x28x56xf32>
    %8 = vector.shape_cast %7 : vector<1x28x56xf32> to vector<28x56xf32>
    %cst_10 = arith.constant dense<0.000000e+00> : vector<56x56xf32>
    %9 = tpu.matmul %0, %8, %cst_10 {dimension_numbers = #tpu.dot_dimension_numbers<[1], [0], [0], [1], [0, 0, 1, 1], [], []>} : vector<56x28xf32>, vector<28x56xf32>, vector<56x56xf32> -> vector<56x56xf32>
    %c1_11 = arith.constant 1 : index
    %c0_12 = arith.constant 0 : index
    %c0_13 = arith.constant 0 : index
    %10 = vector.load %arg3[%c1_11, %c0_12, %c0_13] : memref<3x28x56xf32, #tpu.memory_space<vmem>>, vector<1x28x56xf32>
    %11 = vector.shape_cast %10 : vector<1x28x56xf32> to vector<28x56xf32>
    %cst_14 = arith.constant dense<0.000000e+00> : vector<28x56xf32>
    %12 = tpu.matmul %11, %9, %cst_14 {dimension_numbers = #tpu.dot_dimension_numbers<[1], [0], [0], [1], [0, 0, 1, 1], [], []>} : vector<28x56xf32>, vector<56x56xf32>, vector<28x56xf32> -> vector<28x56xf32>
    %13 = arith.addf %6, %12 : vector<28x56xf32>
    %c2 = arith.constant 2 : index
    %c0_15 = arith.constant 0 : index
    %c0_16 = arith.constant 0 : index
    %14 = vector.load %arg2[%c2, %c0_15, %c0_16] : memref<3x28x56xf32, #tpu.memory_space<vmem>>, vector<1x28x56xf32>
    %15 = vector.shape_cast %14 : vector<1x28x56xf32> to vector<28x56xf32>
    %cst_17 = arith.constant dense<0.000000e+00> : vector<56x56xf32>
    %16 = tpu.matmul %0, %15, %cst_17 {dimension_numbers = #tpu.dot_dimension_numbers<[1], [0], [0], [1], [0, 0, 1, 1], [], []>} : vector<56x28xf32>, vector<28x56xf32>, vector<56x56xf32> -> vector<56x56xf32>
    %c2_18 = arith.constant 2 : index
    %c0_19 = arith.constant 0 : index
    %c0_20 = arith.constant 0 : index
    %17 = vector.load %arg3[%c2_18, %c0_19, %c0_20] : memref<3x28x56xf32, #tpu.memory_space<vmem>>, vector<1x28x56xf32>
    %18 = vector.shape_cast %17 : vector<1x28x56xf32> to vector<28x56xf32>
    %cst_21 = arith.constant dense<0.000000e+00> : vector<28x56xf32>
    %19 = tpu.matmul %18, %16, %cst_21 {dimension_numbers = #tpu.dot_dimension_numbers<[1], [0], [0], [1], [0, 0, 1, 1], [], []>} : vector<28x56xf32>, vector<56x56xf32>, vector<28x56xf32> -> vector<28x56xf32>
    %20 = arith.addf %13, %19 : vector<28x56xf32>
    %c0_22 = arith.constant 0 : index
    %c0_23 = arith.constant 0 : index
    %21 = vector.load %arg4[%c0_22, %c0_23] : memref<1x56xf32, #tpu.memory_space<vmem>>, vector<1x56xf32>
    %22 = vector.broadcast %21 : vector<1x56xf32> to vector<28x56xf32>
    %23 = arith.addf %20, %22 : vector<28x56xf32>
    %cst_24 = arith.constant 0.000000e+00 : f32
    %24 = vector.broadcast %cst_24 : f32 to vector<28x56xf32>
    %25 = arith.maximumf %23, %24 : vector<28x56xf32>
    %c0_25 = arith.constant 0 : index
    %c0_26 = arith.constant 0 : index
    %c0_27 = arith.constant 0 : index
    %26 = vector.load %arg5[%c0_25, %c0_26, %c0_27] : memref<3x56x56xf32, #tpu.memory_space<vmem>>, vector<1x56x56xf32>
    %27 = vector.shape_cast %26 : vector<1x56x56xf32> to vector<56x56xf32>
    %cst_28 = arith.constant dense<0.000000e+00> : vector<28x56xf32>
    %28 = tpu.matmul %25, %27, %cst_28 {dimension_numbers = #tpu.dot_dimension_numbers<[1], [0], [0], [1], [0, 0, 1, 1], [], []>} : vector<28x56xf32>, vector<56x56xf32>, vector<28x56xf32> -> vector<28x56xf32>
    %c0_29 = arith.constant 0 : index
    %c0_30 = arith.constant 0 : index
    %c0_31 = arith.constant 0 : index
    %29 = vector.load %arg6[%c0_29, %c0_30, %c0_31] : memref<3x14x28xf32, #tpu.memory_space<vmem>>, vector<1x14x28xf32>
    %30 = vector.shape_cast %29 : vector<1x14x28xf32> to vector<14x28xf32>
    %cst_32 = arith.constant dense<0.000000e+00> : vector<14x56xf32>
    %31 = tpu.matmul %30, %28, %cst_32 {dimension_numbers = #tpu.dot_dimension_numbers<[1], [0], [0], [1], [0, 0, 1, 1], [], []>} : vector<14x28xf32>, vector<28x56xf32>, vector<14x56xf32> -> vector<14x56xf32>
    %c1_33 = arith.constant 1 : index
    %c0_34 = arith.constant 0 : index
    %c0_35 = arith.constant 0 : index
    %32 = vector.load %arg5[%c1_33, %c0_34, %c0_35] : memref<3x56x56xf32, #tpu.memory_space<vmem>>, vector<1x56x56xf32>
    %33 = vector.shape_cast %32 : vector<1x56x56xf32> to vector<56x56xf32>
    %cst_36 = arith.constant dense<0.000000e+00> : vector<28x56xf32>
    %34 = tpu.matmul %25, %33, %cst_36 {dimension_numbers = #tpu.dot_dimension_numbers<[1], [0], [0], [1], [0, 0, 1, 1], [], []>} : vector<28x56xf32>, vector<56x56xf32>, vector<28x56xf32> -> vector<28x56xf32>
    %c1_37 = arith.constant 1 : index
    %c0_38 = arith.constant 0 : index
    %c0_39 = arith.constant 0 : index
    %35 = vector.load %arg6[%c1_37, %c0_38, %c0_39] : memref<3x14x28xf32, #tpu.memory_space<vmem>>, vector<1x14x28xf32>
    %36 = vector.shape_cast %35 : vector<1x14x28xf32> to vector<14x28xf32>
    %cst_40 = arith.constant dense<0.000000e+00> : vector<14x56xf32>
    %37 = tpu.matmul %36, %34, %cst_40 {dimension_numbers = #tpu.dot_dimension_numbers<[1], [0], [0], [1], [0, 0, 1, 1], [], []>} : vector<14x28xf32>, vector<28x56xf32>, vector<14x56xf32> -> vector<14x56xf32>
    %38 = arith.addf %31, %37 : vector<14x56xf32>
    %c2_41 = arith.constant 2 : index
    %c0_42 = arith.constant 0 : index
    %c0_43 = arith.constant 0 : index
    %39 = vector.load %arg5[%c2_41, %c0_42, %c0_43] : memref<3x56x56xf32, #tpu.memory_space<vmem>>, vector<1x56x56xf32>
    %40 = vector.shape_cast %39 : vector<1x56x56xf32> to vector<56x56xf32>
    %cst_44 = arith.constant dense<0.000000e+00> : vector<28x56xf32>
    %41 = tpu.matmul %25, %40, %cst_44 {dimension_numbers = #tpu.dot_dimension_numbers<[1], [0], [0], [1], [0, 0, 1, 1], [], []>} : vector<28x56xf32>, vector<56x56xf32>, vector<28x56xf32> -> vector<28x56xf32>
    %c2_45 = arith.constant 2 : index
    %c0_46 = arith.constant 0 : index
    %c0_47 = arith.constant 0 : index
    %42 = vector.load %arg6[%c2_45, %c0_46, %c0_47] : memref<3x14x28xf32, #tpu.memory_space<vmem>>, vector<1x14x28xf32>
    %43 = vector.shape_cast %42 : vector<1x14x28xf32> to vector<14x28xf32>
    %cst_48 = arith.constant dense<0.000000e+00> : vector<14x56xf32>
    %44 = tpu.matmul %43, %41, %cst_48 {dimension_numbers = #tpu.dot_dimension_numbers<[1], [0], [0], [1], [0, 0, 1, 1], [], []>} : vector<14x28xf32>, vector<28x56xf32>, vector<14x56xf32> -> vector<14x56xf32>
    %45 = arith.addf %38, %44 : vector<14x56xf32>
    %c0_49 = arith.constant 0 : index
    %c0_50 = arith.constant 0 : index
    %46 = vector.load %arg7[%c0_49, %c0_50] : memref<1x56xf32, #tpu.memory_space<vmem>>, vector<1x56xf32>
    %47 = vector.broadcast %46 : vector<1x56xf32> to vector<14x56xf32>
    %48 = arith.addf %45, %47 : vector<14x56xf32>
    %cst_51 = arith.constant 0.000000e+00 : f32
    %49 = vector.broadcast %cst_51 : f32 to vector<14x56xf32>
    %50 = arith.maximumf %48, %49 : vector<14x56xf32>
    %c0_52 = arith.constant 0 : index
    %c0_53 = arith.constant 0 : index
    %c0_54 = arith.constant 0 : index
    %51 = vector.load %arg8[%c0_52, %c0_53, %c0_54] : memref<3x56x48xf32, #tpu.memory_space<vmem>>, vector<1x56x48xf32>
    %52 = vector.shape_cast %51 : vector<1x56x48xf32> to vector<56x48xf32>
    %cst_55 = arith.constant dense<0.000000e+00> : vector<14x48xf32>
    %53 = tpu.matmul %50, %52, %cst_55 {dimension_numbers = #tpu.dot_dimension_numbers<[1], [0], [0], [1], [0, 0, 1, 1], [], []>} : vector<14x56xf32>, vector<56x48xf32>, vector<14x48xf32> -> vector<14x48xf32>
    %c0_56 = arith.constant 0 : index
    %c0_57 = arith.constant 0 : index
    %c0_58 = arith.constant 0 : index
    %54 = vector.load %arg9[%c0_56, %c0_57, %c0_58] : memref<3x6x14xf32, #tpu.memory_space<vmem>>, vector<1x6x14xf32>
    %55 = vector.shape_cast %54 : vector<1x6x14xf32> to vector<6x14xf32>
    %cst_59 = arith.constant dense<0.000000e+00> : vector<6x48xf32>
    %56 = tpu.matmul %55, %53, %cst_59 {dimension_numbers = #tpu.dot_dimension_numbers<[1], [0], [0], [1], [0, 0, 1, 1], [], []>} : vector<6x14xf32>, vector<14x48xf32>, vector<6x48xf32> -> vector<6x48xf32>
    %c1_60 = arith.constant 1 : index
    %c0_61 = arith.constant 0 : index
    %c0_62 = arith.constant 0 : index
    %57 = vector.load %arg8[%c1_60, %c0_61, %c0_62] : memref<3x56x48xf32, #tpu.memory_space<vmem>>, vector<1x56x48xf32>
    %58 = vector.shape_cast %57 : vector<1x56x48xf32> to vector<56x48xf32>
    %cst_63 = arith.constant dense<0.000000e+00> : vector<14x48xf32>
    %59 = tpu.matmul %50, %58, %cst_63 {dimension_numbers = #tpu.dot_dimension_numbers<[1], [0], [0], [1], [0, 0, 1, 1], [], []>} : vector<14x56xf32>, vector<56x48xf32>, vector<14x48xf32> -> vector<14x48xf32>
    %c1_64 = arith.constant 1 : index
    %c0_65 = arith.constant 0 : index
    %c0_66 = arith.constant 0 : index
    %60 = vector.load %arg9[%c1_64, %c0_65, %c0_66] : memref<3x6x14xf32, #tpu.memory_space<vmem>>, vector<1x6x14xf32>
    %61 = vector.shape_cast %60 : vector<1x6x14xf32> to vector<6x14xf32>
    %cst_67 = arith.constant dense<0.000000e+00> : vector<6x48xf32>
    %62 = tpu.matmul %61, %59, %cst_67 {dimension_numbers = #tpu.dot_dimension_numbers<[1], [0], [0], [1], [0, 0, 1, 1], [], []>} : vector<6x14xf32>, vector<14x48xf32>, vector<6x48xf32> -> vector<6x48xf32>
    %63 = arith.addf %56, %62 : vector<6x48xf32>
    %c2_68 = arith.constant 2 : index
    %c0_69 = arith.constant 0 : index
    %c0_70 = arith.constant 0 : index
    %64 = vector.load %arg8[%c2_68, %c0_69, %c0_70] : memref<3x56x48xf32, #tpu.memory_space<vmem>>, vector<1x56x48xf32>
    %65 = vector.shape_cast %64 : vector<1x56x48xf32> to vector<56x48xf32>
    %cst_71 = arith.constant dense<0.000000e+00> : vector<14x48xf32>
    %66 = tpu.matmul %50, %65, %cst_71 {dimension_numbers = #tpu.dot_dimension_numbers<[1], [0], [0], [1], [0, 0, 1, 1], [], []>} : vector<14x56xf32>, vector<56x48xf32>, vector<14x48xf32> -> vector<14x48xf32>
    %c2_72 = arith.constant 2 : index
    %c0_73 = arith.constant 0 : index
    %c0_74 = arith.constant 0 : index
    %67 = vector.load %arg9[%c2_72, %c0_73, %c0_74] : memref<3x6x14xf32, #tpu.memory_space<vmem>>, vector<1x6x14xf32>
    %68 = vector.shape_cast %67 : vector<1x6x14xf32> to vector<6x14xf32>
    %cst_75 = arith.constant dense<0.000000e+00> : vector<6x48xf32>
    %69 = tpu.matmul %68, %66, %cst_75 {dimension_numbers = #tpu.dot_dimension_numbers<[1], [0], [0], [1], [0, 0, 1, 1], [], []>} : vector<6x14xf32>, vector<14x48xf32>, vector<6x48xf32> -> vector<6x48xf32>
    %70 = arith.addf %63, %69 : vector<6x48xf32>
    %c0_76 = arith.constant 0 : index
    %c0_77 = arith.constant 0 : index
    %71 = vector.load %arg10[%c0_76, %c0_77] : memref<1x48xf32, #tpu.memory_space<vmem>>, vector<1x48xf32>
    %72 = vector.broadcast %71 : vector<1x48xf32> to vector<6x48xf32>
    %73 = arith.addf %70, %72 : vector<6x48xf32>
    %cst_78 = arith.constant 0.000000e+00 : f32
    %74 = vector.broadcast %cst_78 : f32 to vector<6x48xf32>
    %75 = arith.maximumf %73, %74 : vector<6x48xf32>
    %c0_79 = arith.constant 0 : index
    %c0_80 = arith.constant 0 : index
    %c0_81 = arith.constant 0 : index
    %76 = vector.load %arg11[%c0_79, %c0_80, %c0_81] : memref<3x2x6xf32, #tpu.memory_space<vmem>>, vector<1x2x6xf32>
    %77 = vector.shape_cast %76 : vector<1x2x6xf32> to vector<2x6xf32>
    %cst_82 = arith.constant dense<0.000000e+00> : vector<2x48xf32>
    %78 = tpu.matmul %77, %75, %cst_82 {dimension_numbers = #tpu.dot_dimension_numbers<[1], [0], [0], [1], [0, 0, 1, 1], [], []>} : vector<2x6xf32>, vector<6x48xf32>, vector<2x48xf32> -> vector<2x48xf32>
    %c0_83 = arith.constant 0 : index
    %c0_84 = arith.constant 0 : index
    %c0_85 = arith.constant 0 : index
    %79 = vector.load %arg12[%c0_83, %c0_84, %c0_85] : memref<3x48x128xf32, #tpu.memory_space<vmem>>, vector<1x48x128xf32>
    %80 = vector.shape_cast %79 : vector<1x48x128xf32> to vector<48x128xf32>
    %cst_86 = arith.constant dense<0.000000e+00> : vector<2x128xf32>
    %81 = tpu.matmul %78, %80, %cst_86 {dimension_numbers = #tpu.dot_dimension_numbers<[1], [0], [0], [1], [0, 0, 1, 1], [], []>} : vector<2x48xf32>, vector<48x128xf32>, vector<2x128xf32> -> vector<2x128xf32>
    %c1_87 = arith.constant 1 : index
    %c0_88 = arith.constant 0 : index
    %c0_89 = arith.constant 0 : index
    %82 = vector.load %arg11[%c1_87, %c0_88, %c0_89] : memref<3x2x6xf32, #tpu.memory_space<vmem>>, vector<1x2x6xf32>
    %83 = vector.shape_cast %82 : vector<1x2x6xf32> to vector<2x6xf32>
    %cst_90 = arith.constant dense<0.000000e+00> : vector<2x48xf32>
    %84 = tpu.matmul %83, %75, %cst_90 {dimension_numbers = #tpu.dot_dimension_numbers<[1], [0], [0], [1], [0, 0, 1, 1], [], []>} : vector<2x6xf32>, vector<6x48xf32>, vector<2x48xf32> -> vector<2x48xf32>
    %c1_91 = arith.constant 1 : index
    %c0_92 = arith.constant 0 : index
    %c0_93 = arith.constant 0 : index
    %85 = vector.load %arg12[%c1_91, %c0_92, %c0_93] : memref<3x48x128xf32, #tpu.memory_space<vmem>>, vector<1x48x128xf32>
    %86 = vector.shape_cast %85 : vector<1x48x128xf32> to vector<48x128xf32>
    %cst_94 = arith.constant dense<0.000000e+00> : vector<2x128xf32>
    %87 = tpu.matmul %84, %86, %cst_94 {dimension_numbers = #tpu.dot_dimension_numbers<[1], [0], [0], [1], [0, 0, 1, 1], [], []>} : vector<2x48xf32>, vector<48x128xf32>, vector<2x128xf32> -> vector<2x128xf32>
    %88 = arith.addf %81, %87 : vector<2x128xf32>
    %c2_95 = arith.constant 2 : index
    %c0_96 = arith.constant 0 : index
    %c0_97 = arith.constant 0 : index
    %89 = vector.load %arg11[%c2_95, %c0_96, %c0_97] : memref<3x2x6xf32, #tpu.memory_space<vmem>>, vector<1x2x6xf32>
    %90 = vector.shape_cast %89 : vector<1x2x6xf32> to vector<2x6xf32>
    %cst_98 = arith.constant dense<0.000000e+00> : vector<2x48xf32>
    %91 = tpu.matmul %90, %75, %cst_98 {dimension_numbers = #tpu.dot_dimension_numbers<[1], [0], [0], [1], [0, 0, 1, 1], [], []>} : vector<2x6xf32>, vector<6x48xf32>, vector<2x48xf32> -> vector<2x48xf32>
    %c2_99 = arith.constant 2 : index
    %c0_100 = arith.constant 0 : index
    %c0_101 = arith.constant 0 : index
    %92 = vector.load %arg12[%c2_99, %c0_100, %c0_101] : memref<3x48x128xf32, #tpu.memory_space<vmem>>, vector<1x48x128xf32>
    %93 = vector.shape_cast %92 : vector<1x48x128xf32> to vector<48x128xf32>
    %cst_102 = arith.constant dense<0.000000e+00> : vector<2x128xf32>
    %94 = tpu.matmul %91, %93, %cst_102 {dimension_numbers = #tpu.dot_dimension_numbers<[1], [0], [0], [1], [0, 0, 1, 1], [], []>} : vector<2x48xf32>, vector<48x128xf32>, vector<2x128xf32> -> vector<2x128xf32>
    %95 = arith.addf %88, %94 : vector<2x128xf32>
    %c0_103 = arith.constant 0 : index
    %c0_104 = arith.constant 0 : index
    %96 = vector.load %arg13[%c0_103, %c0_104] : memref<1x128xf32, #tpu.memory_space<vmem>>, vector<1x128xf32>
    %97 = vector.broadcast %96 : vector<1x128xf32> to vector<2x128xf32>
    %98 = arith.addf %95, %97 : vector<2x128xf32>
    %cst_105 = arith.constant 0.000000e+00 : f32
    %99 = vector.broadcast %cst_105 : f32 to vector<2x128xf32>
    %100 = arith.maximumf %98, %99 : vector<2x128xf32>
    %c0_106 = arith.constant 0 : index
    %c0_107 = arith.constant 0 : index
    %101 = vector.load %arg14[%c0_106, %c0_107] : memref<128x8xf32, #tpu.memory_space<vmem>>, vector<128x8xf32>
    %cst_108 = arith.constant dense<0.000000e+00> : vector<2x8xf32>
    %102 = tpu.matmul %100, %101, %cst_108 {dimension_numbers = #tpu.dot_dimension_numbers<[1], [0], [0], [1], [0, 0, 1, 1], [], []>} : vector<2x128xf32>, vector<128x8xf32>, vector<2x8xf32> -> vector<2x8xf32>
    %c0_109 = arith.constant 0 : index
    %c0_110 = arith.constant 0 : index
    %103 = vector.load %arg15[%c0_109, %c0_110] : memref<1x8xf32, #tpu.memory_space<vmem>>, vector<1x8xf32>
    %104 = vector.broadcast %103 : vector<1x8xf32> to vector<2x8xf32>
    %105 = arith.addf %102, %104 : vector<2x8xf32>
    %c0_111 = arith.constant 0 : index
    %c0_112 = arith.constant 0 : index
    %106 = vector.load %arg16[%c0_111, %c0_112] : memref<128x8xf32, #tpu.memory_space<vmem>>, vector<128x8xf32>
    %cst_113 = arith.constant dense<0.000000e+00> : vector<2x8xf32>
    %107 = tpu.matmul %100, %106, %cst_113 {dimension_numbers = #tpu.dot_dimension_numbers<[1], [0], [0], [1], [0, 0, 1, 1], [], []>} : vector<2x128xf32>, vector<128x8xf32>, vector<2x8xf32> -> vector<2x8xf32>
    %c0_114 = arith.constant 0 : index
    %c0_115 = arith.constant 0 : index
    %108 = vector.load %arg17[%c0_114, %c0_115] : memref<1x8xf32, #tpu.memory_space<vmem>>, vector<1x8xf32>
    %109 = vector.broadcast %108 : vector<1x8xf32> to vector<2x8xf32>
    %110 = arith.addf %107, %109 : vector<2x8xf32>
    %cst_116 = arith.constant 5.000000e-01 : f32
    %111 = vector.broadcast %cst_116 : f32 to vector<2x8xf32>
    %112 = arith.mulf %110, %111 : vector<2x8xf32>
    %113 = math.exp %112 : vector<2x8xf32>
    %c0_117 = arith.constant 0 : index
    %c0_118 = arith.constant 0 : index
    %114 = vector.load %arg1[%c0_117, %c0_118] : memref<2x8xf32, #tpu.memory_space<vmem>>, vector<2x8xf32>
    %115 = arith.mulf %113, %114 : vector<2x8xf32>
    %116 = arith.addf %105, %115 : vector<2x8xf32>
    %c0_119 = arith.constant 0 : index
    %c0_120 = arith.constant 0 : index
    %117 = vector.load %arg18[%c0_119, %c0_120] : memref<8x64xf32, #tpu.memory_space<vmem>>, vector<8x64xf32>
    %cst_121 = arith.constant dense<0.000000e+00> : vector<2x64xf32>
    %118 = tpu.matmul %116, %117, %cst_121 {dimension_numbers = #tpu.dot_dimension_numbers<[1], [0], [0], [1], [0, 0, 1, 1], [], []>} : vector<2x8xf32>, vector<8x64xf32>, vector<2x64xf32> -> vector<2x64xf32>
    %c0_122 = arith.constant 0 : index
    %c0_123 = arith.constant 0 : index
    %119 = vector.load %arg19[%c0_122, %c0_123] : memref<1x64xf32, #tpu.memory_space<vmem>>, vector<1x64xf32>
    %120 = vector.broadcast %119 : vector<1x64xf32> to vector<2x64xf32>
    %121 = arith.addf %118, %120 : vector<2x64xf32>
    %cst_124 = arith.constant 0.000000e+00 : f32
    %122 = vector.broadcast %cst_124 : f32 to vector<2x64xf32>
    %123 = arith.maximumf %121, %122 : vector<2x64xf32>
    %c0_125 = arith.constant 0 : index
    %c0_126 = arith.constant 0 : index
    %c0_127 = arith.constant 0 : index
    %124 = vector.load %arg20[%c0_125, %c0_126, %c0_127] : memref<3x64x48xf32, #tpu.memory_space<vmem>>, vector<1x64x48xf32>
    %125 = vector.shape_cast %124 : vector<1x64x48xf32> to vector<64x48xf32>
    %cst_128 = arith.constant dense<0.000000e+00> : vector<2x48xf32>
    %126 = tpu.matmul %123, %125, %cst_128 {dimension_numbers = #tpu.dot_dimension_numbers<[1], [0], [0], [1], [0, 0, 1, 1], [], []>} : vector<2x64xf32>, vector<64x48xf32>, vector<2x48xf32> -> vector<2x48xf32>
    %c0_129 = arith.constant 0 : index
    %c0_130 = arith.constant 0 : index
    %c0_131 = arith.constant 0 : index
    %127 = vector.load %arg21[%c0_129, %c0_130, %c0_131] : memref<3x1x48xf32, #tpu.memory_space<vmem>>, vector<1x1x48xf32>
    %128 = vector.shape_cast %127 : vector<1x1x48xf32> to vector<1x48xf32>
    %129 = vector.broadcast %128 : vector<1x48xf32> to vector<2x48xf32>
    %130 = arith.addf %126, %129 : vector<2x48xf32>
    %cst_132 = arith.constant 0.000000e+00 : f32
    %131 = vector.broadcast %cst_132 : f32 to vector<2x48xf32>
    %132 = arith.maximumf %130, %131 : vector<2x48xf32>
    %c0_133 = arith.constant 0 : index
    %c0_134 = arith.constant 0 : index
    %c0_135 = arith.constant 0 : index
    %133 = vector.load %arg22[%c0_133, %c0_134, %c0_135] : memref<3x6x2xf32, #tpu.memory_space<vmem>>, vector<1x6x2xf32>
    %134 = vector.shape_cast %133 : vector<1x6x2xf32> to vector<6x2xf32>
    %cst_136 = arith.constant dense<0.000000e+00> : vector<6x48xf32>
    %135 = tpu.matmul %134, %132, %cst_136 {dimension_numbers = #tpu.dot_dimension_numbers<[1], [0], [0], [1], [0, 0, 1, 1], [], []>} : vector<6x2xf32>, vector<2x48xf32>, vector<6x48xf32> -> vector<6x48xf32>
    %c1_137 = arith.constant 1 : index
    %c0_138 = arith.constant 0 : index
    %c0_139 = arith.constant 0 : index
    %136 = vector.load %arg20[%c1_137, %c0_138, %c0_139] : memref<3x64x48xf32, #tpu.memory_space<vmem>>, vector<1x64x48xf32>
    %137 = vector.shape_cast %136 : vector<1x64x48xf32> to vector<64x48xf32>
    %cst_140 = arith.constant dense<0.000000e+00> : vector<2x48xf32>
    %138 = tpu.matmul %123, %137, %cst_140 {dimension_numbers = #tpu.dot_dimension_numbers<[1], [0], [0], [1], [0, 0, 1, 1], [], []>} : vector<2x64xf32>, vector<64x48xf32>, vector<2x48xf32> -> vector<2x48xf32>
    %c1_141 = arith.constant 1 : index
    %c0_142 = arith.constant 0 : index
    %c0_143 = arith.constant 0 : index
    %139 = vector.load %arg21[%c1_141, %c0_142, %c0_143] : memref<3x1x48xf32, #tpu.memory_space<vmem>>, vector<1x1x48xf32>
    %140 = vector.shape_cast %139 : vector<1x1x48xf32> to vector<1x48xf32>
    %141 = vector.broadcast %140 : vector<1x48xf32> to vector<2x48xf32>
    %142 = arith.addf %138, %141 : vector<2x48xf32>
    %cst_144 = arith.constant 0.000000e+00 : f32
    %143 = vector.broadcast %cst_144 : f32 to vector<2x48xf32>
    %144 = arith.maximumf %142, %143 : vector<2x48xf32>
    %c1_145 = arith.constant 1 : index
    %c0_146 = arith.constant 0 : index
    %c0_147 = arith.constant 0 : index
    %145 = vector.load %arg22[%c1_145, %c0_146, %c0_147] : memref<3x6x2xf32, #tpu.memory_space<vmem>>, vector<1x6x2xf32>
    %146 = vector.shape_cast %145 : vector<1x6x2xf32> to vector<6x2xf32>
    %cst_148 = arith.constant dense<0.000000e+00> : vector<6x48xf32>
    %147 = tpu.matmul %146, %144, %cst_148 {dimension_numbers = #tpu.dot_dimension_numbers<[1], [0], [0], [1], [0, 0, 1, 1], [], []>} : vector<6x2xf32>, vector<2x48xf32>, vector<6x48xf32> -> vector<6x48xf32>
    %148 = arith.addf %135, %147 : vector<6x48xf32>
    %c2_149 = arith.constant 2 : index
    %c0_150 = arith.constant 0 : index
    %c0_151 = arith.constant 0 : index
    %149 = vector.load %arg20[%c2_149, %c0_150, %c0_151] : memref<3x64x48xf32, #tpu.memory_space<vmem>>, vector<1x64x48xf32>
    %150 = vector.shape_cast %149 : vector<1x64x48xf32> to vector<64x48xf32>
    %cst_152 = arith.constant dense<0.000000e+00> : vector<2x48xf32>
    %151 = tpu.matmul %123, %150, %cst_152 {dimension_numbers = #tpu.dot_dimension_numbers<[1], [0], [0], [1], [0, 0, 1, 1], [], []>} : vector<2x64xf32>, vector<64x48xf32>, vector<2x48xf32> -> vector<2x48xf32>
    %c2_153 = arith.constant 2 : index
    %c0_154 = arith.constant 0 : index
    %c0_155 = arith.constant 0 : index
    %152 = vector.load %arg21[%c2_153, %c0_154, %c0_155] : memref<3x1x48xf32, #tpu.memory_space<vmem>>, vector<1x1x48xf32>
    %153 = vector.shape_cast %152 : vector<1x1x48xf32> to vector<1x48xf32>
    %154 = vector.broadcast %153 : vector<1x48xf32> to vector<2x48xf32>
    %155 = arith.addf %151, %154 : vector<2x48xf32>
    %cst_156 = arith.constant 0.000000e+00 : f32
    %156 = vector.broadcast %cst_156 : f32 to vector<2x48xf32>
    %157 = arith.maximumf %155, %156 : vector<2x48xf32>
    %c2_157 = arith.constant 2 : index
    %c0_158 = arith.constant 0 : index
    %c0_159 = arith.constant 0 : index
    %158 = vector.load %arg22[%c2_157, %c0_158, %c0_159] : memref<3x6x2xf32, #tpu.memory_space<vmem>>, vector<1x6x2xf32>
    %159 = vector.shape_cast %158 : vector<1x6x2xf32> to vector<6x2xf32>
    %cst_160 = arith.constant dense<0.000000e+00> : vector<6x48xf32>
    %160 = tpu.matmul %159, %157, %cst_160 {dimension_numbers = #tpu.dot_dimension_numbers<[1], [0], [0], [1], [0, 0, 1, 1], [], []>} : vector<6x2xf32>, vector<2x48xf32>, vector<6x48xf32> -> vector<6x48xf32>
    %161 = arith.addf %148, %160 : vector<6x48xf32>
    %c0_161 = arith.constant 0 : index
    %c0_162 = arith.constant 0 : index
    %c0_163 = arith.constant 0 : index
    %162 = vector.load %arg23[%c0_161, %c0_162, %c0_163] : memref<3x48x56xf32, #tpu.memory_space<vmem>>, vector<1x48x56xf32>
    %163 = vector.shape_cast %162 : vector<1x48x56xf32> to vector<48x56xf32>
    %cst_164 = arith.constant dense<0.000000e+00> : vector<6x56xf32>
    %164 = tpu.matmul %161, %163, %cst_164 {dimension_numbers = #tpu.dot_dimension_numbers<[1], [0], [0], [1], [0, 0, 1, 1], [], []>} : vector<6x48xf32>, vector<48x56xf32>, vector<6x56xf32> -> vector<6x56xf32>
    %c0_165 = arith.constant 0 : index
    %c0_166 = arith.constant 0 : index
    %c0_167 = arith.constant 0 : index
    %165 = vector.load %arg24[%c0_165, %c0_166, %c0_167] : memref<3x14x6xf32, #tpu.memory_space<vmem>>, vector<1x14x6xf32>
    %166 = vector.shape_cast %165 : vector<1x14x6xf32> to vector<14x6xf32>
    %cst_168 = arith.constant dense<0.000000e+00> : vector<14x56xf32>
    %167 = tpu.matmul %166, %164, %cst_168 {dimension_numbers = #tpu.dot_dimension_numbers<[1], [0], [0], [1], [0, 0, 1, 1], [], []>} : vector<14x6xf32>, vector<6x56xf32>, vector<14x56xf32> -> vector<14x56xf32>
    %c1_169 = arith.constant 1 : index
    %c0_170 = arith.constant 0 : index
    %c0_171 = arith.constant 0 : index
    %168 = vector.load %arg23[%c1_169, %c0_170, %c0_171] : memref<3x48x56xf32, #tpu.memory_space<vmem>>, vector<1x48x56xf32>
    %169 = vector.shape_cast %168 : vector<1x48x56xf32> to vector<48x56xf32>
    %cst_172 = arith.constant dense<0.000000e+00> : vector<6x56xf32>
    %170 = tpu.matmul %161, %169, %cst_172 {dimension_numbers = #tpu.dot_dimension_numbers<[1], [0], [0], [1], [0, 0, 1, 1], [], []>} : vector<6x48xf32>, vector<48x56xf32>, vector<6x56xf32> -> vector<6x56xf32>
    %c1_173 = arith.constant 1 : index
    %c0_174 = arith.constant 0 : index
    %c0_175 = arith.constant 0 : index
    %171 = vector.load %arg24[%c1_173, %c0_174, %c0_175] : memref<3x14x6xf32, #tpu.memory_space<vmem>>, vector<1x14x6xf32>
    %172 = vector.shape_cast %171 : vector<1x14x6xf32> to vector<14x6xf32>
    %cst_176 = arith.constant dense<0.000000e+00> : vector<14x56xf32>
    %173 = tpu.matmul %172, %170, %cst_176 {dimension_numbers = #tpu.dot_dimension_numbers<[1], [0], [0], [1], [0, 0, 1, 1], [], []>} : vector<14x6xf32>, vector<6x56xf32>, vector<14x56xf32> -> vector<14x56xf32>
    %174 = arith.addf %167, %173 : vector<14x56xf32>
    %c2_177 = arith.constant 2 : index
    %c0_178 = arith.constant 0 : index
    %c0_179 = arith.constant 0 : index
    %175 = vector.load %arg23[%c2_177, %c0_178, %c0_179] : memref<3x48x56xf32, #tpu.memory_space<vmem>>, vector<1x48x56xf32>
    %176 = vector.shape_cast %175 : vector<1x48x56xf32> to vector<48x56xf32>
    %cst_180 = arith.constant dense<0.000000e+00> : vector<6x56xf32>
    %177 = tpu.matmul %161, %176, %cst_180 {dimension_numbers = #tpu.dot_dimension_numbers<[1], [0], [0], [1], [0, 0, 1, 1], [], []>} : vector<6x48xf32>, vector<48x56xf32>, vector<6x56xf32> -> vector<6x56xf32>
    %c2_181 = arith.constant 2 : index
    %c0_182 = arith.constant 0 : index
    %c0_183 = arith.constant 0 : index
    %178 = vector.load %arg24[%c2_181, %c0_182, %c0_183] : memref<3x14x6xf32, #tpu.memory_space<vmem>>, vector<1x14x6xf32>
    %179 = vector.shape_cast %178 : vector<1x14x6xf32> to vector<14x6xf32>
    %cst_184 = arith.constant dense<0.000000e+00> : vector<14x56xf32>
    %180 = tpu.matmul %179, %177, %cst_184 {dimension_numbers = #tpu.dot_dimension_numbers<[1], [0], [0], [1], [0, 0, 1, 1], [], []>} : vector<14x6xf32>, vector<6x56xf32>, vector<14x56xf32> -> vector<14x56xf32>
    %181 = arith.addf %174, %180 : vector<14x56xf32>
    %c0_185 = arith.constant 0 : index
    %c0_186 = arith.constant 0 : index
    %182 = vector.load %arg25[%c0_185, %c0_186] : memref<1x56xf32, #tpu.memory_space<vmem>>, vector<1x56xf32>
    %183 = vector.broadcast %182 : vector<1x56xf32> to vector<14x56xf32>
    %184 = arith.addf %181, %183 : vector<14x56xf32>
    %cst_187 = arith.constant 0.000000e+00 : f32
    %185 = vector.broadcast %cst_187 : f32 to vector<14x56xf32>
    %186 = arith.maximumf %184, %185 : vector<14x56xf32>
    %c0_188 = arith.constant 0 : index
    %c0_189 = arith.constant 0 : index
    %c0_190 = arith.constant 0 : index
    %187 = vector.load %arg26[%c0_188, %c0_189, %c0_190] : memref<3x56x56xf32, #tpu.memory_space<vmem>>, vector<1x56x56xf32>
    %188 = vector.shape_cast %187 : vector<1x56x56xf32> to vector<56x56xf32>
    %cst_191 = arith.constant dense<0.000000e+00> : vector<14x56xf32>
    %189 = tpu.matmul %186, %188, %cst_191 {dimension_numbers = #tpu.dot_dimension_numbers<[1], [0], [0], [1], [0, 0, 1, 1], [], []>} : vector<14x56xf32>, vector<56x56xf32>, vector<14x56xf32> -> vector<14x56xf32>
    %c0_192 = arith.constant 0 : index
    %c0_193 = arith.constant 0 : index
    %c0_194 = arith.constant 0 : index
    %190 = vector.load %arg27[%c0_192, %c0_193, %c0_194] : memref<3x28x14xf32, #tpu.memory_space<vmem>>, vector<1x28x14xf32>
    %191 = vector.shape_cast %190 : vector<1x28x14xf32> to vector<28x14xf32>
    %cst_195 = arith.constant dense<0.000000e+00> : vector<28x56xf32>
    %192 = tpu.matmul %191, %189, %cst_195 {dimension_numbers = #tpu.dot_dimension_numbers<[1], [0], [0], [1], [0, 0, 1, 1], [], []>} : vector<28x14xf32>, vector<14x56xf32>, vector<28x56xf32> -> vector<28x56xf32>
    %c1_196 = arith.constant 1 : index
    %c0_197 = arith.constant 0 : index
    %c0_198 = arith.constant 0 : index
    %193 = vector.load %arg26[%c1_196, %c0_197, %c0_198] : memref<3x56x56xf32, #tpu.memory_space<vmem>>, vector<1x56x56xf32>
    %194 = vector.shape_cast %193 : vector<1x56x56xf32> to vector<56x56xf32>
    %cst_199 = arith.constant dense<0.000000e+00> : vector<14x56xf32>
    %195 = tpu.matmul %186, %194, %cst_199 {dimension_numbers = #tpu.dot_dimension_numbers<[1], [0], [0], [1], [0, 0, 1, 1], [], []>} : vector<14x56xf32>, vector<56x56xf32>, vector<14x56xf32> -> vector<14x56xf32>
    %c1_200 = arith.constant 1 : index
    %c0_201 = arith.constant 0 : index
    %c0_202 = arith.constant 0 : index
    %196 = vector.load %arg27[%c1_200, %c0_201, %c0_202] : memref<3x28x14xf32, #tpu.memory_space<vmem>>, vector<1x28x14xf32>
    %197 = vector.shape_cast %196 : vector<1x28x14xf32> to vector<28x14xf32>
    %cst_203 = arith.constant dense<0.000000e+00> : vector<28x56xf32>
    %198 = tpu.matmul %197, %195, %cst_203 {dimension_numbers = #tpu.dot_dimension_numbers<[1], [0], [0], [1], [0, 0, 1, 1], [], []>} : vector<28x14xf32>, vector<14x56xf32>, vector<28x56xf32> -> vector<28x56xf32>
    %199 = arith.addf %192, %198 : vector<28x56xf32>
    %c2_204 = arith.constant 2 : index
    %c0_205 = arith.constant 0 : index
    %c0_206 = arith.constant 0 : index
    %200 = vector.load %arg26[%c2_204, %c0_205, %c0_206] : memref<3x56x56xf32, #tpu.memory_space<vmem>>, vector<1x56x56xf32>
    %201 = vector.shape_cast %200 : vector<1x56x56xf32> to vector<56x56xf32>
    %cst_207 = arith.constant dense<0.000000e+00> : vector<14x56xf32>
    %202 = tpu.matmul %186, %201, %cst_207 {dimension_numbers = #tpu.dot_dimension_numbers<[1], [0], [0], [1], [0, 0, 1, 1], [], []>} : vector<14x56xf32>, vector<56x56xf32>, vector<14x56xf32> -> vector<14x56xf32>
    %c2_208 = arith.constant 2 : index
    %c0_209 = arith.constant 0 : index
    %c0_210 = arith.constant 0 : index
    %203 = vector.load %arg27[%c2_208, %c0_209, %c0_210] : memref<3x28x14xf32, #tpu.memory_space<vmem>>, vector<1x28x14xf32>
    %204 = vector.shape_cast %203 : vector<1x28x14xf32> to vector<28x14xf32>
    %cst_211 = arith.constant dense<0.000000e+00> : vector<28x56xf32>
    %205 = tpu.matmul %204, %202, %cst_211 {dimension_numbers = #tpu.dot_dimension_numbers<[1], [0], [0], [1], [0, 0, 1, 1], [], []>} : vector<28x14xf32>, vector<14x56xf32>, vector<28x56xf32> -> vector<28x56xf32>
    %206 = arith.addf %199, %205 : vector<28x56xf32>
    %c0_212 = arith.constant 0 : index
    %c0_213 = arith.constant 0 : index
    %207 = vector.load %arg28[%c0_212, %c0_213] : memref<1x56xf32, #tpu.memory_space<vmem>>, vector<1x56xf32>
    %208 = vector.broadcast %207 : vector<1x56xf32> to vector<28x56xf32>
    %209 = arith.addf %206, %208 : vector<28x56xf32>
    %cst_214 = arith.constant 0.000000e+00 : f32
    %210 = vector.broadcast %cst_214 : f32 to vector<28x56xf32>
    %211 = arith.maximumf %209, %210 : vector<28x56xf32>
    %c0_215 = arith.constant 0 : index
    %c0_216 = arith.constant 0 : index
    %c0_217 = arith.constant 0 : index
    %212 = vector.load %arg29[%c0_215, %c0_216, %c0_217] : memref<3x56x28xf32, #tpu.memory_space<vmem>>, vector<1x56x28xf32>
    %213 = vector.shape_cast %212 : vector<1x56x28xf32> to vector<56x28xf32>
    %cst_218 = arith.constant dense<0.000000e+00> : vector<28x28xf32>
    %214 = tpu.matmul %211, %213, %cst_218 {dimension_numbers = #tpu.dot_dimension_numbers<[1], [0], [0], [1], [0, 0, 1, 1], [], []>} : vector<28x56xf32>, vector<56x28xf32>, vector<28x28xf32> -> vector<28x28xf32>
    %c0_219 = arith.constant 0 : index
    %c0_220 = arith.constant 0 : index
    %c0_221 = arith.constant 0 : index
    %215 = vector.load %arg30[%c0_219, %c0_220, %c0_221] : memref<3x56x28xf32, #tpu.memory_space<vmem>>, vector<1x56x28xf32>
    %216 = vector.shape_cast %215 : vector<1x56x28xf32> to vector<56x28xf32>
    %cst_222 = arith.constant dense<0.000000e+00> : vector<56x28xf32>
    %217 = tpu.matmul %216, %214, %cst_222 {dimension_numbers = #tpu.dot_dimension_numbers<[1], [0], [0], [1], [0, 0, 1, 1], [], []>} : vector<56x28xf32>, vector<28x28xf32>, vector<56x28xf32> -> vector<56x28xf32>
    %c1_223 = arith.constant 1 : index
    %c0_224 = arith.constant 0 : index
    %c0_225 = arith.constant 0 : index
    %218 = vector.load %arg29[%c1_223, %c0_224, %c0_225] : memref<3x56x28xf32, #tpu.memory_space<vmem>>, vector<1x56x28xf32>
    %219 = vector.shape_cast %218 : vector<1x56x28xf32> to vector<56x28xf32>
    %cst_226 = arith.constant dense<0.000000e+00> : vector<28x28xf32>
    %220 = tpu.matmul %211, %219, %cst_226 {dimension_numbers = #tpu.dot_dimension_numbers<[1], [0], [0], [1], [0, 0, 1, 1], [], []>} : vector<28x56xf32>, vector<56x28xf32>, vector<28x28xf32> -> vector<28x28xf32>
    %c1_227 = arith.constant 1 : index
    %c0_228 = arith.constant 0 : index
    %c0_229 = arith.constant 0 : index
    %221 = vector.load %arg30[%c1_227, %c0_228, %c0_229] : memref<3x56x28xf32, #tpu.memory_space<vmem>>, vector<1x56x28xf32>
    %222 = vector.shape_cast %221 : vector<1x56x28xf32> to vector<56x28xf32>
    %cst_230 = arith.constant dense<0.000000e+00> : vector<56x28xf32>
    %223 = tpu.matmul %222, %220, %cst_230 {dimension_numbers = #tpu.dot_dimension_numbers<[1], [0], [0], [1], [0, 0, 1, 1], [], []>} : vector<56x28xf32>, vector<28x28xf32>, vector<56x28xf32> -> vector<56x28xf32>
    %224 = arith.addf %217, %223 : vector<56x28xf32>
    %c2_231 = arith.constant 2 : index
    %c0_232 = arith.constant 0 : index
    %c0_233 = arith.constant 0 : index
    %225 = vector.load %arg29[%c2_231, %c0_232, %c0_233] : memref<3x56x28xf32, #tpu.memory_space<vmem>>, vector<1x56x28xf32>
    %226 = vector.shape_cast %225 : vector<1x56x28xf32> to vector<56x28xf32>
    %cst_234 = arith.constant dense<0.000000e+00> : vector<28x28xf32>
    %227 = tpu.matmul %211, %226, %cst_234 {dimension_numbers = #tpu.dot_dimension_numbers<[1], [0], [0], [1], [0, 0, 1, 1], [], []>} : vector<28x56xf32>, vector<56x28xf32>, vector<28x28xf32> -> vector<28x28xf32>
    %c2_235 = arith.constant 2 : index
    %c0_236 = arith.constant 0 : index
    %c0_237 = arith.constant 0 : index
    %228 = vector.load %arg30[%c2_235, %c0_236, %c0_237] : memref<3x56x28xf32, #tpu.memory_space<vmem>>, vector<1x56x28xf32>
    %229 = vector.shape_cast %228 : vector<1x56x28xf32> to vector<56x28xf32>
    %cst_238 = arith.constant dense<0.000000e+00> : vector<56x28xf32>
    %230 = tpu.matmul %229, %227, %cst_238 {dimension_numbers = #tpu.dot_dimension_numbers<[1], [0], [0], [1], [0, 0, 1, 1], [], []>} : vector<56x28xf32>, vector<28x28xf32>, vector<56x28xf32> -> vector<56x28xf32>
    %231 = arith.addf %224, %230 : vector<56x28xf32>
    %c0_239 = arith.constant 0 : index
    %c0_240 = arith.constant 0 : index
    %232 = vector.load %arg31[%c0_239, %c0_240] : memref<1x28xf32, #tpu.memory_space<vmem>>, vector<1x28xf32>
    %233 = vector.broadcast %232 : vector<1x28xf32> to vector<56x28xf32>
    %234 = arith.addf %231, %233 : vector<56x28xf32>
    %c0_241 = arith.constant 0 : index
    %c0_242 = arith.constant 0 : index
    %235 = vector.load %arg32[%c0_241, %c0_242] : memref<56x28xf32, #tpu.memory_space<vmem>>, vector<56x28xf32>
    tpu.vector_store %arg32[%c0_241, %c0_242], %234 {strides = array<i32>} : memref<56x28xf32, #tpu.memory_space<vmem>>, vector<56x28xf32>,
    %c0_243 = arith.constant 0 : index
    %c0_244 = arith.constant 0 : index
    %236 = vector.load %arg33[%c0_243, %c0_244] : memref<2x8xf32, #tpu.memory_space<vmem>>, vector<2x8xf32>
    tpu.vector_store %arg33[%c0_243, %c0_244], %105 {strides = array<i32>} : memref<2x8xf32, #tpu.memory_space<vmem>>, vector<2x8xf32>,
    %c0_245 = arith.constant 0 : index
    %c0_246 = arith.constant 0 : index
    %237 = vector.load %arg34[%c0_245, %c0_246] : memref<2x8xf32, #tpu.memory_space<vmem>>, vector<2x8xf32>
    tpu.vector_store %arg34[%c0_245, %c0_246], %110 {strides = array<i32>} : memref<2x8xf32, #tpu.memory_space<vmem>>, vector<2x8xf32>,
    return
  }
}

</mosaic_0001>

<llo_original>
// kernel: vae_forward.1
$region0: #{vae_forward.1}
  #allocation0 [shape = 'u32[]', space=smem, size = 0x4, offset = 0x4, fixed_abs, tag = 'smem constant byte address 0x4 - core index']
  #allocation1 [shape = 'u32[144,128]{1,0:T(1,128)}', space=vmem, size = 0x12000, scoped, tag = 'internal scratch']
  %s0 = inlined_call_operand.smem [shape: u32[35], index: -1, kind: input, shape index: {}]
  %s1 = sld [smem:[%s0]]
  %s2 = scalar_lea.smem %s0, 1
  %s3 = sld [smem:[%s2]]
  %s4 = scalar_lea.smem %s0, 2
  %s5 = sld [smem:[%s4]]
  %s6 = scalar_lea.smem %s0, 3
  %s7 = sld [smem:[%s6]]
  %s8 = scalar_lea.smem %s0, 4
  %s9 = sld [smem:[%s8]]
  %s10 = scalar_lea.smem %s0, 5
  %s11 = sld [smem:[%s10]]
  %s12 = scalar_lea.smem %s0, 6
  %s13 = sld [smem:[%s12]]
  %s14 = scalar_lea.smem %s0, 7
  %s15 = sld [smem:[%s14]]
  %s16 = scalar_lea.smem %s0, 8
  %s17 = sld [smem:[%s16]]
  %s18 = scalar_lea.smem %s0, 9
  %s19 = sld [smem:[%s18]]
  %s20 = scalar_lea.smem %s0, 10
  %s21 = sld [smem:[%s20]]
  %s22 = scalar_lea.smem %s0, 11
  %s23 = sld [smem:[%s22]]
  %s24 = scalar_lea.smem %s0, 12
  %s25 = sld [smem:[%s24]]
  %s26 = scalar_lea.smem %s0, 13
  %s27 = sld [smem:[%s26]]
  %s28 = scalar_lea.smem %s0, 14
  %s29 = sld [smem:[%s28]]
  %s30 = scalar_lea.smem %s0, 15
  %s31 = sld [smem:[%s30]]
  %s32 = scalar_lea.smem %s0, 16
  %s33 = sld [smem:[%s32]]
  %s34 = scalar_lea.smem %s0, 17
  %s35 = sld [smem:[%s34]]
  %s36 = scalar_lea.smem %s0, 18
  %s37 = sld [smem:[%s36]]
  %s38 = scalar_lea.smem %s0, 19
  %s39 = sld [smem:[%s38]]
  %s40 = scalar_lea.smem %s0, 20
  %s41 = sld [smem:[%s40]]
  %s42 = scalar_lea.smem %s0, 21
  %s43 = sld [smem:[%s42]]
  %s44 = scalar_lea.smem %s0, 22
  %s45 = sld [smem:[%s44]]
  %s46 = scalar_lea.smem %s0, 23
  %s47 = sld [smem:[%s46]]
  %s48 = scalar_lea.smem %s0, 24
  %s49 = sld [smem:[%s48]]
  %s50 = scalar_lea.smem %s0, 25
  %s51 = sld [smem:[%s50]]
  %s52 = scalar_lea.smem %s0, 26
  %s53 = sld [smem:[%s52]]
  %s54 = scalar_lea.smem %s0, 27
  %s55 = sld [smem:[%s54]]
  %s56 = scalar_lea.smem %s0, 28
  %s57 = sld [smem:[%s56]]
  %s58 = scalar_lea.smem %s0, 29
  %s59 = sld [smem:[%s58]]
  %s60 = scalar_lea.smem %s0, 30
  %s61 = sld [smem:[%s60]]
  %s62 = scalar_lea.smem %s0, 31
  %s63 = sld [smem:[%s62]]
  %s64 = scalar_lea.smem %s0, 32
  %s65 = sld [smem:[%s64]]
  %s66 = scalar_lea.smem %s0, 33
  %s67 = sld [smem:[%s66]]
  %s68 = scalar_lea.smem %s0, 34
  %s69 = sld [smem:[%s68]]
  %70 = xla_tuple %s65, %s67, %s69
  %s71 = sld [smem:[#allocation0]]
  $region154: #{vae_forward.1} parent=0
    _
  %s73 = ssub.s32 1, %s71
  %s74 = scalar_select 0, %s73, %s71
  $region1: #{vae_forward.1} parent=0
    #allocation2 [shape = 'u8[28672]{0}', space=vmem, size = 0x7000, scoped, tag = 'output window, operand 0, single buffered']
    #allocation3 [shape = 's32[1]{0}', space=sflag, size = 0x4, scoped, tag = 'scoped memory for vae_forward.1']
    #allocation4 [shape = 'u8[1024]{0}', space=vmem, size = 0x400, scoped, tag = 'output window, operand 1, single buffered']
    #allocation5 [shape = 's32[1]{0}', space=sflag, size = 0x4, scoped, tag = 'scoped memory for vae_forward.1']
    #allocation6 [shape = 'u8[1024]{0}', space=vmem, size = 0x400, scoped, tag = 'output window, operand 2, single buffered']
    %75 = vsyncpa [#allocation3], 0
    %76 = vsyncpa [#allocation5], 0
    // Predicated region
    $region2: #{vae_forward.1} parent=1 // pred_check
      _
    $region3: #{vae_forward.1} parent=1 // pred_check_branch
      %78 = sbr.rel (0) target = $region5
    $region4: #{vae_forward.1} parent=1 // pred_region
      _
    $region5: #{vae_forward.1} parent=1 // pred_fallthru
      _
    // Predicated region
    $region6: #{vae_forward.1} parent=1 // pred_check
      _
    $region7: #{vae_forward.1} parent=1 // pred_check_branch
      %80 = sbr.rel (0) target = $region9
    $region8: #{vae_forward.1} parent=1 // pred_region
      _
    $region9: #{vae_forward.1} parent=1 // pred_fallthru
      _
    // Predicated region
    $region10: #{vae_forward.1} parent=1 // pred_check
      _
    $region11: #{vae_forward.1} parent=1 // pred_check_branch
      %82 = sbr.rel (0) target = $region13
    $region12: #{vae_forward.1} parent=1 // pred_region
      _
    $region13: #{vae_forward.1} parent=1 // pred_fallthru
      _
    // Predicated region
    $region14: #{vae_forward.1} parent=1 // pred_check
      _
    $region15: #{vae_forward.1} parent=1 // pred_check_branch
      %84 = sbr.rel (0) target = $region17
    $region16: #{vae_forward.1} parent=1 // pred_region
      _
    $region17: #{vae_forward.1} parent=1 // pred_fallthru
      _
    // Predicated region
    $region18: #{vae_forward.1} parent=1 // pred_check
      _
    $region19: #{vae_forward.1} parent=1 // pred_check_branch
      %86 = sbr.rel (0) target = $region21
    $region20: #{vae_forward.1} parent=1 // pred_region
      _
    $region21: #{vae_forward.1} parent=1 // pred_fallthru
      _
    // Predicated region
    $region22: #{vae_forward.1} parent=1 // pred_check
      _
    $region23: #{vae_forward.1} parent=1 // pred_check_branch
      %88 = sbr.rel (0) target = $region25
    $region24: #{vae_forward.1} parent=1 // pred_region
      _
    $region25: #{vae_forward.1} parent=1 // pred_fallthru
      _
    // Predicated region
    $region26: #{vae_forward.1} parent=1 // pred_check
      _
    $region27: #{vae_forward.1} parent=1 // pred_check_branch
      %90 = sbr.rel (0) target = $region29
    $region28: #{vae_forward.1} parent=1 // pred_region
      _
    $region29: #{vae_forward.1} parent=1 // pred_fallthru
      _
    // Predicated region
    $region30: #{vae_forward.1} parent=1 // pred_check
      _
    $region31: #{vae_forward.1} parent=1 // pred_check_branch
      %92 = sbr.rel (0) target = $region33
    $region32: #{vae_forward.1} parent=1 // pred_region
      _
    $region33: #{vae_forward.1} parent=1 // pred_fallthru
      _
    // Predicated region
    $region34: #{vae_forward.1} parent=1 // pred_check
      _
    $region35: #{vae_forward.1} parent=1 // pred_check_branch
      %94 = sbr.rel (0) target = $region37
    $region36: #{vae_forward.1} parent=1 // pred_region
      _
    $region37: #{vae_forward.1} parent=1 // pred_fallthru
      _
    // Predicated region
    $region38: #{vae_forward.1} parent=1 // pred_check
      _
    $region39: #{vae_forward.1} parent=1 // pred_check_branch
      %96 = sbr.rel (0) target = $region41
    $region40: #{vae_forward.1} parent=1 // pred_region
      _
    $region41: #{vae_forward.1} parent=1 // pred_fallthru
      _
    // Predicated region
    $region42: #{vae_forward.1} parent=1 // pred_check
      _
    $region43: #{vae_forward.1} parent=1 // pred_check_branch
      %98 = sbr.rel (0) target = $region45
    $region44: #{vae_forward.1} parent=1 // pred_region
      _
    $region45: #{vae_forward.1} parent=1 // pred_fallthru
      _
    // Predicated region
    $region46: #{vae_forward.1} parent=1 // pred_check
      _
    $region47: #{vae_forward.1} parent=1 // pred_check_branch
      %100 = sbr.rel (0) target = $region49
    $region48: #{vae_forward.1} parent=1 // pred_region
      _
    $region49: #{vae_forward.1} parent=1 // pred_fallthru
      _
    // Predicated region
    $region50: #{vae_forward.1} parent=1 // pred_check
      _
    $region51: #{vae_forward.1} parent=1 // pred_check_branch
      %102 = sbr.rel (0) target = $region53
    $region52: #{vae_forward.1} parent=1 // pred_region
      _
    $region53: #{vae_forward.1} parent=1 // pred_fallthru
      _
    // Predicated region
    $region54: #{vae_forward.1} parent=1 // pred_check
      _
    $region55: #{vae_forward.1} parent=1 // pred_check_branch
      %104 = sbr.rel (0) target = $region57
    $region56: #{vae_forward.1} parent=1 // pred_region
      _
    $region57: #{vae_forward.1} parent=1 // pred_fallthru
      _
    // Predicated region
    $region58: #{vae_forward.1} parent=1 // pred_check
      _
    $region59: #{vae_forward.1} parent=1 // pred_check_branch
      %106 = sbr.rel (0) target = $region61
    $region60: #{vae_forward.1} parent=1 // pred_region
      _
    $region61: #{vae_forward.1} parent=1 // pred_fallthru
      _
    // Predicated region
    $region62: #{vae_forward.1} parent=1 // pred_check
      _
    $region63: #{vae_forward.1} parent=1 // pred_check_branch
      %108 = sbr.rel (0) target = $region65
    $region64: #{vae_forward.1} parent=1 // pred_region
      _
    $region65: #{vae_forward.1} parent=1 // pred_fallthru
      _
    // Predicated region
    $region66: #{vae_forward.1} parent=1 // pred_check
      _
    $region67: #{vae_forward.1} parent=1 // pred_check_branch
      %110 = sbr.rel (0) target = $region69
    $region68: #{vae_forward.1} parent=1 // pred_region
      _
    $region69: #{vae_forward.1} parent=1 // pred_fallthru
      _
    // Predicated region
    $region70: #{vae_forward.1} parent=1 // pred_check
      _
    $region71: #{vae_forward.1} parent=1 // pred_check_branch
      %112 = sbr.rel (0) target = $region73
    $region72: #{vae_forward.1} parent=1 // pred_region
      _
    $region73: #{vae_forward.1} parent=1 // pred_fallthru
      _
    // Predicated region
    $region74: #{vae_forward.1} parent=1 // pred_check
      _
    $region75: #{vae_forward.1} parent=1 // pred_check_branch
      %114 = sbr.rel (0) target = $region77
    $region76: #{vae_forward.1} parent=1 // pred_region
      _
    $region77: #{vae_forward.1} parent=1 // pred_fallthru
      _
    // Predicated region
    $region78: #{vae_forward.1} parent=1 // pred_check
      _
    $region79: #{vae_forward.1} parent=1 // pred_check_branch
      %116 = sbr.rel (0) target = $region81
    $region80: #{vae_forward.1} parent=1 // pred_region
      _
    $region81: #{vae_forward.1} parent=1 // pred_fallthru
      _
    // Predicated region
    $region82: #{vae_forward.1} parent=1 // pred_check
      _
    $region83: #{vae_forward.1} parent=1 // pred_check_branch
      %118 = sbr.rel (0) target = $region85
    $region84: #{vae_forward.1} parent=1 // pred_region
      _
    $region85: #{vae_forward.1} parent=1 // pred_fallthru
      _
    // Predicated region
    $region86: #{vae_forward.1} parent=1 // pred_check
      _
    $region87: #{vae_forward.1} parent=1 // pred_check_branch
      %120 = sbr.rel (0) target = $region89
    $region88: #{vae_forward.1} parent=1 // pred_region
      _
    $region89: #{vae_forward.1} parent=1 // pred_fallthru
      _
    // Predicated region
    $region90: #{vae_forward.1} parent=1 // pred_check
      _
    $region91: #{vae_forward.1} parent=1 // pred_check_branch
      %122 = sbr.rel (0) target = $region93
    $region92: #{vae_forward.1} parent=1 // pred_region
      _
    $region93: #{vae_forward.1} parent=1 // pred_fallthru
      _
    // Predicated region
    $region94: #{vae_forward.1} parent=1 // pred_check
      _
    $region95: #{vae_forward.1} parent=1 // pred_check_branch
      %124 = sbr.rel (0) target = $region97
    $region96: #{vae_forward.1} parent=1 // pred_region
      _
    $region97: #{vae_forward.1} parent=1 // pred_fallthru
      _
    // Predicated region
    $region98: #{vae_forward.1} parent=1 // pred_check
      _
    $region99: #{vae_forward.1} parent=1 // pred_check_branch
      %126 = sbr.rel (0) target = $region101
    $region100: #{vae_forward.1} parent=1 // pred_region
      _
    $region101: #{vae_forward.1} parent=1 // pred_fallthru
      _
    // Predicated region
    $region102: #{vae_forward.1} parent=1 // pred_check
      _
    $region103: #{vae_forward.1} parent=1 // pred_check_branch
      %128 = sbr.rel (0) target = $region105
    $region104: #{vae_forward.1} parent=1 // pred_region
      _
    $region105: #{vae_forward.1} parent=1 // pred_fallthru
      _
    // Predicated region
    $region106: #{vae_forward.1} parent=1 // pred_check
      _
    $region107: #{vae_forward.1} parent=1 // pred_check_branch
      %130 = sbr.rel (0) target = $region109
    $region108: #{vae_forward.1} parent=1 // pred_region
      _
    $region109: #{vae_forward.1} parent=1 // pred_fallthru
      _
    // Predicated region
    $region110: #{vae_forward.1} parent=1 // pred_check
      _
    $region111: #{vae_forward.1} parent=1 // pred_check_branch
      %132 = sbr.rel (0) target = $region113
    $region112: #{vae_forward.1} parent=1 // pred_region
      _
    $region113: #{vae_forward.1} parent=1 // pred_fallthru
      _
    // Predicated region
    $region114: #{vae_forward.1} parent=1 // pred_check
      _
    $region115: #{vae_forward.1} parent=1 // pred_check_branch
      %134 = sbr.rel (0) target = $region117
    $region116: #{vae_forward.1} parent=1 // pred_region
      _
    $region117: #{vae_forward.1} parent=1 // pred_fallthru
      _
    // Predicated region
    $region118: #{vae_forward.1} parent=1 // pred_check
      _
    $region119: #{vae_forward.1} parent=1 // pred_check_branch
      %136 = sbr.rel (0) target = $region121
    $region120: #{vae_forward.1} parent=1 // pred_region
      _
    $region121: #{vae_forward.1} parent=1 // pred_fallthru
      _
    // Predicated region
    $region122: #{vae_forward.1} parent=1 // pred_check
      _
    $region123: #{vae_forward.1} parent=1 // pred_check_branch
      %138 = sbr.rel (0) target = $region125
    $region124: #{vae_forward.1} parent=1 // pred_region
      _
    $region125: #{vae_forward.1} parent=1 // pred_fallthru
      _
    // Predicated region
    $region126: #{vae_forward.1} parent=1 // pred_check
      _
    $region127: #{vae_forward.1} parent=1 // pred_check_branch
      %140 = sbr.rel (0) target = $region129
    $region128: #{vae_forward.1} parent=1 // pred_region
      _
    $region129: #{vae_forward.1} parent=1 // pred_fallthru
      _
    %v141 = vld [vmem:[%s1] sm:$0xff]
    %v142 = vld [vmem:[%s1 + $0x8] sm:$0xff]
    %v143 = vld [vmem:[%s1 + $0x10] sm:$0xff]
    %v144 = vld [vmem:[%s1 + $0x18] sm:$0xff]
    %v145 = vld [vmem:[%s1 + $0x20] sm:$0xff]
    %v146 = vld [vmem:[%s1 + $0x28] sm:$0xff]
    %v147 = vld [vmem:[%s1 + $0x30] sm:$0xff]
    %v148 = vld [vmem:[%s5] sm:$0xff]
    %v149 = vld [vmem:[%s5 + $0x8] sm:$0xff]
    %v150 = vld [vmem:[%s5 + $0x10] sm:$0xff]
    %v151 = vld [vmem:[%s5 + $0x18] sm:$0xf]
    %vm152 = vcmask 228352
    %v154 = vsel %vm152, %v141, 0
    %v157 = vsel %vm152, %v142, 0
    %v160 = vsel %vm152, %v143, 0
    %v163 = vsel %vm152, %v144, 0
    %v166 = vsel %vm152, %v145, 0
    %v169 = vsel %vm152, %v146, 0
    %v172 = vsel %vm152, %v147, 0
    %vm174 = vcmask 1043456
    %v176 = vsel %vm174, %v151, 0
    %178 = vmatprep.subr.mxu0 0.0
    %179 = vmatpush1.msra.mxu0 %v148
    %180 = vmatprep.subr.mxu0 0.0
    %181 = vmatpush1.msra.mxu0 %v149
    %182 = vmatprep.subr.mxu0 0.0
    %183 = vmatpush1.msra.mxu0 %v150
    %184 = vmatprep.subr.mxu0 0.0
    %185 = vmatpush1.msra.mxu0 %v176
    %186 = vmatprep.subr.mxu0 0.0
    %187 = vmatpush1.msra.mxu0 0.0
    %188 = vmatprep.subr.mxu0 0.0
    %189 = vmatpush1.msra.mxu0 0.0
    %190 = vmatprep.subr.mxu0 0.0
    %191 = vmatpush1.msra.mxu0 0.0
    %192 = vmatprep.subr.mxu0 0.0
    %193 = vmatpush1.msra.mxu0 0.0
    %194 = vmatprep.subr.mxu0 0.0
    %195 = vmatpush1.msra.mxu0 0.0
    %196 = vmatprep.subr.mxu0 0.0
    %197 = vmatpush1.msra.mxu0 0.0
    %198 = vmatprep.subr.mxu0 0.0
    %199 = vmatpush1.msra.mxu0 0.0
    %200 = vmatprep.subr.mxu0 0.0
    %201 = vmatpush1.msra.mxu0 0.0
    %202 = vmatprep.subr.mxu0 0.0
    %203 = vmatpush1.msra.mxu0 0.0
    %204 = vmatprep.subr.mxu0 0.0
    %205 = vmatpush1.msra.mxu0 0.0
    %206 = vmatprep.subr.mxu0 0.0
    %207 = vmatpush1.msra.mxu0 0.0
    %208 = vmatprep.subr.mxu0 0.0
    %209 = vmatpush1.msra.mxu0 0.0
    %210 = vmatprep.subr.mxu0 0.0
    %211 = vmatpush1.msra.mxu0 0.0
    %212 = vmatprep.subr.mxu0 0.0
    %213 = vmatpush1.msra.mxu0 0.0
    %214 = vmatprep.subr.mxu0 0.0
    %215 = vmatpush1.msra.mxu0 0.0
    %216 = vmatprep.subr.mxu0 0.0
    %217 = vmatpush1.msra.mxu0 0.0
    %218 = vmatprep.subr.mxu0 0.0
    %219 = vmatpush1.msra.mxu0 0.0
    %220 = vmatprep.subr.mxu0 0.0
    %221 = vmatpush1.msra.mxu0 0.0
    %222 = vmatprep.subr.mxu0 0.0
    %223 = vmatpush1.msra.mxu0 0.0
    %224 = vmatprep.subr.mxu0 0.0
    %225 = vmatpush1.msra.mxu0 0.0
    %226 = vmatprep.subr.mxu0 0.0
    %227 = vmatpush1.msra.mxu0 0.0
    %228 = vmatprep.subr.mxu0 0.0
    %229 = vmatpush1.msra.mxu0 0.0
    %230 = vmatprep.subr.mxu0 0.0
    %231 = vmatpush1.msra.mxu0 0.0
    %232 = vmatprep.subr.mxu0 0.0
    %233 = vmatpush1.msra.mxu0 0.0
    %234 = vmatprep.subr.mxu0 0.0
    %235 = vmatpush1.msra.mxu0 0.0
    %236 = vmatprep.subr.mxu0 0.0
    %237 = vmatpush1.msra.mxu0 0.0
    %238 = vmatprep.subr.mxu0 0.0
    %239 = vmatpush1.msra.mxu0 0.0
    %240 = vmatprep.subr.mxu0 0.0
    %241 = vmatpush1.msra.mxu0 0.0
    %242 = vmatprep.mubr.f32.mxu0 0.0
    %243 = vmatmul.mubr.f32.gmra.mrb[0].mxu0 %v154
    %v244 = vpop.f32.mrb[0].mxu0
    %v245 = vadd.f32 0.0, %v244
    %v246 = vpop.f32.mrb[0].mxu0
    %247 = vmatprep.mubr.f32.mxu0 0.0
    %248 = vmatmul.mubr.f32.gmra.mrb[0].mxu0 %v157
    %v249 = vpop.f32.mrb[0].mxu0
    %v250 = vadd.f32 0.0, %v249
    %v251 = vpop.f32.mrb[0].mxu0
    %252 = vmatprep.mubr.f32.mxu0 0.0
    %253 = vmatmul.mubr.f32.gmra.mrb[0].mxu0 %v160
    %v254 = vpop.f32.mrb[0].mxu0
    %v255 = vadd.f32 0.0, %v254
    %v256 = vpop.f32.mrb[0].mxu0
    %257 = vmatprep.mubr.f32.mxu0 0.0
    %258 = vmatmul.mubr.f32.gmra.mrb[0].mxu0 %v163
    %v259 = vpop.f32.mrb[0].mxu0
    %v260 = vadd.f32 0.0, %v259
    %v261 = vpop.f32.mrb[0].mxu0
    %262 = vmatprep.mubr.f32.mxu0 0.0
    %263 = vmatmul.mubr.f32.gmra.mrb[0].mxu0 %v166
    %v264 = vpop.f32.mrb[0].mxu0
    %v265 = vadd.f32 0.0, %v264
    %v266 = vpop.f32.mrb[0].mxu0
    %267 = vmatprep.mubr.f32.mxu0 0.0
    %268 = vmatmul.mubr.f32.gmra.mrb[0].mxu0 %v169
    %v269 = vpop.f32.mrb[0].mxu0
    %v270 = vadd.f32 0.0, %v269
    %v271 = vpop.f32.mrb[0].mxu0
    %272 = vmatprep.mubr.f32.mxu0 0.0
    %273 = vmatmul.mubr.f32.gmra.mrb[0].mxu0 %v172
    %v274 = vpop.f32.mrb[0].mxu0
    %v275 = vadd.f32 0.0, %v274
    %v276 = vpop.f32.mrb[0].mxu0
    %277 = vdwg.mxu0
    %v278 = vld [vmem:[%s7] sm:$0xff]
    %v279 = vld [vmem:[%s7 + $0x8] sm:$0xff]
    %v280 = vld [vmem:[%s7 + $0x10] sm:$0xff]
    %v281 = vld [vmem:[%s7 + $0x18] sm:$0xf]
    %s282 = scalar_lea.vmem %s5, 32
    %v283 = vld [vmem:[%s282] sm:$0xff]
    %v284 = vld [vmem:[%s282 + $0x8] sm:$0xff]
    %v285 = vld [vmem:[%s282 + $0x10] sm:$0xff]
    %v286 = vld [vmem:[%s282 + $0x18] sm:$0xf]
    %v288 = vsel %vm174, %v286, 0
    %290 = vmatprep.subr.mxu0 0.0
    %291 = vmatpush1.msra.mxu0 %v283
    %292 = vmatprep.subr.mxu0 0.0
    %293 = vmatpush1.msra.mxu0 %v284
    %294 = vmatprep.subr.mxu0 0.0
    %295 = vmatpush1.msra.mxu0 %v285
    %296 = vmatprep.subr.mxu0 0.0
    %297 = vmatpush1.msra.mxu0 %v288
    %298 = vmatprep.subr.mxu0 0.0
    %299 = vmatpush1.msra.mxu0 0.0
    %300 = vmatprep.subr.mxu0 0.0
    %301 = vmatpush1.msra.mxu0 0.0
    %302 = vmatprep.subr.mxu0 0.0
    %303 = vmatpush1.msra.mxu0 0.0
    %304 = vmatprep.subr.mxu0 0.0
    %305 = vmatpush1.msra.mxu0 0.0
    %306 = vmatprep.subr.mxu0 0.0
    %307 = vmatpush1.msra.mxu0 0.0
    %308 = vmatprep.subr.mxu0 0.0
    %309 = vmatpush1.msra.mxu0 0.0
    %310 = vmatprep.subr.mxu0 0.0
    %311 = vmatpush1.msra.mxu0 0.0
    %312 = vmatprep.subr.mxu0 0.0
    %313 = vmatpush1.msra.mxu0 0.0
    %314 = vmatprep.subr.mxu0 0.0
    %315 = vmatpush1.msra.mxu0 0.0
    %316 = vmatprep.subr.mxu0 0.0
    %317 = vmatpush1.msra.mxu0 0.0
    %318 = vmatprep.subr.mxu0 0.0
    %319 = vmatpush1.msra.mxu0 0.0
    %320 = vmatprep.subr.mxu0 0.0
    %321 = vmatpush1.msra.mxu0 0.0
    %322 = vmatprep.subr.mxu0 0.0
    %323 = vmatpush1.msra.mxu0 0.0
    %324 = vmatprep.subr.mxu0 0.0
    %325 = vmatpush1.msra.mxu0 0.0
    %326 = vmatprep.subr.mxu0 0.0
    %327 = vmatpush1.msra.mxu0 0.0
    %328 = vmatprep.subr.mxu0 0.0
    %329 = vmatpush1.msra.mxu0 0.0
    %330 = vmatprep.subr.mxu0 0.0
    %331 = vmatpush1.msra.mxu0 0.0
    %332 = vmatprep.subr.mxu0 0.0
    %333 = vmatpush1.msra.mxu0 0.0
    %334 = vmatprep.subr.mxu0 0.0
    %335 = vmatpush1.msra.mxu0 0.0
    %336 = vmatprep.subr.mxu0 0.0
    %337 = vmatpush1.msra.mxu0 0.0
    %338 = vmatprep.subr.mxu0 0.0
    %339 = vmatpush1.msra.mxu0 0.0
    %340 = vmatprep.subr.mxu0 0.0
    %341 = vmatpush1.msra.mxu0 0.0
    %342 = vmatprep.subr.mxu0 0.0
    %343 = vmatpush1.msra.mxu0 0.0
    %344 = vmatprep.subr.mxu0 0.0
    %345 = vmatpush1.msra.mxu0 0.0
    %346 = vmatprep.subr.mxu0 0.0
    %347 = vmatpush1.msra.mxu0 0.0
    %348 = vmatprep.subr.mxu0 0.0
    %349 = vmatpush1.msra.mxu0 0.0
    %350 = vmatprep.subr.mxu0 0.0
    %351 = vmatpush1.msra.mxu0 0.0
    %352 = vmatprep.subr.mxu0 0.0
    %353 = vmatpush1.msra.mxu0 0.0
    %354 = vmatprep.mubr.f32.mxu0 0.0
    %355 = vmatmul.mubr.f32.gmra.mrb[0].mxu0 %v154
    %v356 = vpop.f32.mrb[0].mxu0
    %v357 = vadd.f32 0.0, %v356
    %v358 = vpop.f32.mrb[0].mxu0
    %359 = vmatprep.mubr.f32.mxu0 0.0
    %360 = vmatmul.mubr.f32.gmra.mrb[0].mxu0 %v157
    %v361 = vpop.f32.mrb[0].mxu0
    %v362 = vadd.f32 0.0, %v361
    %v363 = vpop.f32.mrb[0].mxu0
    %364 = vmatprep.mubr.f32.mxu0 0.0
    %365 = vmatmul.mubr.f32.gmra.mrb[0].mxu0 %v160
    %v366 = vpop.f32.mrb[0].mxu0
    %v367 = vadd.f32 0.0, %v366
    %v368 = vpop.f32.mrb[0].mxu0
    %369 = vmatprep.mubr.f32.mxu0 0.0
    %370 = vmatmul.mubr.f32.gmra.mrb[0].mxu0 %v163
    %v371 = vpop.f32.mrb[0].mxu0
    %v372 = vadd.f32 0.0, %v371
    %v373 = vpop.f32.mrb[0].mxu0
    %374 = vmatprep.mubr.f32.mxu0 0.0
    %375 = vmatmul.mubr.f32.gmra.mrb[0].mxu0 %v166
    %v376 = vpop.f32.mrb[0].mxu0
    %v377 = vadd.f32 0.0, %v376
    %v378 = vpop.f32.mrb[0].mxu0
    %379 = vmatprep.mubr.f32.mxu0 0.0
    %380 = vmatmul.mubr.f32.gmra.mrb[0].mxu0 %v169
    %v381 = vpop.f32.mrb[0].mxu0
    %v382 = vadd.f32 0.0, %v381
    %v383 = vpop.f32.mrb[0].mxu0
    %384 = vmatprep.mubr.f32.mxu0 0.0
    %385 = vmatmul.mubr.f32.gmra.mrb[0].mxu0 %v172
    %v386 = vpop.f32.mrb[0].mxu0
    %v387 = vadd.f32 0.0, %v386
    %v388 = vpop.f32.mrb[0].mxu0
    %389 = vdwg.mxu0
    %s390 = scalar_lea.vmem %s7, 32
    %v391 = vld [vmem:[%s390] sm:$0xff]
    %v392 = vld [vmem:[%s390 + $0x8] sm:$0xff]
    %v393 = vld [vmem:[%s390 + $0x10] sm:$0xff]
    %v394 = vld [vmem:[%s390 + $0x18] sm:$0xf]
    %vm395 = vcmask 457728
    %v397 = vsel %vm395, %v391, 0
    %v400 = vsel %vm395, %v392, 0
    %v403 = vsel %vm395, %v393, 0
    %v406 = vsel %vm395, %v394, 0
    %408 = vmatprep.subr.mxu0 0.0
    %409 = vmatpush1.msra.mxu0 %v357
    %410 = vmatprep.subr.mxu0 0.0
    %411 = vmatpush1.msra.mxu0 %v362
    %412 = vmatprep.subr.mxu0 0.0
    %413 = vmatpush1.msra.mxu0 %v367
    %414 = vmatprep.subr.mxu0 0.0
    %415 = vmatpush1.msra.mxu0 %v372
    %416 = vmatprep.subr.mxu0 0.0
    %417 = vmatpush1.msra.mxu0 %v377
    %418 = vmatprep.subr.mxu0 0.0
    %419 = vmatpush1.msra.mxu0 %v382
    %420 = vmatprep.subr.mxu0 0.0
    %421 = vmatpush1.msra.mxu0 %v387
    %422 = vmatprep.subr.mxu0 0.0
    %423 = vmatpush1.msra.mxu0 0.0
    %424 = vmatprep.subr.mxu0 0.0
    %425 = vmatpush1.msra.mxu0 0.0
    %426 = vmatprep.subr.mxu0 0.0
    %427 = vmatpush1.msra.mxu0 0.0
    %428 = vmatprep.subr.mxu0 0.0
    %429 = vmatpush1.msra.mxu0 0.0
    %430 = vmatprep.subr.mxu0 0.0
    %431 = vmatpush1.msra.mxu0 0.0
    %432 = vmatprep.subr.mxu0 0.0
    %433 = vmatpush1.msra.mxu0 0.0
    %434 = vmatprep.subr.mxu0 0.0
    %435 = vmatpush1.msra.mxu0 0.0
    %436 = vmatprep.subr.mxu0 0.0
    %437 = vmatpush1.msra.mxu0 0.0
    %438 = vmatprep.subr.mxu0 0.0
    %439 = vmatpush1.msra.mxu0 0.0
    %440 = vmatprep.subr.mxu0 0.0
    %441 = vmatpush1.msra.mxu0 0.0
    %442 = vmatprep.subr.mxu0 0.0
    %443 = vmatpush1.msra.mxu0 0.0
    %444 = vmatprep.subr.mxu0 0.0
    %445 = vmatpush1.msra.mxu0 0.0
    %446 = vmatprep.subr.mxu0 0.0
    %447 = vmatpush1.msra.mxu0 0.0
    %448 = vmatprep.subr.mxu0 0.0
    %449 = vmatpush1.msra.mxu0 0.0
    %450 = vmatprep.subr.mxu0 0.0
    %451 = vmatpush1.msra.mxu0 0.0
    %452 = vmatprep.subr.mxu0 0.0
    %453 = vmatpush1.msra.mxu0 0.0
    %454 = vmatprep.subr.mxu0 0.0
    %455 = vmatpush1.msra.mxu0 0.0
    %456 = vmatprep.subr.mxu0 0.0
    %457 = vmatpush1.msra.mxu0 0.0
    %458 = vmatprep.subr.mxu0 0.0
    %459 = vmatpush1.msra.mxu0 0.0
    %460 = vmatprep.subr.mxu0 0.0
    %461 = vmatpush1.msra.mxu0 0.0
    %462 = vmatprep.subr.mxu0 0.0
    %463 = vmatpush1.msra.mxu0 0.0
    %464 = vmatprep.subr.mxu0 0.0
    %465 = vmatpush1.msra.mxu0 0.0
    %466 = vmatprep.subr.mxu0 0.0
    %467 = vmatpush1.msra.mxu0 0.0
    %468 = vmatprep.subr.mxu0 0.0
    %469 = vmatpush1.msra.mxu0 0.0
    %470 = vmatprep.subr.mxu0 0.0
    %471 = vmatpush1.msra.mxu0 0.0
    %472 = vmatprep.mubr.f32.mxu0 0.0
    %473 = vmatmul.mubr.f32.gmra.mrb[0].mxu0 %v397
    %v474 = vpop.f32.mrb[0].mxu0
    %v475 = vadd.f32 0.0, %v474
    %v476 = vpop.f32.mrb[0].mxu0
    %477 = vmatprep.mubr.f32.mxu0 0.0
    %478 = vmatmul.mubr.f32.gmra.mrb[0].mxu0 %v400
    %v479 = vpop.f32.mrb[0].mxu0
    %v480 = vadd.f32 0.0, %v479
    %v481 = vpop.f32.mrb[0].mxu0
    %482 = vmatprep.mubr.f32.mxu0 0.0
    %483 = vmatmul.mubr.f32.gmra.mrb[0].mxu0 %v403
    %v484 = vpop.f32.mrb[0].mxu0
    %v485 = vadd.f32 0.0, %v484
    %v486 = vpop.f32.mrb[0].mxu0
    %487 = vmatprep.mubr.f32.mxu0 0.0
    %488 = vmatmul.mubr.f32.gmra.mrb[0].mxu0 %v406
    %v489 = vpop.f32.mrb[0].mxu0
    %v490 = vadd.f32 0.0, %v489
    %v491 = vpop.f32.mrb[0].mxu0
    %492 = vdwg.mxu0
    %v494 = vsel %vm395, %v278, 0
    %v497 = vsel %vm395, %v279, 0
    %v500 = vsel %vm395, %v280, 0
    %v503 = vsel %vm395, %v281, 0
    %505 = vmatprep.subr.mxu0 0.0
    %506 = vmatpush1.msra.mxu0 %v245
    %507 = vmatprep.subr.mxu0 0.0
    %508 = vmatpush1.msra.mxu0 %v250
    %509 = vmatprep.subr.mxu0 0.0
    %510 = vmatpush1.msra.mxu0 %v255
    %511 = vmatprep.subr.mxu0 0.0
    %512 = vmatpush1.msra.mxu0 %v260
    %513 = vmatprep.subr.mxu0 0.0
    %514 = vmatpush1.msra.mxu0 %v265
    %515 = vmatprep.subr.mxu0 0.0
    %516 = vmatpush1.msra.mxu0 %v270
    %517 = vmatprep.subr.mxu0 0.0
    %518 = vmatpush1.msra.mxu0 %v275
    %519 = vmatprep.subr.mxu0 0.0
    %520 = vmatpush1.msra.mxu0 0.0
    %521 = vmatprep.subr.mxu0 0.0
    %522 = vmatpush1.msra.mxu0 0.0
    %523 = vmatprep.subr.mxu0 0.0
    %524 = vmatpush1.msra.mxu0 0.0
    %525 = vmatprep.subr.mxu0 0.0
    %526 = vmatpush1.msra.mxu0 0.0
    %527 = vmatprep.subr.mxu0 0.0
    %528 = vmatpush1.msra.mxu0 0.0
    %529 = vmatprep.subr.mxu0 0.0
    %530 = vmatpush1.msra.mxu0 0.0
    %531 = vmatprep.subr.mxu0 0.0
    %532 = vmatpush1.msra.mxu0 0.0
    %533 = vmatprep.subr.mxu0 0.0
    %534 = vmatpush1.msra.mxu0 0.0
    %535 = vmatprep.subr.mxu0 0.0
    %536 = vmatpush1.msra.mxu0 0.0
    %537 = vmatprep.subr.mxu0 0.0
    %538 = vmatpush1.msra.mxu0 0.0
    %539 = vmatprep.subr.mxu0 0.0
    %540 = vmatpush1.msra.mxu0 0.0
    %541 = vmatprep.subr.mxu0 0.0
    %542 = vmatpush1.msra.mxu0 0.0
    %543 = vmatprep.subr.mxu0 0.0
    %544 = vmatpush1.msra.mxu0 0.0
    %545 = vmatprep.subr.mxu0 0.0
    %546 = vmatpush1.msra.mxu0 0.0
    %547 = vmatprep.subr.mxu0 0.0
    %548 = vmatpush1.msra.mxu0 0.0
    %549 = vmatprep.subr.mxu0 0.0
    %550 = vmatpush1.msra.mxu0 0.0
    %551 = vmatprep.subr.mxu0 0.0
    %552 = vmatpush1.msra.mxu0 0.0
    %553 = vmatprep.subr.mxu0 0.0
    %554 = vmatpush1.msra.mxu0 0.0
    %555 = vmatprep.subr.mxu0 0.0
    %556 = vmatpush1.msra.mxu0 0.0
    %557 = vmatprep.subr.mxu0 0.0
    %558 = vmatpush1.msra.mxu0 0.0
    %559 = vmatprep.subr.mxu0 0.0
    %560 = vmatpush1.msra.mxu0 0.0
    %561 = vmatprep.subr.mxu0 0.0
    %562 = vmatpush1.msra.mxu0 0.0
    %563 = vmatprep.subr.mxu0 0.0
    %564 = vmatpush1.msra.mxu0 0.0
    %565 = vmatprep.subr.mxu0 0.0
    %566 = vmatpush1.msra.mxu0 0.0
    %567 = vmatprep.subr.mxu0 0.0
    %568 = vmatpush1.msra.mxu0 0.0
    %569 = vmatprep.mubr.f32.mxu0 0.0
    %570 = vmatmul.mubr.f32.gmra.mrb[0].mxu0 %v494
    %v571 = vpop.f32.mrb[0].mxu0
    %v572 = vadd.f32 %v475, %v571
    %v573 = vpop.f32.mrb[0].mxu0
    %574 = vmatprep.mubr.f32.mxu0 0.0
    %575 = vmatmul.mubr.f32.gmra.mrb[0].mxu0 %v497
    %v576 = vpop.f32.mrb[0].mxu0
    %v577 = vadd.f32 %v480, %v576
    %v578 = vpop.f32.mrb[0].mxu0
    %579 = vmatprep.mubr.f32.mxu0 0.0
    %580 = vmatmul.mubr.f32.gmra.mrb[0].mxu0 %v500
    %v581 = vpop.f32.mrb[0].mxu0
    %v582 = vadd.f32 %v485, %v581
    %v583 = vpop.f32.mrb[0].mxu0
    %584 = vmatprep.mubr.f32.mxu0 0.0
    %585 = vmatmul.mubr.f32.gmra.mrb[0].mxu0 %v503
    %v586 = vpop.f32.mrb[0].mxu0
    %v587 = vadd.f32 %v490, %v586
    %v588 = vpop.f32.mrb[0].mxu0
    %589 = vdwg.mxu0
    %s590 = scalar_lea.vmem %s5, 64
    %v591 = vld [vmem:[%s590] sm:$0xff]
    %v592 = vld [vmem:[%s590 + $0x8] sm:$0xff]
    %v593 = vld [vmem:[%s590 + $0x10] sm:$0xff]
    %v594 = vld [vmem:[%s590 + $0x18] sm:$0xf]
    %v596 = vsel %vm174, %v594, 0
    %598 = vmatprep.subr.mxu0 0.0
    %599 = vmatpush1.msra.mxu0 %v591
    %600 = vmatprep.subr.mxu0 0.0
    %601 = vmatpush1.msra.mxu0 %v592
    %602 = vmatprep.subr.mxu0 0.0
    %603 = vmatpush1.msra.mxu0 %v593
    %604 = vmatprep.subr.mxu0 0.0
    %605 = vmatpush1.msra.mxu0 %v596
    %606 = vmatprep.subr.mxu0 0.0
    %607 = vmatpush1.msra.mxu0 0.0
    %608 = vmatprep.subr.mxu0 0.0
    %609 = vmatpush1.msra.mxu0 0.0
    %610 = vmatprep.subr.mxu0 0.0
    %611 = vmatpush1.msra.mxu0 0.0
    %612 = vmatprep.subr.mxu0 0.0
    %613 = vmatpush1.msra.mxu0 0.0
    %614 = vmatprep.subr.mxu0 0.0
    %615 = vmatpush1.msra.mxu0 0.0
    %616 = vmatprep.subr.mxu0 0.0
    %617 = vmatpush1.msra.mxu0 0.0
    %618 = vmatprep.subr.mxu0 0.0
    %619 = vmatpush1.msra.mxu0 0.0
    %620 = vmatprep.subr.mxu0 0.0
    %621 = vmatpush1.msra.mxu0 0.0
    %622 = vmatprep.subr.mxu0 0.0
    %623 = vmatpush1.msra.mxu0 0.0
    %624 = vmatprep.subr.mxu0 0.0
    %625 = vmatpush1.msra.mxu0 0.0
    %626 = vmatprep.subr.mxu0 0.0
    %627 = vmatpush1.msra.mxu0 0.0
    %628 = vmatprep.subr.mxu0 0.0
    %629 = vmatpush1.msra.mxu0 0.0
    %630 = vmatprep.subr.mxu0 0.0
    %631 = vmatpush1.msra.mxu0 0.0
    %632 = vmatprep.subr.mxu0 0.0
    %633 = vmatpush1.msra.mxu0 0.0
    %634 = vmatprep.subr.mxu0 0.0
    %635 = vmatpush1.msra.mxu0 0.0
    %636 = vmatprep.subr.mxu0 0.0
    %637 = vmatpush1.msra.mxu0 0.0
    %638 = vmatprep.subr.mxu0 0.0
    %639 = vmatpush1.msra.mxu0 0.0
    %640 = vmatprep.subr.mxu0 0.0
    %641 = vmatpush1.msra.mxu0 0.0
    %642 = vmatprep.subr.mxu0 0.0
    %643 = vmatpush1.msra.mxu0 0.0
    %644 = vmatprep.subr.mxu0 0.0
    %645 = vmatpush1.msra.mxu0 0.0
    %646 = vmatprep.subr.mxu0 0.0
    %647 = vmatpush1.msra.mxu0 0.0
    %648 = vmatprep.subr.mxu0 0.0
    %649 = vmatpush1.msra.mxu0 0.0
    %650 = vmatprep.subr.mxu0 0.0
    %651 = vmatpush1.msra.mxu0 0.0
    %652 = vmatprep.subr.mxu0 0.0
    %653 = vmatpush1.msra.mxu0 0.0
    %654 = vmatprep.subr.mxu0 0.0
    %655 = vmatpush1.msra.mxu0 0.0
    %656 = vmatprep.subr.mxu0 0.0
    %657 = vmatpush1.msra.mxu0 0.0
    %658 = vmatprep.subr.mxu0 0.0
    %659 = vmatpush1.msra.mxu0 0.0
    %660 = vmatprep.subr.mxu0 0.0
    %661 = vmatpush1.msra.mxu0 0.0
    %662 = vmatprep.mubr.f32.mxu0 0.0
    %663 = vmatmul.mubr.f32.gmra.mrb[0].mxu0 %v154
    %v664 = vpop.f32.mrb[0].mxu0
    %v665 = vadd.f32 0.0, %v664
    %v666 = vpop.f32.mrb[0].mxu0
    %667 = vmatprep.mubr.f32.mxu0 0.0
    %668 = vmatmul.mubr.f32.gmra.mrb[0].mxu0 %v157
    %v669 = vpop.f32.mrb[0].mxu0
    %v670 = vadd.f32 0.0, %v669
    %v671 = vpop.f32.mrb[0].mxu0
    %672 = vmatprep.mubr.f32.mxu0 0.0
    %673 = vmatmul.mubr.f32.gmra.mrb[0].mxu0 %v160
    %v674 = vpop.f32.mrb[0].mxu0
    %v675 = vadd.f32 0.0, %v674
    %v676 = vpop.f32.mrb[0].mxu0
    %677 = vmatprep.mubr.f32.mxu0 0.0
    %678 = vmatmul.mubr.f32.gmra.mrb[0].mxu0 %v163
    %v679 = vpop.f32.mrb[0].mxu0
    %v680 = vadd.f32 0.0, %v679
    %v681 = vpop.f32.mrb[0].mxu0
    %682 = vmatprep.mubr.f32.mxu0 0.0
    %683 = vmatmul.mubr.f32.gmra.mrb[0].mxu0 %v166
    %v684 = vpop.f32.mrb[0].mxu0
    %v685 = vadd.f32 0.0, %v684
    %v686 = vpop.f32.mrb[0].mxu0
    %687 = vmatprep.mubr.f32.mxu0 0.0
    %688 = vmatmul.mubr.f32.gmra.mrb[0].mxu0 %v169
    %v689 = vpop.f32.mrb[0].mxu0
    %v690 = vadd.f32 0.0, %v689
    %v691 = vpop.f32.mrb[0].mxu0
    %692 = vmatprep.mubr.f32.mxu0 0.0
    %693 = vmatmul.mubr.f32.gmra.mrb[0].mxu0 %v172
    %v694 = vpop.f32.mrb[0].mxu0
    %v695 = vadd.f32 0.0, %v694
    %v696 = vpop.f32.mrb[0].mxu0
    %697 = vdwg.mxu0
    %s698 = scalar_lea.vmem %s7, 64
    %v699 = vld [vmem:[%s698] sm:$0xff]
    %v700 = vld [vmem:[%s698 + $0x8] sm:$0xff]
    %v701 = vld [vmem:[%s698 + $0x10] sm:$0xff]
    %v702 = vld [vmem:[%s698 + $0x18] sm:$0xf]
    %v704 = vsel %vm395, %v699, 0
    %v707 = vsel %vm395, %v700, 0
    %v710 = vsel %vm395, %v701, 0
    %v713 = vsel %vm395, %v702, 0
    %715 = vmatprep.subr.mxu0 0.0
    %716 = vmatpush1.msra.mxu0 %v665
    %717 = vmatprep.subr.mxu0 0.0
    %718 = vmatpush1.msra.mxu0 %v670
    %719 = vmatprep.subr.mxu0 0.0
    %720 = vmatpush1.msra.mxu0 %v675
    %721 = vmatprep.subr.mxu0 0.0
    %722 = vmatpush1.msra.mxu0 %v680
    %723 = vmatprep.subr.mxu0 0.0
    %724 = vmatpush1.msra.mxu0 %v685
    %725 = vmatprep.subr.mxu0 0.0
    %726 = vmatpush1.msra.mxu0 %v690
    %727 = vmatprep.subr.mxu0 0.0
    %728 = vmatpush1.msra.mxu0 %v695
    %729 = vmatprep.subr.mxu0 0.0
    %730 = vmatpush1.msra.mxu0 0.0
    %731 = vmatprep.subr.mxu0 0.0
    %732 = vmatpush1.msra.mxu0 0.0
    %733 = vmatprep.subr.mxu0 0.0
    %734 = vmatpush1.msra.mxu0 0.0
    %735 = vmatprep.subr.mxu0 0.0
    %736 = vmatpush1.msra.mxu0 0.0
    %737 = vmatprep.subr.mxu0 0.0
    %738 = vmatpush1.msra.mxu0 0.0
    %739 = vmatprep.subr.mxu0 0.0
    %740 = vmatpush1.msra.mxu0 0.0
    %741 = vmatprep.subr.mxu0 0.0
    %742 = vmatpush1.msra.mxu0 0.0
    %743 = vmatprep.subr.mxu0 0.0
    %744 = vmatpush1.msra.mxu0 0.0
    %745 = vmatprep.subr.mxu0 0.0
    %746 = vmatpush1.msra.mxu0 0.0
    %747 = vmatprep.subr.mxu0 0.0
    %748 = vmatpush1.msra.mxu0 0.0
    %749 = vmatprep.subr.mxu0 0.0
    %750 = vmatpush1.msra.mxu0 0.0
    %751 = vmatprep.subr.mxu0 0.0
    %752 = vmatpush1.msra.mxu0 0.0
    %753 = vmatprep.subr.mxu0 0.0
    %754 = vmatpush1.msra.mxu0 0.0
    %755 = vmatprep.subr.mxu0 0.0
    %756 = vmatpush1.msra.mxu0 0.0
    %757 = vmatprep.subr.mxu0 0.0
    %758 = vmatpush1.msra.mxu0 0.0
    %759 = vmatprep.subr.mxu0 0.0
    %760 = vmatpush1.msra.mxu0 0.0
    %761 = vmatprep.subr.mxu0 0.0
    %762 = vmatpush1.msra.mxu0 0.0
    %763 = vmatprep.subr.mxu0 0.0
    %764 = vmatpush1.msra.mxu0 0.0
    %765 = vmatprep.subr.mxu0 0.0
    %766 = vmatpush1.msra.mxu0 0.0
    %767 = vmatprep.subr.mxu0 0.0
    %768 = vmatpush1.msra.mxu0 0.0
    %769 = vmatprep.subr.mxu0 0.0
    %770 = vmatpush1.msra.mxu0 0.0
    %771 = vmatprep.subr.mxu0 0.0
    %772 = vmatpush1.msra.mxu0 0.0
    %773 = vmatprep.subr.mxu0 0.0
    %774 = vmatpush1.msra.mxu0 0.0
    %775 = vmatprep.subr.mxu0 0.0
    %776 = vmatpush1.msra.mxu0 0.0
    %777 = vmatprep.subr.mxu0 0.0
    %778 = vmatpush1.msra.mxu0 0.0
    %779 = vmatprep.mubr.f32.mxu0 0.0
    %780 = vmatmul.mubr.f32.gmra.mrb[0].mxu0 %v704
    %v781 = vpop.f32.mrb[0].mxu0
    %v782 = vadd.f32 0.0, %v781
    %v783 = vpop.f32.mrb[0].mxu0
    %784 = vmatprep.mubr.f32.mxu0 0.0
    %785 = vmatmul.mubr.f32.gmra.mrb[0].mxu0 %v707
    %v786 = vpop.f32.mrb[0].mxu0
    %v787 = vadd.f32 0.0, %v786
    %v788 = vpop.f32.mrb[0].mxu0
    %789 = vmatprep.mubr.f32.mxu0 0.0
    %790 = vmatmul.mubr.f32.gmra.mrb[0].mxu0 %v710
    %v791 = vpop.f32.mrb[0].mxu0
    %v792 = vadd.f32 0.0, %v791
    %v793 = vpop.f32.mrb[0].mxu0
    %794 = vmatprep.mubr.f32.mxu0 0.0
    %795 = vmatmul.mubr.f32.gmra.mrb[0].mxu0 %v713
    %v796 = vpop.f32.mrb[0].mxu0
    %v797 = vadd.f32 0.0, %v796
    %v798 = vpop.f32.mrb[0].mxu0
    %799 = vdwg.mxu0
    %v800 = vadd.f32 %v572, %v782
    %v801 = vadd.f32 %v577, %v787
    %v802 = vadd.f32 %v582, %v792
    %v803 = vadd.f32 %v587, %v797
    %v804 = vld [vmem:[%s9] sm:$0x1]
    %v806 = vlaneseq
    %v807 = vshrl.u32 %v806, 7
    %v808 = vsub.s32 0, %v807
    %v809 = vrot.slane %v804, %v808
    %v811 = vadd.f32 %v800, %v809
    %v812 = vadd.f32 %v801, %v809
    %v813 = vadd.f32 %v802, %v809
    %v814 = vadd.f32 %v803, %v809
    %v815 = vmax.f32 %v811, 0.0
    %v816 = vmax.f32 %v812, 0.0
    %v817 = vmax.f32 %v813, 0.0
    %v818 = vmax.f32 %v814, 0.0
    %v819 = vld [vmem:[%s11] sm:$0xff]
    %v820 = vld [vmem:[%s11 + $0x8] sm:$0xff]
    %v821 = vld [vmem:[%s11 + $0x10] sm:$0xff]
    %v822 = vld [vmem:[%s11 + $0x18] sm:$0xff]
    %v823 = vld [vmem:[%s11 + $0x20] sm:$0xff]
    %v824 = vld [vmem:[%s11 + $0x28] sm:$0xff]
    %v825 = vld [vmem:[%s11 + $0x30] sm:$0xff]
    %v827 = vsel %vm395, %v815, 0
    %v830 = vsel %vm395, %v816, 0
    %v833 = vsel %vm395, %v817, 0
    %v836 = vsel %vm395, %v818, 0
    %838 = vmatprep.subr.mxu0 0.0
    %839 = vmatpush1.msra.mxu0 %v819
    %840 = vmatprep.subr.mxu0 0.0
    %841 = vmatpush1.msra.mxu0 %v820
    %842 = vmatprep.subr.mxu0 0.0
    %843 = vmatpush1.msra.mxu0 %v821
    %844 = vmatprep.subr.mxu0 0.0
    %845 = vmatpush1.msra.mxu0 %v822
    %846 = vmatprep.subr.mxu0 0.0
    %847 = vmatpush1.msra.mxu0 %v823
    %848 = vmatprep.subr.mxu0 0.0
    %849 = vmatpush1.msra.mxu0 %v824
    %850 = vmatprep.subr.mxu0 0.0
    %851 = vmatpush1.msra.mxu0 %v825
    %852 = vmatprep.subr.mxu0 0.0
    %853 = vmatpush1.msra.mxu0 0.0
    %854 = vmatprep.subr.mxu0 0.0
    %855 = vmatpush1.msra.mxu0 0.0
    %856 = vmatprep.subr.mxu0 0.0
    %857 = vmatpush1.msra.mxu0 0.0
    %858 = vmatprep.subr.mxu0 0.0
    %859 = vmatpush1.msra.mxu0 0.0
    %860 = vmatprep.subr.mxu0 0.0
    %861 = vmatpush1.msra.mxu0 0.0
    %862 = vmatprep.subr.mxu0 0.0
    %863 = vmatpush1.msra.mxu0 0.0
    %864 = vmatprep.subr.mxu0 0.0
    %865 = vmatpush1.msra.mxu0 0.0
    %866 = vmatprep.subr.mxu0 0.0
    %867 = vmatpush1.msra.mxu0 0.0
    %868 = vmatprep.subr.mxu0 0.0
    %869 = vmatpush1.msra.mxu0 0.0
    %870 = vmatprep.subr.mxu0 0.0
    %871 = vmatpush1.msra.mxu0 0.0
    %872 = vmatprep.subr.mxu0 0.0
    %873 = vmatpush1.msra.mxu0 0.0
    %874 = vmatprep.subr.mxu0 0.0
    %875 = vmatpush1.msra.mxu0 0.0
    %876 = vmatprep.subr.mxu0 0.0
    %877 = vmatpush1.msra.mxu0 0.0
    %878 = vmatprep.subr.mxu0 0.0
    %879 = vmatpush1.msra.mxu0 0.0
    %880 = vmatprep.subr.mxu0 0.0
    %881 = vmatpush1.msra.mxu0 0.0
    %882 = vmatprep.subr.mxu0 0.0
    %883 = vmatpush1.msra.mxu0 0.0
    %884 = vmatprep.subr.mxu0 0.0
    %885 = vmatpush1.msra.mxu0 0.0
    %886 = vmatprep.subr.mxu0 0.0
    %887 = vmatpush1.msra.mxu0 0.0
    %888 = vmatprep.subr.mxu0 0.0
    %889 = vmatpush1.msra.mxu0 0.0
    %890 = vmatprep.subr.mxu0 0.0
    %891 = vmatpush1.msra.mxu0 0.0
    %892 = vmatprep.subr.mxu0 0.0
    %893 = vmatpush1.msra.mxu0 0.0
    %894 = vmatprep.subr.mxu0 0.0
    %895 = vmatpush1.msra.mxu0 0.0
    %896 = vmatprep.subr.mxu0 0.0
    %897 = vmatpush1.msra.mxu0 0.0
    %898 = vmatprep.subr.mxu0 0.0
    %899 = vmatpush1.msra.mxu0 0.0
    %900 = vmatprep.subr.mxu0 0.0
    %901 = vmatpush1.msra.mxu0 0.0
    %902 = vmatprep.mubr.f32.mxu0 0.0
    %903 = vmatmul.mubr.f32.gmra.mrb[0].mxu0 %v827
    %v904 = vpop.f32.mrb[0].mxu0
    %v905 = vadd.f32 0.0, %v904
    %v906 = vpop.f32.mrb[0].mxu0
    %907 = vmatprep.mubr.f32.mxu0 0.0
    %908 = vmatmul.mubr.f32.gmra.mrb[0].mxu0 %v830
    %v909 = vpop.f32.mrb[0].mxu0
    %v910 = vadd.f32 0.0, %v909
    %v911 = vpop.f32.mrb[0].mxu0
    %912 = vmatprep.mubr.f32.mxu0 0.0
    %913 = vmatmul.mubr.f32.gmra.mrb[0].mxu0 %v833
    %v914 = vpop.f32.mrb[0].mxu0
    %v915 = vadd.f32 0.0, %v914
    %v916 = vpop.f32.mrb[0].mxu0
    %917 = vmatprep.mubr.f32.mxu0 0.0
    %918 = vmatmul.mubr.f32.gmra.mrb[0].mxu0 %v836
    %v919 = vpop.f32.mrb[0].mxu0
    %v920 = vadd.f32 0.0, %v919
    %v921 = vpop.f32.mrb[0].mxu0
    %922 = vdwg.mxu0
    %v923 = vld [vmem:[%s13] sm:$0xff]
    %v924 = vld [vmem:[%s13 + $0x8] sm:$0x3f]
    %s925 = scalar_lea.vmem %s11, 56
    %v926 = vld [vmem:[%s925] sm:$0xff]
    %v927 = vld [vmem:[%s925 + $0x8] sm:$0xff]
    %v928 = vld [vmem:[%s925 + $0x10] sm:$0xff]
    %v929 = vld [vmem:[%s925 + $0x18] sm:$0xff]
    %v930 = vld [vmem:[%s925 + $0x20] sm:$0xff]
    %v931 = vld [vmem:[%s925 + $0x28] sm:$0xff]
    %v932 = vld [vmem:[%s925 + $0x30] sm:$0xff]
    %933 = vmatprep.subr.mxu0 0.0
    %934 = vmatpush1.msra.mxu0 %v926
    %935 = vmatprep.subr.mxu0 0.0
    %936 = vmatpush1.msra.mxu0 %v927
    %937 = vmatprep.subr.mxu0 0.0
    %938 = vmatpush1.msra.mxu0 %v928
    %939 = vmatprep.subr.mxu0 0.0
    %940 = vmatpush1.msra.mxu0 %v929
    %941 = vmatprep.subr.mxu0 0.0
    %942 = vmatpush1.msra.mxu0 %v930
    %943 = vmatprep.subr.mxu0 0.0
    %944 = vmatpush1.msra.mxu0 %v931
    %945 = vmatprep.subr.mxu0 0.0
    %946 = vmatpush1.msra.mxu0 %v932
    %947 = vmatprep.subr.mxu0 0.0
    %948 = vmatpush1.msra.mxu0 0.0
    %949 = vmatprep.subr.mxu0 0.0
    %950 = vmatpush1.msra.mxu0 0.0
    %951 = vmatprep.subr.mxu0 0.0
    %952 = vmatpush1.msra.mxu0 0.0
    %953 = vmatprep.subr.mxu0 0.0
    %954 = vmatpush1.msra.mxu0 0.0
    %955 = vmatprep.subr.mxu0 0.0
    %956 = vmatpush1.msra.mxu0 0.0
    %957 = vmatprep.subr.mxu0 0.0
    %958 = vmatpush1.msra.mxu0 0.0
    %959 = vmatprep.subr.mxu0 0.0
    %960 = vmatpush1.msra.mxu0 0.0
    %961 = vmatprep.subr.mxu0 0.0
    %962 = vmatpush1.msra.mxu0 0.0
    %963 = vmatprep.subr.mxu0 0.0
    %964 = vmatpush1.msra.mxu0 0.0
    %965 = vmatprep.subr.mxu0 0.0
    %966 = vmatpush1.msra.mxu0 0.0
    %967 = vmatprep.subr.mxu0 0.0
    %968 = vmatpush1.msra.mxu0 0.0
    %969 = vmatprep.subr.mxu0 0.0
    %970 = vmatpush1.msra.mxu0 0.0
    %971 = vmatprep.subr.mxu0 0.0
    %972 = vmatpush1.msra.mxu0 0.0
    %973 = vmatprep.subr.mxu0 0.0
    %974 = vmatpush1.msra.mxu0 0.0
    %975 = vmatprep.subr.mxu0 0.0
    %976 = vmatpush1.msra.mxu0 0.0
    %977 = vmatprep.subr.mxu0 0.0
    %978 = vmatpush1.msra.mxu0 0.0
    %979 = vmatprep.subr.mxu0 0.0
    %980 = vmatpush1.msra.mxu0 0.0
    %981 = vmatprep.subr.mxu0 0.0
    %982 = vmatpush1.msra.mxu0 0.0
    %983 = vmatprep.subr.mxu0 0.0
    %984 = vmatpush1.msra.mxu0 0.0
    %985 = vmatprep.subr.mxu0 0.0
    %986 = vmatpush1.msra.mxu0 0.0
    %987 = vmatprep.subr.mxu0 0.0
    %988 = vmatpush1.msra.mxu0 0.0
    %989 = vmatprep.subr.mxu0 0.0
    %990 = vmatpush1.msra.mxu0 0.0
    %991 = vmatprep.subr.mxu0 0.0
    %992 = vmatpush1.msra.mxu0 0.0
    %993 = vmatprep.subr.mxu0 0.0
    %994 = vmatpush1.msra.mxu0 0.0
    %995 = vmatprep.subr.mxu0 0.0
    %996 = vmatpush1.msra.mxu0 0.0
    %997 = vmatprep.mubr.f32.mxu0 0.0
    %998 = vmatmul.mubr.f32.gmra.mrb[0].mxu0 %v827
    %v999 = vpop.f32.mrb[0].mxu0
    %v1000 = vadd.f32 0.0, %v999
    %v1001 = vpop.f32.mrb[0].mxu0
    %1002 = vmatprep.mubr.f32.mxu0 0.0
    %1003 = vmatmul.mubr.f32.gmra.mrb[0].mxu0 %v830
    %v1004 = vpop.f32.mrb[0].mxu0
    %v1005 = vadd.f32 0.0, %v1004
    %v1006 = vpop.f32.mrb[0].mxu0
    %1007 = vmatprep.mubr.f32.mxu0 0.0
    %1008 = vmatmul.mubr.f32.gmra.mrb[0].mxu0 %v833
    %v1009 = vpop.f32.mrb[0].mxu0
    %v1010 = vadd.f32 0.0, %v1009
    %v1011 = vpop.f32.mrb[0].mxu0
    %1012 = vmatprep.mubr.f32.mxu0 0.0
    %1013 = vmatmul.mubr.f32.gmra.mrb[0].mxu0 %v836
    %v1014 = vpop.f32.mrb[0].mxu0
    %v1015 = vadd.f32 0.0, %v1014
    %v1016 = vpop.f32.mrb[0].mxu0
    %1017 = vdwg.mxu0
    %s1018 = scalar_lea.vmem %s13, 16
    %v1019 = vld [vmem:[%s1018] sm:$0xff]
    %v1020 = vld [vmem:[%s1018 + $0x8] sm:$0x3f]
    %v1022 = vsel %vm152, %v1019, 0
    %v1025 = vsel %vm152, %v1020, 0
    %v1028 = vsel %vm174, %v1015, 0
    %1030 = vmatprep.subr.mxu0 0.0
    %1031 = vmatpush1.msra.mxu0 %v1000
    %1032 = vmatprep.subr.mxu0 0.0
    %1033 = vmatpush1.msra.mxu0 %v1005
    %1034 = vmatprep.subr.mxu0 0.0
    %1035 = vmatpush1.msra.mxu0 %v1010
    %1036 = vmatprep.subr.mxu0 0.0
    %1037 = vmatpush1.msra.mxu0 %v1028
    %1038 = vmatprep.subr.mxu0 0.0
    %1039 = vmatpush1.msra.mxu0 0.0
    %1040 = vmatprep.subr.mxu0 0.0
    %1041 = vmatpush1.msra.mxu0 0.0
    %1042 = vmatprep.subr.mxu0 0.0
    %1043 = vmatpush1.msra.mxu0 0.0
    %1044 = vmatprep.subr.mxu0 0.0
    %1045 = vmatpush1.msra.mxu0 0.0
    %1046 = vmatprep.subr.mxu0 0.0
    %1047 = vmatpush1.msra.mxu0 0.0
    %1048 = vmatprep.subr.mxu0 0.0
    %1049 = vmatpush1.msra.mxu0 0.0
    %1050 = vmatprep.subr.mxu0 0.0
    %1051 = vmatpush1.msra.mxu0 0.0
    %1052 = vmatprep.subr.mxu0 0.0
    %1053 = vmatpush1.msra.mxu0 0.0
    %1054 = vmatprep.subr.mxu0 0.0
    %1055 = vmatpush1.msra.mxu0 0.0
    %1056 = vmatprep.subr.mxu0 0.0
    %1057 = vmatpush1.msra.mxu0 0.0
    %1058 = vmatprep.subr.mxu0 0.0
    %1059 = vmatpush1.msra.mxu0 0.0
    %1060 = vmatprep.subr.mxu0 0.0
    %1061 = vmatpush1.msra.mxu0 0.0
    %1062 = vmatprep.subr.mxu0 0.0
    %1063 = vmatpush1.msra.mxu0 0.0
    %1064 = vmatprep.subr.mxu0 0.0
    %1065 = vmatpush1.msra.mxu0 0.0
    %1066 = vmatprep.subr.mxu0 0.0
    %1067 = vmatpush1.msra.mxu0 0.0
    %1068 = vmatprep.subr.mxu0 0.0
    %1069 = vmatpush1.msra.mxu0 0.0
    %1070 = vmatprep.subr.mxu0 0.0
    %1071 = vmatpush1.msra.mxu0 0.0
    %1072 = vmatprep.subr.mxu0 0.0
    %1073 = vmatpush1.msra.mxu0 0.0
    %1074 = vmatprep.subr.mxu0 0.0
    %1075 = vmatpush1.msra.mxu0 0.0
    %1076 = vmatprep.subr.mxu0 0.0
    %1077 = vmatpush1.msra.mxu0 0.0
    %1078 = vmatprep.subr.mxu0 0.0
    %1079 = vmatpush1.msra.mxu0 0.0
    %1080 = vmatprep.subr.mxu0 0.0
    %1081 = vmatpush1.msra.mxu0 0.0
    %1082 = vmatprep.subr.mxu0 0.0
    %1083 = vmatpush1.msra.mxu0 0.0
    %1084 = vmatprep.subr.mxu0 0.0
    %1085 = vmatpush1.msra.mxu0 0.0
    %1086 = vmatprep.subr.mxu0 0.0
    %1087 = vmatpush1.msra.mxu0 0.0
    %1088 = vmatprep.subr.mxu0 0.0
    %1089 = vmatpush1.msra.mxu0 0.0
    %1090 = vmatprep.subr.mxu0 0.0
    %1091 = vmatpush1.msra.mxu0 0.0
    %1092 = vmatprep.subr.mxu0 0.0
    %1093 = vmatpush1.msra.mxu0 0.0
    %1094 = vmatprep.mubr.f32.mxu0 0.0
    %1095 = vmatmul.mubr.f32.gmra.mrb[0].mxu0 %v1022
    %v1096 = vpop.f32.mrb[0].mxu0
    %v1097 = vadd.f32 0.0, %v1096
    %v1098 = vpop.f32.mrb[0].mxu0
    %1099 = vmatprep.mubr.f32.mxu0 0.0
    %1100 = vmatmul.mubr.f32.gmra.mrb[0].mxu0 %v1025
    %v1101 = vpop.f32.mrb[0].mxu0
    %v1102 = vadd.f32 0.0, %v1101
    %v1103 = vpop.f32.mrb[0].mxu0
    %1104 = vdwg.mxu0
    %v1106 = vsel %vm152, %v923, 0
    %v1109 = vsel %vm152, %v924, 0
    %v1112 = vsel %vm174, %v920, 0
    %1114 = vmatprep.subr.mxu0 0.0
    %1115 = vmatpush1.msra.mxu0 %v905
    %1116 = vmatprep.subr.mxu0 0.0
    %1117 = vmatpush1.msra.mxu0 %v910
    %1118 = vmatprep.subr.mxu0 0.0
    %1119 = vmatpush1.msra.mxu0 %v915
    %1120 = vmatprep.subr.mxu0 0.0
    %1121 = vmatpush1.msra.mxu0 %v1112
    %1122 = vmatprep.subr.mxu0 0.0
    %1123 = vmatpush1.msra.mxu0 0.0
    %1124 = vmatprep.subr.mxu0 0.0
    %1125 = vmatpush1.msra.mxu0 0.0
    %1126 = vmatprep.subr.mxu0 0.0
    %1127 = vmatpush1.msra.mxu0 0.0
    %1128 = vmatprep.subr.mxu0 0.0
    %1129 = vmatpush1.msra.mxu0 0.0
    %1130 = vmatprep.subr.mxu0 0.0
    %1131 = vmatpush1.msra.mxu0 0.0
    %1132 = vmatprep.subr.mxu0 0.0
    %1133 = vmatpush1.msra.mxu0 0.0
    %1134 = vmatprep.subr.mxu0 0.0
    %1135 = vmatpush1.msra.mxu0 0.0
    %1136 = vmatprep.subr.mxu0 0.0
    %1137 = vmatpush1.msra.mxu0 0.0
    %1138 = vmatprep.subr.mxu0 0.0
    %1139 = vmatpush1.msra.mxu0 0.0
    %1140 = vmatprep.subr.mxu0 0.0
    %1141 = vmatpush1.msra.mxu0 0.0
    %1142 = vmatprep.subr.mxu0 0.0
    %1143 = vmatpush1.msra.mxu0 0.0
    %1144 = vmatprep.subr.mxu0 0.0
    %1145 = vmatpush1.msra.mxu0 0.0
    %1146 = vmatprep.subr.mxu0 0.0
    %1147 = vmatpush1.msra.mxu0 0.0
    %1148 = vmatprep.subr.mxu0 0.0
    %1149 = vmatpush1.msra.mxu0 0.0
    %1150 = vmatprep.subr.mxu0 0.0
    %1151 = vmatpush1.msra.mxu0 0.0
    %1152 = vmatprep.subr.mxu0 0.0
    %1153 = vmatpush1.msra.mxu0 0.0
    %1154 = vmatprep.subr.mxu0 0.0
    %1155 = vmatpush1.msra.mxu0 0.0
    %1156 = vmatprep.subr.mxu0 0.0
    %1157 = vmatpush1.msra.mxu0 0.0
    %1158 = vmatprep.subr.mxu0 0.0
    %1159 = vmatpush1.msra.mxu0 0.0
    %1160 = vmatprep.subr.mxu0 0.0
    %1161 = vmatpush1.msra.mxu0 0.0
    %1162 = vmatprep.subr.mxu0 0.0
    %1163 = vmatpush1.msra.mxu0 0.0
    %1164 = vmatprep.subr.mxu0 0.0
    %1165 = vmatpush1.msra.mxu0 0.0
    %1166 = vmatprep.subr.mxu0 0.0
    %1167 = vmatpush1.msra.mxu0 0.0
    %1168 = vmatprep.subr.mxu0 0.0
    %1169 = vmatpush1.msra.mxu0 0.0
    %1170 = vmatprep.subr.mxu0 0.0
    %1171 = vmatpush1.msra.mxu0 0.0
    %1172 = vmatprep.subr.mxu0 0.0
    %1173 = vmatpush1.msra.mxu0 0.0
    %1174 = vmatprep.subr.mxu0 0.0
    %1175 = vmatpush1.msra.mxu0 0.0
    %1176 = vmatprep.subr.mxu0 0.0
    %1177 = vmatpush1.msra.mxu0 0.0
    %1178 = vmatprep.mubr.f32.mxu0 0.0
    %1179 = vmatmul.mubr.f32.gmra.mrb[0].mxu0 %v1106
    %v1180 = vpop.f32.mrb[0].mxu0
    %v1181 = vadd.f32 %v1097, %v1180
    %v1182 = vpop.f32.mrb[0].mxu0
    %1183 = vmatprep.mubr.f32.mxu0 0.0
    %1184 = vmatmul.mubr.f32.gmra.mrb[0].mxu0 %v1109
    %v1185 = vpop.f32.mrb[0].mxu0
    %v1186 = vadd.f32 %v1102, %v1185
    %v1187 = vpop.f32.mrb[0].mxu0
    %1188 = vdwg.mxu0
    %s1189 = scalar_lea.vmem %s11, 112
    %v1190 = vld [vmem:[%s1189] sm:$0xff]
    %v1191 = vld [vmem:[%s1189 + $0x8] sm:$0xff]
    %v1192 = vld [vmem:[%s1189 + $0x10] sm:$0xff]
    %v1193 = vld [vmem:[%s1189 + $0x18] sm:$0xff]
    %v1194 = vld [vmem:[%s1189 + $0x20] sm:$0xff]
    %v1195 = vld [vmem:[%s1189 + $0x28] sm:$0xff]
    %v1196 = vld [vmem:[%s1189 + $0x30] sm:$0xff]
    %1197 = vmatprep.subr.mxu0 0.0
    %1198 = vmatpush1.msra.mxu0 %v1190
    %1199 = vmatprep.subr.mxu0 0.0
    %1200 = vmatpush1.msra.mxu0 %v1191
    %1201 = vmatprep.subr.mxu0 0.0
    %1202 = vmatpush1.msra.mxu0 %v1192
    %1203 = vmatprep.subr.mxu0 0.0
    %1204 = vmatpush1.msra.mxu0 %v1193
    %1205 = vmatprep.subr.mxu0 0.0
    %1206 = vmatpush1.msra.mxu0 %v1194
    %1207 = vmatprep.subr.mxu0 0.0
    %1208 = vmatpush1.msra.mxu0 %v1195
    %1209 = vmatprep.subr.mxu0 0.0
    %1210 = vmatpush1.msra.mxu0 %v1196
    %1211 = vmatprep.subr.mxu0 0.0
    %1212 = vmatpush1.msra.mxu0 0.0
    %1213 = vmatprep.subr.mxu0 0.0
    %1214 = vmatpush1.msra.mxu0 0.0
    %1215 = vmatprep.subr.mxu0 0.0
    %1216 = vmatpush1.msra.mxu0 0.0
    %1217 = vmatprep.subr.mxu0 0.0
    %1218 = vmatpush1.msra.mxu0 0.0
    %1219 = vmatprep.subr.mxu0 0.0
    %1220 = vmatpush1.msra.mxu0 0.0
    %1221 = vmatprep.subr.mxu0 0.0
    %1222 = vmatpush1.msra.mxu0 0.0
    %1223 = vmatprep.subr.mxu0 0.0
    %1224 = vmatpush1.msra.mxu0 0.0
    %1225 = vmatprep.subr.mxu0 0.0
    %1226 = vmatpush1.msra.mxu0 0.0
    %1227 = vmatprep.subr.mxu0 0.0
    %1228 = vmatpush1.msra.mxu0 0.0
    %1229 = vmatprep.subr.mxu0 0.0
    %1230 = vmatpush1.msra.mxu0 0.0
    %1231 = vmatprep.subr.mxu0 0.0
    %1232 = vmatpush1.msra.mxu0 0.0
    %1233 = vmatprep.subr.mxu0 0.0
    %1234 = vmatpush1.msra.mxu0 0.0
    %1235 = vmatprep.subr.mxu0 0.0
    %1236 = vmatpush1.msra.mxu0 0.0
    %1237 = vmatprep.subr.mxu0 0.0
    %1238 = vmatpush1.msra.mxu0 0.0
    %1239 = vmatprep.subr.mxu0 0.0
    %1240 = vmatpush1.msra.mxu0 0.0
    %1241 = vmatprep.subr.mxu0 0.0
    %1242 = vmatpush1.msra.mxu0 0.0
    %1243 = vmatprep.subr.mxu0 0.0
    %1244 = vmatpush1.msra.mxu0 0.0
    %1245 = vmatprep.subr.mxu0 0.0
    %1246 = vmatpush1.msra.mxu0 0.0
    %1247 = vmatprep.subr.mxu0 0.0
    %1248 = vmatpush1.msra.mxu0 0.0
    %1249 = vmatprep.subr.mxu0 0.0
    %1250 = vmatpush1.msra.mxu0 0.0
    %1251 = vmatprep.subr.mxu0 0.0
    %1252 = vmatpush1.msra.mxu0 0.0
    %1253 = vmatprep.subr.mxu0 0.0
    %1254 = vmatpush1.msra.mxu0 0.0
    %1255 = vmatprep.subr.mxu0 0.0
    %1256 = vmatpush1.msra.mxu0 0.0
    %1257 = vmatprep.subr.mxu0 0.0
    %1258 = vmatpush1.msra.mxu0 0.0
    %1259 = vmatprep.subr.mxu0 0.0
    %1260 = vmatpush1.msra.mxu0 0.0
    %1261 = vmatprep.mubr.f32.mxu0 0.0
    %1262 = vmatmul.mubr.f32.gmra.mrb[0].mxu0 %v827
    %v1263 = vpop.f32.mrb[0].mxu0
    %v1264 = vadd.f32 0.0, %v1263
    %v1265 = vpop.f32.mrb[0].mxu0
    %1266 = vmatprep.mubr.f32.mxu0 0.0
    %1267 = vmatmul.mubr.f32.gmra.mrb[0].mxu0 %v830
    %v1268 = vpop.f32.mrb[0].mxu0
    %v1269 = vadd.f32 0.0, %v1268
    %v1270 = vpop.f32.mrb[0].mxu0
    %1271 = vmatprep.mubr.f32.mxu0 0.0
    %1272 = vmatmul.mubr.f32.gmra.mrb[0].mxu0 %v833
    %v1273 = vpop.f32.mrb[0].mxu0
    %v1274 = vadd.f32 0.0, %v1273
    %v1275 = vpop.f32.mrb[0].mxu0
    %1276 = vmatprep.mubr.f32.mxu0 0.0
    %1277 = vmatmul.mubr.f32.gmra.mrb[0].mxu0 %v836
    %v1278 = vpop.f32.mrb[0].mxu0
    %v1279 = vadd.f32 0.0, %v1278
    %v1280 = vpop.f32.mrb[0].mxu0
    %1281 = vdwg.mxu0
    %s1282 = scalar_lea.vmem %s13, 32
    %v1283 = vld [vmem:[%s1282] sm:$0xff]
    %v1284 = vld [vmem:[%s1282 + $0x8] sm:$0x3f]
    %v1286 = vsel %vm152, %v1283, 0
    %v1289 = vsel %vm152, %v1284, 0
    %v1292 = vsel %vm174, %v1279, 0
    %1294 = vmatprep.subr.mxu0 0.0
    %1295 = vmatpush1.msra.mxu0 %v1264
    %1296 = vmatprep.subr.mxu0 0.0
    %1297 = vmatpush1.msra.mxu0 %v1269
    %1298 = vmatprep.subr.mxu0 0.0
    %1299 = vmatpush1.msra.mxu0 %v1274
    %1300 = vmatprep.subr.mxu0 0.0
    %1301 = vmatpush1.msra.mxu0 %v1292
    %1302 = vmatprep.subr.mxu0 0.0
    %1303 = vmatpush1.msra.mxu0 0.0
    %1304 = vmatprep.subr.mxu0 0.0
    %1305 = vmatpush1.msra.mxu0 0.0
    %1306 = vmatprep.subr.mxu0 0.0
    %1307 = vmatpush1.msra.mxu0 0.0
    %1308 = vmatprep.subr.mxu0 0.0
    %1309 = vmatpush1.msra.mxu0 0.0
    %1310 = vmatprep.subr.mxu0 0.0
    %1311 = vmatpush1.msra.mxu0 0.0
    %1312 = vmatprep.subr.mxu0 0.0
    %1313 = vmatpush1.msra.mxu0 0.0
    %1314 = vmatprep.subr.mxu0 0.0
    %1315 = vmatpush1.msra.mxu0 0.0
    %1316 = vmatprep.subr.mxu0 0.0
    %1317 = vmatpush1.msra.mxu0 0.0
    %1318 = vmatprep.subr.mxu0 0.0
    %1319 = vmatpush1.msra.mxu0 0.0
    %1320 = vmatprep.subr.mxu0 0.0
    %1321 = vmatpush1.msra.mxu0 0.0
    %1322 = vmatprep.subr.mxu0 0.0
    %1323 = vmatpush1.msra.mxu0 0.0
    %1324 = vmatprep.subr.mxu0 0.0
    %1325 = vmatpush1.msra.mxu0 0.0
    %1326 = vmatprep.subr.mxu0 0.0
    %1327 = vmatpush1.msra.mxu0 0.0
    %1328 = vmatprep.subr.mxu0 0.0
    %1329 = vmatpush1.msra.mxu0 0.0
    %1330 = vmatprep.subr.mxu0 0.0
    %1331 = vmatpush1.msra.mxu0 0.0
    %1332 = vmatprep.subr.mxu0 0.0
    %1333 = vmatpush1.msra.mxu0 0.0
    %1334 = vmatprep.subr.mxu0 0.0
    %1335 = vmatpush1.msra.mxu0 0.0
    %1336 = vmatprep.subr.mxu0 0.0
    %1337 = vmatpush1.msra.mxu0 0.0
    %1338 = vmatprep.subr.mxu0 0.0
    %1339 = vmatpush1.msra.mxu0 0.0
    %1340 = vmatprep.subr.mxu0 0.0
    %1341 = vmatpush1.msra.mxu0 0.0
    %1342 = vmatprep.subr.mxu0 0.0
    %1343 = vmatpush1.msra.mxu0 0.0
    %1344 = vmatprep.subr.mxu0 0.0
    %1345 = vmatpush1.msra.mxu0 0.0
    %1346 = vmatprep.subr.mxu0 0.0
    %1347 = vmatpush1.msra.mxu0 0.0
    %1348 = vmatprep.subr.mxu0 0.0
    %1349 = vmatpush1.msra.mxu0 0.0
    %1350 = vmatprep.subr.mxu0 0.0
    %1351 = vmatpush1.msra.mxu0 0.0
    %1352 = vmatprep.subr.mxu0 0.0
    %1353 = vmatpush1.msra.mxu0 0.0
    %1354 = vmatprep.subr.mxu0 0.0
    %1355 = vmatpush1.msra.mxu0 0.0
    %1356 = vmatprep.subr.mxu0 0.0
    %1357 = vmatpush1.msra.mxu0 0.0
    %1358 = vmatprep.mubr.f32.mxu0 0.0
    %1359 = vmatmul.mubr.f32.gmra.mrb[0].mxu0 %v1286
    %v1360 = vpop.f32.mrb[0].mxu0
    %v1361 = vadd.f32 0.0, %v1360
    %v1362 = vpop.f32.mrb[0].mxu0
    %1363 = vmatprep.mubr.f32.mxu0 0.0
    %1364 = vmatmul.mubr.f32.gmra.mrb[0].mxu0 %v1289
    %v1365 = vpop.f32.mrb[0].mxu0
    %v1366 = vadd.f32 0.0, %v1365
    %v1367 = vpop.f32.mrb[0].mxu0
    %1368 = vdwg.mxu0
    %v1369 = vadd.f32 %v1181, %v1361
    %v1370 = vadd.f32 %v1186, %v1366
    %v1371 = vld [vmem:[%s15] sm:$0x1]
    %v1373 = vlaneseq
    %v1374 = vshrl.u32 %v1373, 7
    %v1375 = vsub.s32 0, %v1374
    %v1376 = vrot.slane %v1371, %v1375
    %v1378 = vadd.f32 %v1369, %v1376
    %v1379 = vadd.f32 %v1370, %v1376
    %v1380 = vmax.f32 %v1378, 0.0
    %v1381 = vmax.f32 %v1379, 0.0
    %v1382 = vld [vmem:[%s17] sm:$0xff]
    %v1383 = vld [vmem:[%s17 + $0x8] sm:$0xff]
    %v1384 = vld [vmem:[%s17 + $0x10] sm:$0xff]
    %v1385 = vld [vmem:[%s17 + $0x18] sm:$0xff]
    %v1386 = vld [vmem:[%s17 + $0x20] sm:$0xff]
    %v1387 = vld [vmem:[%s17 + $0x28] sm:$0xff]
    %v1388 = vld [vmem:[%s17 + $0x30] sm:$0xff]
    %v1390 = vsel %vm395, %v1380, 0
    %v1393 = vsel %vm395, %v1381, 0
    %1395 = vmatprep.subr.mxu0 0.0
    %1396 = vmatpush1.msra.mxu0 %v1382
    %1397 = vmatprep.subr.mxu0 0.0
    %1398 = vmatpush1.msra.mxu0 %v1383
    %1399 = vmatprep.subr.mxu0 0.0
    %1400 = vmatpush1.msra.mxu0 %v1384
    %1401 = vmatprep.subr.mxu0 0.0
    %1402 = vmatpush1.msra.mxu0 %v1385
    %1403 = vmatprep.subr.mxu0 0.0
    %1404 = vmatpush1.msra.mxu0 %v1386
    %1405 = vmatprep.subr.mxu0 0.0
    %1406 = vmatpush1.msra.mxu0 %v1387
    %1407 = vmatprep.subr.mxu0 0.0
    %1408 = vmatpush1.msra.mxu0 %v1388
    %1409 = vmatprep.subr.mxu0 0.0
    %1410 = vmatpush1.msra.mxu0 0.0
    %1411 = vmatprep.subr.mxu0 0.0
    %1412 = vmatpush1.msra.mxu0 0.0
    %1413 = vmatprep.subr.mxu0 0.0
    %1414 = vmatpush1.msra.mxu0 0.0
    %1415 = vmatprep.subr.mxu0 0.0
    %1416 = vmatpush1.msra.mxu0 0.0
    %1417 = vmatprep.subr.mxu0 0.0
    %1418 = vmatpush1.msra.mxu0 0.0
    %1419 = vmatprep.subr.mxu0 0.0
    %1420 = vmatpush1.msra.mxu0 0.0
    %1421 = vmatprep.subr.mxu0 0.0
    %1422 = vmatpush1.msra.mxu0 0.0
    %1423 = vmatprep.subr.mxu0 0.0
    %1424 = vmatpush1.msra.mxu0 0.0
    %1425 = vmatprep.subr.mxu0 0.0
    %1426 = vmatpush1.msra.mxu0 0.0
    %1427 = vmatprep.subr.mxu0 0.0
    %1428 = vmatpush1.msra.mxu0 0.0
    %1429 = vmatprep.subr.mxu0 0.0
    %1430 = vmatpush1.msra.mxu0 0.0
    %1431 = vmatprep.subr.mxu0 0.0
    %1432 = vmatpush1.msra.mxu0 0.0
    %1433 = vmatprep.subr.mxu0 0.0
    %1434 = vmatpush1.msra.mxu0 0.0
    %1435 = vmatprep.subr.mxu0 0.0
    %1436 = vmatpush1.msra.mxu0 0.0
    %1437 = vmatprep.subr.mxu0 0.0
    %1438 = vmatpush1.msra.mxu0 0.0
    %1439 = vmatprep.subr.mxu0 0.0
    %1440 = vmatpush1.msra.mxu0 0.0
    %1441 = vmatprep.subr.mxu0 0.0
    %1442 = vmatpush1.msra.mxu0 0.0
    %1443 = vmatprep.subr.mxu0 0.0
    %1444 = vmatpush1.msra.mxu0 0.0
    %1445 = vmatprep.subr.mxu0 0.0
    %1446 = vmatpush1.msra.mxu0 0.0
    %1447 = vmatprep.subr.mxu0 0.0
    %1448 = vmatpush1.msra.mxu0 0.0
    %1449 = vmatprep.subr.mxu0 0.0
    %1450 = vmatpush1.msra.mxu0 0.0
    %1451 = vmatprep.subr.mxu0 0.0
    %1452 = vmatpush1.msra.mxu0 0.0
    %1453 = vmatprep.subr.mxu0 0.0
    %1454 = vmatpush1.msra.mxu0 0.0
    %1455 = vmatprep.subr.mxu0 0.0
    %1456 = vmatpush1.msra.mxu0 0.0
    %1457 = vmatprep.subr.mxu0 0.0
    %1458 = vmatpush1.msra.mxu0 0.0
    %1459 = vmatprep.mubr.f32.mxu0 0.0
    %1460 = vmatmul.mubr.f32.gmra.mrb[0].mxu0 %v1390
    %v1461 = vpop.f32.mrb[0].mxu0
    %v1462 = vadd.f32 0.0, %v1461
    %v1463 = vpop.f32.mrb[0].mxu0
    %1464 = vmatprep.mubr.f32.mxu0 0.0
    %1465 = vmatmul.mubr.f32.gmra.mrb[0].mxu0 %v1393
    %v1466 = vpop.f32.mrb[0].mxu0
    %v1467 = vadd.f32 0.0, %v1466
    %v1468 = vpop.f32.mrb[0].mxu0
    %1469 = vdwg.mxu0
    %v1470 = vld [vmem:[%s19] sm:$0x3f]
    %s1471 = scalar_lea.vmem %s17, 56
    %v1472 = vld [vmem:[%s1471] sm:$0xff]
    %v1473 = vld [vmem:[%s1471 + $0x8] sm:$0xff]
    %v1474 = vld [vmem:[%s1471 + $0x10] sm:$0xff]
    %v1475 = vld [vmem:[%s1471 + $0x18] sm:$0xff]
    %v1476 = vld [vmem:[%s1471 + $0x20] sm:$0xff]
    %v1477 = vld [vmem:[%s1471 + $0x28] sm:$0xff]
    %v1478 = vld [vmem:[%s1471 + $0x30] sm:$0xff]
    %1479 = vmatprep.subr.mxu0 0.0
    %1480 = vmatpush1.msra.mxu0 %v1472
    %1481 = vmatprep.subr.mxu0 0.0
    %1482 = vmatpush1.msra.mxu0 %v1473
    %1483 = vmatprep.subr.mxu0 0.0
    %1484 = vmatpush1.msra.mxu0 %v1474
    %1485 = vmatprep.subr.mxu0 0.0
    %1486 = vmatpush1.msra.mxu0 %v1475
    %1487 = vmatprep.subr.mxu0 0.0
    %1488 = vmatpush1.msra.mxu0 %v1476
    %1489 = vmatprep.subr.mxu0 0.0
    %1490 = vmatpush1.msra.mxu0 %v1477
    %1491 = vmatprep.subr.mxu0 0.0
    %1492 = vmatpush1.msra.mxu0 %v1478
    %1493 = vmatprep.subr.mxu0 0.0
    %1494 = vmatpush1.msra.mxu0 0.0
    %1495 = vmatprep.subr.mxu0 0.0
    %1496 = vmatpush1.msra.mxu0 0.0
    %1497 = vmatprep.subr.mxu0 0.0
    %1498 = vmatpush1.msra.mxu0 0.0
    %1499 = vmatprep.subr.mxu0 0.0
    %1500 = vmatpush1.msra.mxu0 0.0
    %1501 = vmatprep.subr.mxu0 0.0
    %1502 = vmatpush1.msra.mxu0 0.0
    %1503 = vmatprep.subr.mxu0 0.0
    %1504 = vmatpush1.msra.mxu0 0.0
    %1505 = vmatprep.subr.mxu0 0.0
    %1506 = vmatpush1.msra.mxu0 0.0
    %1507 = vmatprep.subr.mxu0 0.0
    %1508 = vmatpush1.msra.mxu0 0.0
    %1509 = vmatprep.subr.mxu0 0.0
    %1510 = vmatpush1.msra.mxu0 0.0
    %1511 = vmatprep.subr.mxu0 0.0
    %1512 = vmatpush1.msra.mxu0 0.0
    %1513 = vmatprep.subr.mxu0 0.0
    %1514 = vmatpush1.msra.mxu0 0.0
    %1515 = vmatprep.subr.mxu0 0.0
    %1516 = vmatpush1.msra.mxu0 0.0
    %1517 = vmatprep.subr.mxu0 0.0
    %1518 = vmatpush1.msra.mxu0 0.0
    %1519 = vmatprep.subr.mxu0 0.0
    %1520 = vmatpush1.msra.mxu0 0.0
    %1521 = vmatprep.subr.mxu0 0.0
    %1522 = vmatpush1.msra.mxu0 0.0
    %1523 = vmatprep.subr.mxu0 0.0
    %1524 = vmatpush1.msra.mxu0 0.0
    %1525 = vmatprep.subr.mxu0 0.0
    %1526 = vmatpush1.msra.mxu0 0.0
    %1527 = vmatprep.subr.mxu0 0.0
    %1528 = vmatpush1.msra.mxu0 0.0
    %1529 = vmatprep.subr.mxu0 0.0
    %1530 = vmatpush1.msra.mxu0 0.0
    %1531 = vmatprep.subr.mxu0 0.0
    %1532 = vmatpush1.msra.mxu0 0.0
    %1533 = vmatprep.subr.mxu0 0.0
    %1534 = vmatpush1.msra.mxu0 0.0
    %1535 = vmatprep.subr.mxu0 0.0
    %1536 = vmatpush1.msra.mxu0 0.0
    %1537 = vmatprep.subr.mxu0 0.0
    %1538 = vmatpush1.msra.mxu0 0.0
    %1539 = vmatprep.subr.mxu0 0.0
    %1540 = vmatpush1.msra.mxu0 0.0
    %1541 = vmatprep.subr.mxu0 0.0
    %1542 = vmatpush1.msra.mxu0 0.0
    %1543 = vmatprep.mubr.f32.mxu0 0.0
    %1544 = vmatmul.mubr.f32.gmra.mrb[0].mxu0 %v1390
    %v1545 = vpop.f32.mrb[0].mxu0
    %v1546 = vadd.f32 0.0, %v1545
    %v1547 = vpop.f32.mrb[0].mxu0
    %1548 = vmatprep.mubr.f32.mxu0 0.0
    %1549 = vmatmul.mubr.f32.gmra.mrb[0].mxu0 %v1393
    %v1550 = vpop.f32.mrb[0].mxu0
    %v1551 = vadd.f32 0.0, %v1550
    %v1552 = vpop.f32.mrb[0].mxu0
    %1553 = vdwg.mxu0
    %s1554 = scalar_lea.vmem %s19, 8
    %v1555 = vld [vmem:[%s1554] sm:$0x3f]
    %vm1556 = vcmask 113664
    %v1558 = vsel %vm1556, %v1555, 0
    %vm1560 = vcmask 1045504
    %v1562 = vsel %vm1560, %v1551, 0
    %1564 = vmatprep.subr.mxu0 0.0
    %1565 = vmatpush1.msra.mxu0 %v1546
    %1566 = vmatprep.subr.mxu0 0.0
    %1567 = vmatpush1.msra.mxu0 %v1562
    %1568 = vmatprep.subr.mxu0 0.0
    %1569 = vmatpush1.msra.mxu0 0.0
    %1570 = vmatprep.subr.mxu0 0.0
    %1571 = vmatpush1.msra.mxu0 0.0
    %1572 = vmatprep.subr.mxu0 0.0
    %1573 = vmatpush1.msra.mxu0 0.0
    %1574 = vmatprep.subr.mxu0 0.0
    %1575 = vmatpush1.msra.mxu0 0.0
    %1576 = vmatprep.subr.mxu0 0.0
    %1577 = vmatpush1.msra.mxu0 0.0
    %1578 = vmatprep.subr.mxu0 0.0
    %1579 = vmatpush1.msra.mxu0 0.0
    %1580 = vmatprep.subr.mxu0 0.0
    %1581 = vmatpush1.msra.mxu0 0.0
    %1582 = vmatprep.subr.mxu0 0.0
    %1583 = vmatpush1.msra.mxu0 0.0
    %1584 = vmatprep.subr.mxu0 0.0
    %1585 = vmatpush1.msra.mxu0 0.0
    %1586 = vmatprep.subr.mxu0 0.0
    %1587 = vmatpush1.msra.mxu0 0.0
    %1588 = vmatprep.subr.mxu0 0.0
    %1589 = vmatpush1.msra.mxu0 0.0
    %1590 = vmatprep.subr.mxu0 0.0
    %1591 = vmatpush1.msra.mxu0 0.0
    %1592 = vmatprep.subr.mxu0 0.0
    %1593 = vmatpush1.msra.mxu0 0.0
    %1594 = vmatprep.subr.mxu0 0.0
    %1595 = vmatpush1.msra.mxu0 0.0
    %1596 = vmatprep.subr.mxu0 0.0
    %1597 = vmatpush1.msra.mxu0 0.0
    %1598 = vmatprep.subr.mxu0 0.0
    %1599 = vmatpush1.msra.mxu0 0.0
    %1600 = vmatprep.subr.mxu0 0.0
    %1601 = vmatpush1.msra.mxu0 0.0
    %1602 = vmatprep.subr.mxu0 0.0
    %1603 = vmatpush1.msra.mxu0 0.0
    %1604 = vmatprep.subr.mxu0 0.0
    %1605 = vmatpush1.msra.mxu0 0.0
    %1606 = vmatprep.subr.mxu0 0.0
    %1607 = vmatpush1.msra.mxu0 0.0
    %1608 = vmatprep.subr.mxu0 0.0
    %1609 = vmatpush1.msra.mxu0 0.0
    %1610 = vmatprep.subr.mxu0 0.0
    %1611 = vmatpush1.msra.mxu0 0.0
    %1612 = vmatprep.subr.mxu0 0.0
    %1613 = vmatpush1.msra.mxu0 0.0
    %1614 = vmatprep.subr.mxu0 0.0
    %1615 = vmatpush1.msra.mxu0 0.0
    %1616 = vmatprep.subr.mxu0 0.0
    %1617 = vmatpush1.msra.mxu0 0.0
    %1618 = vmatprep.subr.mxu0 0.0
    %1619 = vmatpush1.msra.mxu0 0.0
    %1620 = vmatprep.subr.mxu0 0.0
    %1621 = vmatpush1.msra.mxu0 0.0
    %1622 = vmatprep.subr.mxu0 0.0
    %1623 = vmatpush1.msra.mxu0 0.0
    %1624 = vmatprep.subr.mxu0 0.0
    %1625 = vmatpush1.msra.mxu0 0.0
    %1626 = vmatprep.subr.mxu0 0.0
    %1627 = vmatpush1.msra.mxu0 0.0
    %1628 = vmatprep.mubr.f32.mxu0 0.0
    %1629 = vmatmul.mubr.f32.gmra.mrb[0].mxu0 %v1558
    %v1630 = vpop.f32.mrb[0].mxu0
    %v1631 = vadd.f32 0.0, %v1630
    %v1632 = vpop.f32.mrb[0].mxu0
    %1633 = vdwg.mxu0
    %v1635 = vsel %vm1556, %v1470, 0
    %v1638 = vsel %vm1560, %v1467, 0
    %1640 = vmatprep.subr.mxu0 0.0
    %1641 = vmatpush1.msra.mxu0 %v1462
    %1642 = vmatprep.subr.mxu0 0.0
    %1643 = vmatpush1.msra.mxu0 %v1638
    %1644 = vmatprep.subr.mxu0 0.0
    %1645 = vmatpush1.msra.mxu0 0.0
    %1646 = vmatprep.subr.mxu0 0.0
    %1647 = vmatpush1.msra.mxu0 0.0
    %1648 = vmatprep.subr.mxu0 0.0
    %1649 = vmatpush1.msra.mxu0 0.0
    %1650 = vmatprep.subr.mxu0 0.0
    %1651 = vmatpush1.msra.mxu0 0.0
    %1652 = vmatprep.subr.mxu0 0.0
    %1653 = vmatpush1.msra.mxu0 0.0
    %1654 = vmatprep.subr.mxu0 0.0
    %1655 = vmatpush1.msra.mxu0 0.0
    %1656 = vmatprep.subr.mxu0 0.0
    %1657 = vmatpush1.msra.mxu0 0.0
    %1658 = vmatprep.subr.mxu0 0.0
    %1659 = vmatpush1.msra.mxu0 0.0
    %1660 = vmatprep.subr.mxu0 0.0
    %1661 = vmatpush1.msra.mxu0 0.0
    %1662 = vmatprep.subr.mxu0 0.0
    %1663 = vmatpush1.msra.mxu0 0.0
    %1664 = vmatprep.subr.mxu0 0.0
    %1665 = vmatpush1.msra.mxu0 0.0
    %1666 = vmatprep.subr.mxu0 0.0
    %1667 = vmatpush1.msra.mxu0 0.0
    %1668 = vmatprep.subr.mxu0 0.0
    %1669 = vmatpush1.msra.mxu0 0.0
    %1670 = vmatprep.subr.mxu0 0.0
    %1671 = vmatpush1.msra.mxu0 0.0
    %1672 = vmatprep.subr.mxu0 0.0
    %1673 = vmatpush1.msra.mxu0 0.0
    %1674 = vmatprep.subr.mxu0 0.0
    %1675 = vmatpush1.msra.mxu0 0.0
    %1676 = vmatprep.subr.mxu0 0.0
    %1677 = vmatpush1.msra.mxu0 0.0
    %1678 = vmatprep.subr.mxu0 0.0
    %1679 = vmatpush1.msra.mxu0 0.0
    %1680 = vmatprep.subr.mxu0 0.0
    %1681 = vmatpush1.msra.mxu0 0.0
    %1682 = vmatprep.subr.mxu0 0.0
    %1683 = vmatpush1.msra.mxu0 0.0
    %1684 = vmatprep.subr.mxu0 0.0
    %1685 = vmatpush1.msra.mxu0 0.0
    %1686 = vmatprep.subr.mxu0 0.0
    %1687 = vmatpush1.msra.mxu0 0.0
    %1688 = vmatprep.subr.mxu0 0.0
    %1689 = vmatpush1.msra.mxu0 0.0
    %1690 = vmatprep.subr.mxu0 0.0
    %1691 = vmatpush1.msra.mxu0 0.0
    %1692 = vmatprep.subr.mxu0 0.0
    %1693 = vmatpush1.msra.mxu0 0.0
    %1694 = vmatprep.subr.mxu0 0.0
    %1695 = vmatpush1.msra.mxu0 0.0
    %1696 = vmatprep.subr.mxu0 0.0
    %1697 = vmatpush1.msra.mxu0 0.0
    %1698 = vmatprep.subr.mxu0 0.0
    %1699 = vmatpush1.msra.mxu0 0.0
    %1700 = vmatprep.subr.mxu0 0.0
    %1701 = vmatpush1.msra.mxu0 0.0
    %1702 = vmatprep.subr.mxu0 0.0
    %1703 = vmatpush1.msra.mxu0 0.0
    %1704 = vmatprep.mubr.f32.mxu0 0.0
    %1705 = vmatmul.mubr.f32.gmra.mrb[0].mxu0 %v1635
    %v1706 = vpop.f32.mrb[0].mxu0
    %v1707 = vadd.f32 %v1631, %v1706
    %v1708 = vpop.f32.mrb[0].mxu0
    %1709 = vdwg.mxu0
    %s1710 = scalar_lea.vmem %s17, 112
    %v1711 = vld [vmem:[%s1710] sm:$0xff]
    %v1712 = vld [vmem:[%s1710 + $0x8] sm:$0xff]
    %v1713 = vld [vmem:[%s1710 + $0x10] sm:$0xff]
    %v1714 = vld [vmem:[%s1710 + $0x18] sm:$0xff]
    %v1715 = vld [vmem:[%s1710 + $0x20] sm:$0xff]
    %v1716 = vld [vmem:[%s1710 + $0x28] sm:$0xff]
    %v1717 = vld [vmem:[%s1710 + $0x30] sm:$0xff]
    %1718 = vmatprep.subr.mxu0 0.0
    %1719 = vmatpush1.msra.mxu0 %v1711
    %1720 = vmatprep.subr.mxu0 0.0
    %1721 = vmatpush1.msra.mxu0 %v1712
    %1722 = vmatprep.subr.mxu0 0.0
    %1723 = vmatpush1.msra.mxu0 %v1713
    %1724 = vmatprep.subr.mxu0 0.0
    %1725 = vmatpush1.msra.mxu0 %v1714
    %1726 = vmatprep.subr.mxu0 0.0
    %1727 = vmatpush1.msra.mxu0 %v1715
    %1728 = vmatprep.subr.mxu0 0.0
    %1729 = vmatpush1.msra.mxu0 %v1716
    %1730 = vmatprep.subr.mxu0 0.0
    %1731 = vmatpush1.msra.mxu0 %v1717
    %1732 = vmatprep.subr.mxu0 0.0
    %1733 = vmatpush1.msra.mxu0 0.0
    %1734 = vmatprep.subr.mxu0 0.0
    %1735 = vmatpush1.msra.mxu0 0.0
    %1736 = vmatprep.subr.mxu0 0.0
    %1737 = vmatpush1.msra.mxu0 0.0
    %1738 = vmatprep.subr.mxu0 0.0
    %1739 = vmatpush1.msra.mxu0 0.0
    %1740 = vmatprep.subr.mxu0 0.0
    %1741 = vmatpush1.msra.mxu0 0.0
    %1742 = vmatprep.subr.mxu0 0.0
    %1743 = vmatpush1.msra.mxu0 0.0
    %1744 = vmatprep.subr.mxu0 0.0
    %1745 = vmatpush1.msra.mxu0 0.0
    %1746 = vmatprep.subr.mxu0 0.0
    %1747 = vmatpush1.msra.mxu0 0.0
    %1748 = vmatprep.subr.mxu0 0.0
    %1749 = vmatpush1.msra.mxu0 0.0
    %1750 = vmatprep.subr.mxu0 0.0
    %1751 = vmatpush1.msra.mxu0 0.0
    %1752 = vmatprep.subr.mxu0 0.0
    %1753 = vmatpush1.msra.mxu0 0.0
    %1754 = vmatprep.subr.mxu0 0.0
    %1755 = vmatpush1.msra.mxu0 0.0
    %1756 = vmatprep.subr.mxu0 0.0
    %1757 = vmatpush1.msra.mxu0 0.0
    %1758 = vmatprep.subr.mxu0 0.0
    %1759 = vmatpush1.msra.mxu0 0.0
    %1760 = vmatprep.subr.mxu0 0.0
    %1761 = vmatpush1.msra.mxu0 0.0
    %1762 = vmatprep.subr.mxu0 0.0
    %1763 = vmatpush1.msra.mxu0 0.0
    %1764 = vmatprep.subr.mxu0 0.0
    %1765 = vmatpush1.msra.mxu0 0.0
    %1766 = vmatprep.subr.mxu0 0.0
    %1767 = vmatpush1.msra.mxu0 0.0
    %1768 = vmatprep.subr.mxu0 0.0
    %1769 = vmatpush1.msra.mxu0 0.0
    %1770 = vmatprep.subr.mxu0 0.0
    %1771 = vmatpush1.msra.mxu0 0.0
    %1772 = vmatprep.subr.mxu0 0.0
    %1773 = vmatpush1.msra.mxu0 0.0
    %1774 = vmatprep.subr.mxu0 0.0
    %1775 = vmatpush1.msra.mxu0 0.0
    %1776 = vmatprep.subr.mxu0 0.0
    %1777 = vmatpush1.msra.mxu0 0.0
    %1778 = vmatprep.subr.mxu0 0.0
    %1779 = vmatpush1.msra.mxu0 0.0
    %1780 = vmatprep.subr.mxu0 0.0
    %1781 = vmatpush1.msra.mxu0 0.0
    %1782 = vmatprep.mubr.f32.mxu0 0.0
    %1783 = vmatmul.mubr.f32.gmra.mrb[0].mxu0 %v1390
    %v1784 = vpop.f32.mrb[0].mxu0
    %v1785 = vadd.f32 0.0, %v1784
    %v1786 = vpop.f32.mrb[0].mxu0
    %1787 = vmatprep.mubr.f32.mxu0 0.0
    %1788 = vmatmul.mubr.f32.gmra.mrb[0].mxu0 %v1393
    %v1789 = vpop.f32.mrb[0].mxu0
    %v1790 = vadd.f32 0.0, %v1789
    %v1791 = vpop.f32.mrb[0].mxu0
    %1792 = vdwg.mxu0
    %s1793 = scalar_lea.vmem %s19, 16
    %v1794 = vld [vmem:[%s1793] sm:$0x3f]
    %v1796 = vsel %vm1556, %v1794, 0
    %v1799 = vsel %vm1560, %v1790, 0
    %1801 = vmatprep.subr.mxu0 0.0
    %1802 = vmatpush1.msra.mxu0 %v1785
    %1803 = vmatprep.subr.mxu0 0.0
    %1804 = vmatpush1.msra.mxu0 %v1799
    %1805 = vmatprep.subr.mxu0 0.0
    %1806 = vmatpush1.msra.mxu0 0.0
    %1807 = vmatprep.subr.mxu0 0.0
    %1808 = vmatpush1.msra.mxu0 0.0
    %1809 = vmatprep.subr.mxu0 0.0
    %1810 = vmatpush1.msra.mxu0 0.0
    %1811 = vmatprep.subr.mxu0 0.0
    %1812 = vmatpush1.msra.mxu0 0.0
    %1813 = vmatprep.subr.mxu0 0.0
    %1814 = vmatpush1.msra.mxu0 0.0
    %1815 = vmatprep.subr.mxu0 0.0
    %1816 = vmatpush1.msra.mxu0 0.0
    %1817 = vmatprep.subr.mxu0 0.0
    %1818 = vmatpush1.msra.mxu0 0.0
    %1819 = vmatprep.subr.mxu0 0.0
    %1820 = vmatpush1.msra.mxu0 0.0
    %1821 = vmatprep.subr.mxu0 0.0
    %1822 = vmatpush1.msra.mxu0 0.0
    %1823 = vmatprep.subr.mxu0 0.0
    %1824 = vmatpush1.msra.mxu0 0.0
    %1825 = vmatprep.subr.mxu0 0.0
    %1826 = vmatpush1.msra.mxu0 0.0
    %1827 = vmatprep.subr.mxu0 0.0
    %1828 = vmatpush1.msra.mxu0 0.0
    %1829 = vmatprep.subr.mxu0 0.0
    %1830 = vmatpush1.msra.mxu0 0.0
    %1831 = vmatprep.subr.mxu0 0.0
    %1832 = vmatpush1.msra.mxu0 0.0
    %1833 = vmatprep.subr.mxu0 0.0
    %1834 = vmatpush1.msra.mxu0 0.0
    %1835 = vmatprep.subr.mxu0 0.0
    %1836 = vmatpush1.msra.mxu0 0.0
    %1837 = vmatprep.subr.mxu0 0.0
    %1838 = vmatpush1.msra.mxu0 0.0
    %1839 = vmatprep.subr.mxu0 0.0
    %1840 = vmatpush1.msra.mxu0 0.0
    %1841 = vmatprep.subr.mxu0 0.0
    %1842 = vmatpush1.msra.mxu0 0.0
    %1843 = vmatprep.subr.mxu0 0.0
    %1844 = vmatpush1.msra.mxu0 0.0
    %1845 = vmatprep.subr.mxu0 0.0
    %1846 = vmatpush1.msra.mxu0 0.0
    %1847 = vmatprep.subr.mxu0 0.0
    %1848 = vmatpush1.msra.mxu0 0.0
    %1849 = vmatprep.subr.mxu0 0.0
    %1850 = vmatpush1.msra.mxu0 0.0
    %1851 = vmatprep.subr.mxu0 0.0
    %1852 = vmatpush1.msra.mxu0 0.0
    %1853 = vmatprep.subr.mxu0 0.0
    %1854 = vmatpush1.msra.mxu0 0.0
    %1855 = vmatprep.subr.mxu0 0.0
    %1856 = vmatpush1.msra.mxu0 0.0
    %1857 = vmatprep.subr.mxu0 0.0
    %1858 = vmatpush1.msra.mxu0 0.0
    %1859 = vmatprep.subr.mxu0 0.0
    %1860 = vmatpush1.msra.mxu0 0.0
    %1861 = vmatprep.subr.mxu0 0.0
    %1862 = vmatpush1.msra.mxu0 0.0
    %1863 = vmatprep.subr.mxu0 0.0
    %1864 = vmatpush1.msra.mxu0 0.0
    %1865 = vmatprep.mubr.f32.mxu0 0.0
    %1866 = vmatmul.mubr.f32.gmra.mrb[0].mxu0 %v1796
    %v1867 = vpop.f32.mrb[0].mxu0
    %v1868 = vadd.f32 0.0, %v1867
    %v1869 = vpop.f32.mrb[0].mxu0
    %1870 = vdwg.mxu0
    %v1871 = vadd.f32 %v1707, %v1868
    %v1872 = vld [vmem:[%s21] sm:$0x1]
    %v1874 = vlaneseq
    %v1875 = vshrl.u32 %v1874, 7
    %v1876 = vsub.s32 0, %v1875
    %v1877 = vrot.slane %v1872, %v1876
    %v1879 = vadd.f32 %v1871, %v1877
    %v1880 = vmax.f32 %v1879, 0.0
    %v1881 = vld [vmem:[%s23] sm:$0x3]
    %vm1882 = vcmask 48128
    %v1884 = vsel %vm1882, %v1881, 0
    %v1887 = vsel %vm1560, %v1880, 0
    %1889 = vmatprep.subr.mxu0 0.0
    %1890 = vmatpush1.msra.mxu0 %v1887
    %1891 = vmatprep.subr.mxu0 0.0
    %1892 = vmatpush1.msra.mxu0 0.0
    %1893 = vmatprep.subr.mxu0 0.0
    %1894 = vmatpush1.msra.mxu0 0.0
    %1895 = vmatprep.subr.mxu0 0.0
    %1896 = vmatpush1.msra.mxu0 0.0
    %1897 = vmatprep.subr.mxu0 0.0
    %1898 = vmatpush1.msra.mxu0 0.0
    %1899 = vmatprep.subr.mxu0 0.0
    %1900 = vmatpush1.msra.mxu0 0.0
    %1901 = vmatprep.subr.mxu0 0.0
    %1902 = vmatpush1.msra.mxu0 0.0
    %1903 = vmatprep.subr.mxu0 0.0
    %1904 = vmatpush1.msra.mxu0 0.0
    %1905 = vmatprep.subr.mxu0 0.0
    %1906 = vmatpush1.msra.mxu0 0.0
    %1907 = vmatprep.subr.mxu0 0.0
    %1908 = vmatpush1.msra.mxu0 0.0
    %1909 = vmatprep.subr.mxu0 0.0
    %1910 = vmatpush1.msra.mxu0 0.0
    %1911 = vmatprep.subr.mxu0 0.0
    %1912 = vmatpush1.msra.mxu0 0.0
    %1913 = vmatprep.subr.mxu0 0.0
    %1914 = vmatpush1.msra.mxu0 0.0
    %1915 = vmatprep.subr.mxu0 0.0
    %1916 = vmatpush1.msra.mxu0 0.0
    %1917 = vmatprep.subr.mxu0 0.0
    %1918 = vmatpush1.msra.mxu0 0.0
    %1919 = vmatprep.subr.mxu0 0.0
    %1920 = vmatpush1.msra.mxu0 0.0
    %1921 = vmatprep.subr.mxu0 0.0
    %1922 = vmatpush1.msra.mxu0 0.0
    %1923 = vmatprep.subr.mxu0 0.0
    %1924 = vmatpush1.msra.mxu0 0.0
    %1925 = vmatprep.subr.mxu0 0.0
    %1926 = vmatpush1.msra.mxu0 0.0
    %1927 = vmatprep.subr.mxu0 0.0
    %1928 = vmatpush1.msra.mxu0 0.0
    %1929 = vmatprep.subr.mxu0 0.0
    %1930 = vmatpush1.msra.mxu0 0.0
    %1931 = vmatprep.subr.mxu0 0.0
    %1932 = vmatpush1.msra.mxu0 0.0
    %1933 = vmatprep.subr.mxu0 0.0
    %1934 = vmatpush1.msra.mxu0 0.0
    %1935 = vmatprep.subr.mxu0 0.0
    %1936 = vmatpush1.msra.mxu0 0.0
    %1937 = vmatprep.subr.mxu0 0.0
    %1938 = vmatpush1.msra.mxu0 0.0
    %1939 = vmatprep.subr.mxu0 0.0
    %1940 = vmatpush1.msra.mxu0 0.0
    %1941 = vmatprep.subr.mxu0 0.0
    %1942 = vmatpush1.msra.mxu0 0.0
    %1943 = vmatprep.subr.mxu0 0.0
    %1944 = vmatpush1.msra.mxu0 0.0
    %1945 = vmatprep.subr.mxu0 0.0
    %1946 = vmatpush1.msra.mxu0 0.0
    %1947 = vmatprep.subr.mxu0 0.0
    %1948 = vmatpush1.msra.mxu0 0.0
    %1949 = vmatprep.subr.mxu0 0.0
    %1950 = vmatpush1.msra.mxu0 0.0
    %1951 = vmatprep.subr.mxu0 0.0
    %1952 = vmatpush1.msra.mxu0 0.0
    %1953 = vmatprep.mubr.f32.mxu0 0.0
    %1954 = vmatmul.mubr.f32.gmra.mrb[0].mxu0 %v1884
    %v1955 = vpop.f32.mrb[0].mxu0
    %v1956 = vadd.f32 0.0, %v1955
    %v1957 = vpop.f32.mrb[0].mxu0
    %1958 = vdwg.mxu0
    %v1959 = vld [vmem:[%s25] sm:$0xff]
    %v1960 = vld [vmem:[%s25 + $0x8] sm:$0xff]
    %v1961 = vld [vmem:[%s25 + $0x10] sm:$0xff]
    %v1962 = vld [vmem:[%s25 + $0x18] sm:$0xff]
    %v1963 = vld [vmem:[%s25 + $0x20] sm:$0xff]
    %v1964 = vld [vmem:[%s25 + $0x28] sm:$0xff]
    %s1965 = scalar_lea.vmem %s23, 2
    %v1966 = vld [vmem:[%s1965] sm:$0x3]
    %v1968 = vsel %vm1882, %v1966, 0
    %1970 = vmatprep.subr.mxu0 0.0
    %1971 = vmatpush1.msra.mxu0 %v1887
    %1972 = vmatprep.subr.mxu0 0.0
    %1973 = vmatpush1.msra.mxu0 0.0
    %1974 = vmatprep.subr.mxu0 0.0
    %1975 = vmatpush1.msra.mxu0 0.0
    %1976 = vmatprep.subr.mxu0 0.0
    %1977 = vmatpush1.msra.mxu0 0.0
    %1978 = vmatprep.subr.mxu0 0.0
    %1979 = vmatpush1.msra.mxu0 0.0
    %1980 = vmatprep.subr.mxu0 0.0
    %1981 = vmatpush1.msra.mxu0 0.0
    %1982 = vmatprep.subr.mxu0 0.0
    %1983 = vmatpush1.msra.mxu0 0.0
    %1984 = vmatprep.subr.mxu0 0.0
    %1985 = vmatpush1.msra.mxu0 0.0
    %1986 = vmatprep.subr.mxu0 0.0
    %1987 = vmatpush1.msra.mxu0 0.0
    %1988 = vmatprep.subr.mxu0 0.0
    %1989 = vmatpush1.msra.mxu0 0.0
    %1990 = vmatprep.subr.mxu0 0.0
    %1991 = vmatpush1.msra.mxu0 0.0
    %1992 = vmatprep.subr.mxu0 0.0
    %1993 = vmatpush1.msra.mxu0 0.0
    %1994 = vmatprep.subr.mxu0 0.0
    %1995 = vmatpush1.msra.mxu0 0.0
    %1996 = vmatprep.subr.mxu0 0.0
    %1997 = vmatpush1.msra.mxu0 0.0
    %1998 = vmatprep.subr.mxu0 0.0
    %1999 = vmatpush1.msra.mxu0 0.0
    %2000 = vmatprep.subr.mxu0 0.0
    %2001 = vmatpush1.msra.mxu0 0.0
    %2002 = vmatprep.subr.mxu0 0.0
    %2003 = vmatpush1.msra.mxu0 0.0
    %2004 = vmatprep.subr.mxu0 0.0
    %2005 = vmatpush1.msra.mxu0 0.0
    %2006 = vmatprep.subr.mxu0 0.0
    %2007 = vmatpush1.msra.mxu0 0.0
    %2008 = vmatprep.subr.mxu0 0.0
    %2009 = vmatpush1.msra.mxu0 0.0
    %2010 = vmatprep.subr.mxu0 0.0
    %2011 = vmatpush1.msra.mxu0 0.0
    %2012 = vmatprep.subr.mxu0 0.0
    %2013 = vmatpush1.msra.mxu0 0.0
    %2014 = vmatprep.subr.mxu0 0.0
    %2015 = vmatpush1.msra.mxu0 0.0
    %2016 = vmatprep.subr.mxu0 0.0
    %2017 = vmatpush1.msra.mxu0 0.0
    %2018 = vmatprep.subr.mxu0 0.0
    %2019 = vmatpush1.msra.mxu0 0.0
    %2020 = vmatprep.subr.mxu0 0.0
    %2021 = vmatpush1.msra.mxu0 0.0
    %2022 = vmatprep.subr.mxu0 0.0
    %2023 = vmatpush1.msra.mxu0 0.0
    %2024 = vmatprep.subr.mxu0 0.0
    %2025 = vmatpush1.msra.mxu0 0.0
    %2026 = vmatprep.subr.mxu0 0.0
    %2027 = vmatpush1.msra.mxu0 0.0
    %2028 = vmatprep.subr.mxu0 0.0
    %2029 = vmatpush1.msra.mxu0 0.0
    %2030 = vmatprep.subr.mxu0 0.0
    %2031 = vmatpush1.msra.mxu0 0.0
    %2032 = vmatprep.subr.mxu0 0.0
    %2033 = vmatpush1.msra.mxu0 0.0
    %2034 = vmatprep.mubr.f32.mxu0 0.0
    %2035 = vmatmul.mubr.f32.gmra.mrb[0].mxu0 %v1968
    %v2036 = vpop.f32.mrb[0].mxu0
    %v2037 = vadd.f32 0.0, %v2036
    %v2038 = vpop.f32.mrb[0].mxu0
    %2039 = vdwg.mxu0
    %s2040 = scalar_lea.vmem %s25, 48
    %v2041 = vld [vmem:[%s2040] sm:$0xff]
    %v2042 = vld [vmem:[%s2040 + $0x8] sm:$0xff]
    %v2043 = vld [vmem:[%s2040 + $0x10] sm:$0xff]
    %v2044 = vld [vmem:[%s2040 + $0x18] sm:$0xff]
    %v2045 = vld [vmem:[%s2040 + $0x20] sm:$0xff]
    %v2046 = vld [vmem:[%s2040 + $0x28] sm:$0xff]
    %vm2047 = vcmask 392192
    %v2049 = vsel %vm2047, %v2037, 0
    %2051 = vmatprep.subr.mxu0 0.0
    %2052 = vmatpush1.msra.mxu0 %v2041
    %2053 = vmatprep.subr.mxu0 0.0
    %2054 = vmatpush1.msra.mxu0 %v2042
    %2055 = vmatprep.subr.mxu0 0.0
    %2056 = vmatpush1.msra.mxu0 %v2043
    %2057 = vmatprep.subr.mxu0 0.0
    %2058 = vmatpush1.msra.mxu0 %v2044
    %2059 = vmatprep.subr.mxu0 0.0
    %2060 = vmatpush1.msra.mxu0 %v2045
    %2061 = vmatprep.subr.mxu0 0.0
    %2062 = vmatpush1.msra.mxu0 %v2046
    %2063 = vmatprep.subr.mxu0 0.0
    %2064 = vmatpush1.msra.mxu0 0.0
    %2065 = vmatprep.subr.mxu0 0.0
    %2066 = vmatpush1.msra.mxu0 0.0
    %2067 = vmatprep.subr.mxu0 0.0
    %2068 = vmatpush1.msra.mxu0 0.0
    %2069 = vmatprep.subr.mxu0 0.0
    %2070 = vmatpush1.msra.mxu0 0.0
    %2071 = vmatprep.subr.mxu0 0.0
    %2072 = vmatpush1.msra.mxu0 0.0
    %2073 = vmatprep.subr.mxu0 0.0
    %2074 = vmatpush1.msra.mxu0 0.0
    %2075 = vmatprep.subr.mxu0 0.0
    %2076 = vmatpush1.msra.mxu0 0.0
    %2077 = vmatprep.subr.mxu0 0.0
    %2078 = vmatpush1.msra.mxu0 0.0
    %2079 = vmatprep.subr.mxu0 0.0
    %2080 = vmatpush1.msra.mxu0 0.0
    %2081 = vmatprep.subr.mxu0 0.0
    %2082 = vmatpush1.msra.mxu0 0.0
    %2083 = vmatprep.subr.mxu0 0.0
    %2084 = vmatpush1.msra.mxu0 0.0
    %2085 = vmatprep.subr.mxu0 0.0
    %2086 = vmatpush1.msra.mxu0 0.0
    %2087 = vmatprep.subr.mxu0 0.0
    %2088 = vmatpush1.msra.mxu0 0.0
    %2089 = vmatprep.subr.mxu0 0.0
    %2090 = vmatpush1.msra.mxu0 0.0
    %2091 = vmatprep.subr.mxu0 0.0
    %2092 = vmatpush1.msra.mxu0 0.0
    %2093 = vmatprep.subr.mxu0 0.0
    %2094 = vmatpush1.msra.mxu0 0.0
    %2095 = vmatprep.subr.mxu0 0.0
    %2096 = vmatpush1.msra.mxu0 0.0
    %2097 = vmatprep.subr.mxu0 0.0
    %2098 = vmatpush1.msra.mxu0 0.0
    %2099 = vmatprep.subr.mxu0 0.0
    %2100 = vmatpush1.msra.mxu0 0.0
    %2101 = vmatprep.subr.mxu0 0.0
    %2102 = vmatpush1.msra.mxu0 0.0
    %2103 = vmatprep.subr.mxu0 0.0
    %2104 = vmatpush1.msra.mxu0 0.0
    %2105 = vmatprep.subr.mxu0 0.0
    %2106 = vmatpush1.msra.mxu0 0.0
    %2107 = vmatprep.subr.mxu0 0.0
    %2108 = vmatpush1.msra.mxu0 0.0
    %2109 = vmatprep.subr.mxu0 0.0
    %2110 = vmatpush1.msra.mxu0 0.0
    %2111 = vmatprep.subr.mxu0 0.0
    %2112 = vmatpush1.msra.mxu0 0.0
    %2113 = vmatprep.subr.mxu0 0.0
    %2114 = vmatpush1.msra.mxu0 0.0
    %2115 = vmatprep.mubr.f32.mxu0 0.0
    %2116 = vmatmul.mubr.f32.gmra.mrb[0].mxu0 %v2049
    %v2117 = vpop.f32.mrb[0].mxu0
    %v2118 = vadd.f32 0.0, %v2117
    %v2119 = vpop.f32.mrb[0].mxu0
    %2120 = vdwg.mxu0
    %v2122 = vsel %vm2047, %v1956, 0
    %2124 = vmatprep.subr.mxu0 0.0
    %2125 = vmatpush1.msra.mxu0 %v1959
    %2126 = vmatprep.subr.mxu0 0.0
    %2127 = vmatpush1.msra.mxu0 %v1960
    %2128 = vmatprep.subr.mxu0 0.0
    %2129 = vmatpush1.msra.mxu0 %v1961
    %2130 = vmatprep.subr.mxu0 0.0
    %2131 = vmatpush1.msra.mxu0 %v1962
    %2132 = vmatprep.subr.mxu0 0.0
    %2133 = vmatpush1.msra.mxu0 %v1963
    %2134 = vmatprep.subr.mxu0 0.0
    %2135 = vmatpush1.msra.mxu0 %v1964
    %2136 = vmatprep.subr.mxu0 0.0
    %2137 = vmatpush1.msra.mxu0 0.0
    %2138 = vmatprep.subr.mxu0 0.0
    %2139 = vmatpush1.msra.mxu0 0.0
    %2140 = vmatprep.subr.mxu0 0.0
    %2141 = vmatpush1.msra.mxu0 0.0
    %2142 = vmatprep.subr.mxu0 0.0
    %2143 = vmatpush1.msra.mxu0 0.0
    %2144 = vmatprep.subr.mxu0 0.0
    %2145 = vmatpush1.msra.mxu0 0.0
    %2146 = vmatprep.subr.mxu0 0.0
    %2147 = vmatpush1.msra.mxu0 0.0
    %2148 = vmatprep.subr.mxu0 0.0
    %2149 = vmatpush1.msra.mxu0 0.0
    %2150 = vmatprep.subr.mxu0 0.0
    %2151 = vmatpush1.msra.mxu0 0.0
    %2152 = vmatprep.subr.mxu0 0.0
    %2153 = vmatpush1.msra.mxu0 0.0
    %2154 = vmatprep.subr.mxu0 0.0
    %2155 = vmatpush1.msra.mxu0 0.0
    %2156 = vmatprep.subr.mxu0 0.0
    %2157 = vmatpush1.msra.mxu0 0.0
    %2158 = vmatprep.subr.mxu0 0.0
    %2159 = vmatpush1.msra.mxu0 0.0
    %2160 = vmatprep.subr.mxu0 0.0
    %2161 = vmatpush1.msra.mxu0 0.0
    %2162 = vmatprep.subr.mxu0 0.0
    %2163 = vmatpush1.msra.mxu0 0.0
    %2164 = vmatprep.subr.mxu0 0.0
    %2165 = vmatpush1.msra.mxu0 0.0
    %2166 = vmatprep.subr.mxu0 0.0
    %2167 = vmatpush1.msra.mxu0 0.0
    %2168 = vmatprep.subr.mxu0 0.0
    %2169 = vmatpush1.msra.mxu0 0.0
    %2170 = vmatprep.subr.mxu0 0.0
    %2171 = vmatpush1.msra.mxu0 0.0
    %2172 = vmatprep.subr.mxu0 0.0
    %2173 = vmatpush1.msra.mxu0 0.0
    %2174 = vmatprep.subr.mxu0 0.0
    %2175 = vmatpush1.msra.mxu0 0.0
    %2176 = vmatprep.subr.mxu0 0.0
    %2177 = vmatpush1.msra.mxu0 0.0
    %2178 = vmatprep.subr.mxu0 0.0
    %2179 = vmatpush1.msra.mxu0 0.0
    %2180 = vmatprep.subr.mxu0 0.0
    %2181 = vmatpush1.msra.mxu0 0.0
    %2182 = vmatprep.subr.mxu0 0.0
    %2183 = vmatpush1.msra.mxu0 0.0
    %2184 = vmatprep.subr.mxu0 0.0
    %2185 = vmatpush1.msra.mxu0 0.0
    %2186 = vmatprep.subr.mxu0 0.0
    %2187 = vmatpush1.msra.mxu0 0.0
    %2188 = vmatprep.mubr.f32.mxu0 0.0
    %2189 = vmatmul.mubr.f32.gmra.mrb[0].mxu0 %v2122
    %v2190 = vpop.f32.mrb[0].mxu0
    %v2191 = vadd.f32 %v2118, %v2190
    %v2192 = vpop.f32.mrb[0].mxu0
    %2193 = vdwg.mxu0
    %s2194 = scalar_lea.vmem %s23, 4
    %v2195 = vld [vmem:[%s2194] sm:$0x3]
    %v2197 = vsel %vm1882, %v2195, 0
    %2199 = vmatprep.subr.mxu0 0.0
    %2200 = vmatpush1.msra.mxu0 %v1887
    %2201 = vmatprep.subr.mxu0 0.0
    %2202 = vmatpush1.msra.mxu0 0.0
    %2203 = vmatprep.subr.mxu0 0.0
    %2204 = vmatpush1.msra.mxu0 0.0
    %2205 = vmatprep.subr.mxu0 0.0
    %2206 = vmatpush1.msra.mxu0 0.0
    %2207 = vmatprep.subr.mxu0 0.0
    %2208 = vmatpush1.msra.mxu0 0.0
    %2209 = vmatprep.subr.mxu0 0.0
    %2210 = vmatpush1.msra.mxu0 0.0
    %2211 = vmatprep.subr.mxu0 0.0
    %2212 = vmatpush1.msra.mxu0 0.0
    %2213 = vmatprep.subr.mxu0 0.0
    %2214 = vmatpush1.msra.mxu0 0.0
    %2215 = vmatprep.subr.mxu0 0.0
    %2216 = vmatpush1.msra.mxu0 0.0
    %2217 = vmatprep.subr.mxu0 0.0
    %2218 = vmatpush1.msra.mxu0 0.0
    %2219 = vmatprep.subr.mxu0 0.0
    %2220 = vmatpush1.msra.mxu0 0.0
    %2221 = vmatprep.subr.mxu0 0.0
    %2222 = vmatpush1.msra.mxu0 0.0
    %2223 = vmatprep.subr.mxu0 0.0
    %2224 = vmatpush1.msra.mxu0 0.0
    %2225 = vmatprep.subr.mxu0 0.0
    %2226 = vmatpush1.msra.mxu0 0.0
    %2227 = vmatprep.subr.mxu0 0.0
    %2228 = vmatpush1.msra.mxu0 0.0
    %2229 = vmatprep.subr.mxu0 0.0
    %2230 = vmatpush1.msra.mxu0 0.0
    %2231 = vmatprep.subr.mxu0 0.0
    %2232 = vmatpush1.msra.mxu0 0.0
    %2233 = vmatprep.subr.mxu0 0.0
    %2234 = vmatpush1.msra.mxu0 0.0
    %2235 = vmatprep.subr.mxu0 0.0
    %2236 = vmatpush1.msra.mxu0 0.0
    %2237 = vmatprep.subr.mxu0 0.0
    %2238 = vmatpush1.msra.mxu0 0.0
    %2239 = vmatprep.subr.mxu0 0.0
    %2240 = vmatpush1.msra.mxu0 0.0
    %2241 = vmatprep.subr.mxu0 0.0
    %2242 = vmatpush1.msra.mxu0 0.0
    %2243 = vmatprep.subr.mxu0 0.0
    %2244 = vmatpush1.msra.mxu0 0.0
    %2245 = vmatprep.subr.mxu0 0.0
    %2246 = vmatpush1.msra.mxu0 0.0
    %2247 = vmatprep.subr.mxu0 0.0
    %2248 = vmatpush1.msra.mxu0 0.0
    %2249 = vmatprep.subr.mxu0 0.0
    %2250 = vmatpush1.msra.mxu0 0.0
    %2251 = vmatprep.subr.mxu0 0.0
    %2252 = vmatpush1.msra.mxu0 0.0
    %2253 = vmatprep.subr.mxu0 0.0
    %2254 = vmatpush1.msra.mxu0 0.0
    %2255 = vmatprep.subr.mxu0 0.0
    %2256 = vmatpush1.msra.mxu0 0.0
    %2257 = vmatprep.subr.mxu0 0.0
    %2258 = vmatpush1.msra.mxu0 0.0
    %2259 = vmatprep.subr.mxu0 0.0
    %2260 = vmatpush1.msra.mxu0 0.0
    %2261 = vmatprep.subr.mxu0 0.0
    %2262 = vmatpush1.msra.mxu0 0.0
    %2263 = vmatprep.mubr.f32.mxu0 0.0
    %2264 = vmatmul.mubr.f32.gmra.mrb[0].mxu0 %v2197
    %v2265 = vpop.f32.mrb[0].mxu0
    %v2266 = vadd.f32 0.0, %v2265
    %v2267 = vpop.f32.mrb[0].mxu0
    %2268 = vdwg.mxu0
    %s2269 = scalar_lea.vmem %s25, 96
    %v2270 = vld [vmem:[%s2269] sm:$0xff]
    %v2271 = vld [vmem:[%s2269 + $0x8] sm:$0xff]
    %v2272 = vld [vmem:[%s2269 + $0x10] sm:$0xff]
    %v2273 = vld [vmem:[%s2269 + $0x18] sm:$0xff]
    %v2274 = vld [vmem:[%s2269 + $0x20] sm:$0xff]
    %v2275 = vld [vmem:[%s2269 + $0x28] sm:$0xff]
    %v2277 = vsel %vm2047, %v2266, 0
    %2279 = vmatprep.subr.mxu0 0.0
    %2280 = vmatpush1.msra.mxu0 %v2270
    %2281 = vmatprep.subr.mxu0 0.0
    %2282 = vmatpush1.msra.mxu0 %v2271
    %2283 = vmatprep.subr.mxu0 0.0
    %2284 = vmatpush1.msra.mxu0 %v2272
    %2285 = vmatprep.subr.mxu0 0.0
    %2286 = vmatpush1.msra.mxu0 %v2273
    %2287 = vmatprep.subr.mxu0 0.0
    %2288 = vmatpush1.msra.mxu0 %v2274
    %2289 = vmatprep.subr.mxu0 0.0
    %2290 = vmatpush1.msra.mxu0 %v2275
    %2291 = vmatprep.subr.mxu0 0.0
    %2292 = vmatpush1.msra.mxu0 0.0
    %2293 = vmatprep.subr.mxu0 0.0
    %2294 = vmatpush1.msra.mxu0 0.0
    %2295 = vmatprep.subr.mxu0 0.0
    %2296 = vmatpush1.msra.mxu0 0.0
    %2297 = vmatprep.subr.mxu0 0.0
    %2298 = vmatpush1.msra.mxu0 0.0
    %2299 = vmatprep.subr.mxu0 0.0
    %2300 = vmatpush1.msra.mxu0 0.0
    %2301 = vmatprep.subr.mxu0 0.0
    %2302 = vmatpush1.msra.mxu0 0.0
    %2303 = vmatprep.subr.mxu0 0.0
    %2304 = vmatpush1.msra.mxu0 0.0
    %2305 = vmatprep.subr.mxu0 0.0
    %2306 = vmatpush1.msra.mxu0 0.0
    %2307 = vmatprep.subr.mxu0 0.0
    %2308 = vmatpush1.msra.mxu0 0.0
    %2309 = vmatprep.subr.mxu0 0.0
    %2310 = vmatpush1.msra.mxu0 0.0
    %2311 = vmatprep.subr.mxu0 0.0
    %2312 = vmatpush1.msra.mxu0 0.0
    %2313 = vmatprep.subr.mxu0 0.0
    %2314 = vmatpush1.msra.mxu0 0.0
    %2315 = vmatprep.subr.mxu0 0.0
    %2316 = vmatpush1.msra.mxu0 0.0
    %2317 = vmatprep.subr.mxu0 0.0
    %2318 = vmatpush1.msra.mxu0 0.0
    %2319 = vmatprep.subr.mxu0 0.0
    %2320 = vmatpush1.msra.mxu0 0.0
    %2321 = vmatprep.subr.mxu0 0.0
    %2322 = vmatpush1.msra.mxu0 0.0
    %2323 = vmatprep.subr.mxu0 0.0
    %2324 = vmatpush1.msra.mxu0 0.0
    %2325 = vmatprep.subr.mxu0 0.0
    %2326 = vmatpush1.msra.mxu0 0.0
    %2327 = vmatprep.subr.mxu0 0.0
    %2328 = vmatpush1.msra.mxu0 0.0
    %2329 = vmatprep.subr.mxu0 0.0
    %2330 = vmatpush1.msra.mxu0 0.0
    %2331 = vmatprep.subr.mxu0 0.0
    %2332 = vmatpush1.msra.mxu0 0.0
    %2333 = vmatprep.subr.mxu0 0.0
    %2334 = vmatpush1.msra.mxu0 0.0
    %2335 = vmatprep.subr.mxu0 0.0
    %2336 = vmatpush1.msra.mxu0 0.0
    %2337 = vmatprep.subr.mxu0 0.0
    %2338 = vmatpush1.msra.mxu0 0.0
    %2339 = vmatprep.subr.mxu0 0.0
    %2340 = vmatpush1.msra.mxu0 0.0
    %2341 = vmatprep.subr.mxu0 0.0
    %2342 = vmatpush1.msra.mxu0 0.0
    %2343 = vmatprep.mubr.f32.mxu0 0.0
    %2344 = vmatmul.mubr.f32.gmra.mrb[0].mxu0 %v2277
    %v2345 = vpop.f32.mrb[0].mxu0
    %v2346 = vadd.f32 0.0, %v2345
    %v2347 = vpop.f32.mrb[0].mxu0
    %2348 = vdwg.mxu0
    %v2349 = vadd.f32 %v2191, %v2346
    %v2350 = vld [vmem:[%s27] sm:$0x1]
    %v2352 = vlaneseq
    %v2353 = vshrl.u32 %v2352, 7
    %v2354 = vsub.s32 0, %v2353
    %v2355 = vrot.slane %v2350, %v2354
    %v2357 = vadd.f32 %v2349, %v2355
    %v2358 = vmax.f32 %v2357, 0.0
    %v2359 = vld [vmem:[%s29] sm:$0xff]
    %v2360 = vld [vmem:[%s29 + $0x8] sm:$0xff]
    %v2361 = vld [vmem:[%s29 + $0x10] sm:$0xff]
    %v2362 = vld [vmem:[%s29 + $0x18] sm:$0xff]
    %v2363 = vld [vmem:[%s29 + $0x20] sm:$0xff]
    %v2364 = vld [vmem:[%s29 + $0x28] sm:$0xff]
    %v2365 = vld [vmem:[%s29 + $0x30] sm:$0xff]
    %v2366 = vld [vmem:[%s29 + $0x38] sm:$0xff]
    %v2367 = vld [vmem:[%s29 + $0x40] sm:$0xff]
    %v2368 = vld [vmem:[%s29 + $0x48] sm:$0xff]
    %v2369 = vld [vmem:[%s29 + $0x50] sm:$0xff]
    %v2370 = vld [vmem:[%s29 + $0x58] sm:$0xff]
    %v2371 = vld [vmem:[%s29 + $0x60] sm:$0xff]
    %v2372 = vld [vmem:[%s29 + $0x68] sm:$0xff]
    %v2373 = vld [vmem:[%s29 + $0x70] sm:$0xff]
    %v2374 = vld [vmem:[%s29 + $0x78] sm:$0xff]
    %v2375 = vld [vmem:[%s31] sm:$0x1]
    %v2377 = vlaneseq
    %v2378 = vshrl.u32 %v2377, 7
    %v2379 = vsub.s32 0, %v2378
    %v2380 = vrot.slane %v2375, %v2379
    %2382 = vmatprep.subr.mxu0 0.0
    %2383 = vmatpush1.msra.mxu0 %v2359
    %2384 = vmatprep.subr.mxu0 0.0
    %2385 = vmatpush1.msra.mxu0 %v2360
    %2386 = vmatprep.subr.mxu0 0.0
    %2387 = vmatpush1.msra.mxu0 %v2361
    %2388 = vmatprep.subr.mxu0 0.0
    %2389 = vmatpush1.msra.mxu0 %v2362
    %2390 = vmatprep.subr.mxu0 0.0
    %2391 = vmatpush1.msra.mxu0 %v2363
    %2392 = vmatprep.subr.mxu0 0.0
    %2393 = vmatpush1.msra.mxu0 %v2364
    %2394 = vmatprep.subr.mxu0 0.0
    %2395 = vmatpush1.msra.mxu0 %v2365
    %2396 = vmatprep.subr.mxu0 0.0
    %2397 = vmatpush1.msra.mxu0 %v2366
    %2398 = vmatprep.subr.mxu0 0.0
    %2399 = vmatpush1.msra.mxu0 %v2367
    %2400 = vmatprep.subr.mxu0 0.0
    %2401 = vmatpush1.msra.mxu0 %v2368
    %2402 = vmatprep.subr.mxu0 0.0
    %2403 = vmatpush1.msra.mxu0 %v2369
    %2404 = vmatprep.subr.mxu0 0.0
    %2405 = vmatpush1.msra.mxu0 %v2370
    %2406 = vmatprep.subr.mxu0 0.0
    %2407 = vmatpush1.msra.mxu0 %v2371
    %2408 = vmatprep.subr.mxu0 0.0
    %2409 = vmatpush1.msra.mxu0 %v2372
    %2410 = vmatprep.subr.mxu0 0.0
    %2411 = vmatpush1.msra.mxu0 %v2373
    %2412 = vmatprep.subr.mxu0 0.0
    %2413 = vmatpush1.msra.mxu0 %v2374
    %2414 = vmatprep.subr.mxu0 0.0
    %2415 = vmatpush1.msra.mxu0 0.0
    %2416 = vmatprep.subr.mxu0 0.0
    %2417 = vmatpush1.msra.mxu0 0.0
    %2418 = vmatprep.subr.mxu0 0.0
    %2419 = vmatpush1.msra.mxu0 0.0
    %2420 = vmatprep.subr.mxu0 0.0
    %2421 = vmatpush1.msra.mxu0 0.0
    %2422 = vmatprep.subr.mxu0 0.0
    %2423 = vmatpush1.msra.mxu0 0.0
    %2424 = vmatprep.subr.mxu0 0.0
    %2425 = vmatpush1.msra.mxu0 0.0
    %2426 = vmatprep.subr.mxu0 0.0
    %2427 = vmatpush1.msra.mxu0 0.0
    %2428 = vmatprep.subr.mxu0 0.0
    %2429 = vmatpush1.msra.mxu0 0.0
    %2430 = vmatprep.subr.mxu0 0.0
    %2431 = vmatpush1.msra.mxu0 0.0
    %2432 = vmatprep.subr.mxu0 0.0
    %2433 = vmatpush1.msra.mxu0 0.0
    %2434 = vmatprep.subr.mxu0 0.0
    %2435 = vmatpush1.msra.mxu0 0.0
    %2436 = vmatprep.subr.mxu0 0.0
    %2437 = vmatpush1.msra.mxu0 0.0
    %2438 = vmatprep.subr.mxu0 0.0
    %2439 = vmatpush1.msra.mxu0 0.0
    %2440 = vmatprep.subr.mxu0 0.0
    %2441 = vmatpush1.msra.mxu0 0.0
    %2442 = vmatprep.subr.mxu0 0.0
    %2443 = vmatpush1.msra.mxu0 0.0
    %2444 = vmatprep.subr.mxu0 0.0
    %2445 = vmatpush1.msra.mxu0 0.0
    %2446 = vmatprep.mubr.f32.mxu0 0.0
    %2447 = vmatmul.mubr.f32.gmra.mrb[0].mxu0 %v2358
    %v2448 = vpop.f32.mrb[0].mxu0
    %v2449 = vadd.f32 %v2380, %v2448
    %v2450 = vpop.f32.mrb[0].mxu0
    %2451 = vdwg.mxu0
    %v2452 = vld [vmem:[%s33] sm:$0xff]
    %v2453 = vld [vmem:[%s33 + $0x8] sm:$0xff]
    %v2454 = vld [vmem:[%s33 + $0x10] sm:$0xff]
    %v2455 = vld [vmem:[%s33 + $0x18] sm:$0xff]
    %v2456 = vld [vmem:[%s33 + $0x20] sm:$0xff]
    %v2457 = vld [vmem:[%s33 + $0x28] sm:$0xff]
    %v2458 = vld [vmem:[%s33 + $0x30] sm:$0xff]
    %v2459 = vld [vmem:[%s33 + $0x38] sm:$0xff]
    %v2460 = vld [vmem:[%s33 + $0x40] sm:$0xff]
    %v2461 = vld [vmem:[%s33 + $0x48] sm:$0xff]
    %v2462 = vld [vmem:[%s33 + $0x50] sm:$0xff]
    %v2463 = vld [vmem:[%s33 + $0x58] sm:$0xff]
    %v2464 = vld [vmem:[%s33 + $0x60] sm:$0xff]
    %v2465 = vld [vmem:[%s33 + $0x68] sm:$0xff]
    %v2466 = vld [vmem:[%s33 + $0x70] sm:$0xff]
    %v2467 = vld [vmem:[%s33 + $0x78] sm:$0xff]
    %v2468 = vld [vmem:[%s35] sm:$0x1]
    %v2470 = vlaneseq
    %v2471 = vshrl.u32 %v2470, 7
    %v2472 = vsub.s32 0, %v2471
    %v2473 = vrot.slane %v2468, %v2472
    %2475 = vmatprep.subr.mxu0 0.0
    %2476 = vmatpush1.msra.mxu0 %v2452
    %2477 = vmatprep.subr.mxu0 0.0
    %2478 = vmatpush1.msra.mxu0 %v2453
    %2479 = vmatprep.subr.mxu0 0.0
    %2480 = vmatpush1.msra.mxu0 %v2454
    %2481 = vmatprep.subr.mxu0 0.0
    %2482 = vmatpush1.msra.mxu0 %v2455
    %2483 = vmatprep.subr.mxu0 0.0
    %2484 = vmatpush1.msra.mxu0 %v2456
    %2485 = vmatprep.subr.mxu0 0.0
    %2486 = vmatpush1.msra.mxu0 %v2457
    %2487 = vmatprep.subr.mxu0 0.0
    %2488 = vmatpush1.msra.mxu0 %v2458
    %2489 = vmatprep.subr.mxu0 0.0
    %2490 = vmatpush1.msra.mxu0 %v2459
    %2491 = vmatprep.subr.mxu0 0.0
    %2492 = vmatpush1.msra.mxu0 %v2460
    %2493 = vmatprep.subr.mxu0 0.0
    %2494 = vmatpush1.msra.mxu0 %v2461
    %2495 = vmatprep.subr.mxu0 0.0
    %2496 = vmatpush1.msra.mxu0 %v2462
    %2497 = vmatprep.subr.mxu0 0.0
    %2498 = vmatpush1.msra.mxu0 %v2463
    %2499 = vmatprep.subr.mxu0 0.0
    %2500 = vmatpush1.msra.mxu0 %v2464
    %2501 = vmatprep.subr.mxu0 0.0
    %2502 = vmatpush1.msra.mxu0 %v2465
    %2503 = vmatprep.subr.mxu0 0.0
    %2504 = vmatpush1.msra.mxu0 %v2466
    %2505 = vmatprep.subr.mxu0 0.0
    %2506 = vmatpush1.msra.mxu0 %v2467
    %2507 = vmatprep.subr.mxu0 0.0
    %2508 = vmatpush1.msra.mxu0 0.0
    %2509 = vmatprep.subr.mxu0 0.0
    %2510 = vmatpush1.msra.mxu0 0.0
    %2511 = vmatprep.subr.mxu0 0.0
    %2512 = vmatpush1.msra.mxu0 0.0
    %2513 = vmatprep.subr.mxu0 0.0
    %2514 = vmatpush1.msra.mxu0 0.0
    %2515 = vmatprep.subr.mxu0 0.0
    %2516 = vmatpush1.msra.mxu0 0.0
    %2517 = vmatprep.subr.mxu0 0.0
    %2518 = vmatpush1.msra.mxu0 0.0
    %2519 = vmatprep.subr.mxu0 0.0
    %2520 = vmatpush1.msra.mxu0 0.0
    %2521 = vmatprep.subr.mxu0 0.0
    %2522 = vmatpush1.msra.mxu0 0.0
    %2523 = vmatprep.subr.mxu0 0.0
    %2524 = vmatpush1.msra.mxu0 0.0
    %2525 = vmatprep.subr.mxu0 0.0
    %2526 = vmatpush1.msra.mxu0 0.0
    %2527 = vmatprep.subr.mxu0 0.0
    %2528 = vmatpush1.msra.mxu0 0.0
    %2529 = vmatprep.subr.mxu0 0.0
    %2530 = vmatpush1.msra.mxu0 0.0
    %2531 = vmatprep.subr.mxu0 0.0
    %2532 = vmatpush1.msra.mxu0 0.0
    %2533 = vmatprep.subr.mxu0 0.0
    %2534 = vmatpush1.msra.mxu0 0.0
    %2535 = vmatprep.subr.mxu0 0.0
    %2536 = vmatpush1.msra.mxu0 0.0
    %2537 = vmatprep.subr.mxu0 0.0
    %2538 = vmatpush1.msra.mxu0 0.0
    %2539 = vmatprep.mubr.f32.mxu0 0.0
    %2540 = vmatmul.mubr.f32.gmra.mrb[0].mxu0 %v2358
    %v2541 = vpop.f32.mrb[0].mxu0
    %v2542 = vadd.f32 %v2473, %v2541
    %v2543 = vpop.f32.mrb[0].mxu0
    %2544 = vdwg.mxu0
    %v2545 = vmul.f32 %v2542, 0.5
    %v2546 = vmul.f32 %v2545, 1.442695
    %v2547 = vpow.pop %v2546
    %v2548 = vld [vmem:[%s3] sm:$0x3]
    %v2549 = vmul.f32 %v2547, %v2548
    %v2550 = vadd.f32 %v2449, %v2549
    %v2551 = vld [vmem:[%s37] sm:$0xff]
    %v2552 = vld [vmem:[%s39] sm:$0x1]
    %v2554 = vlaneseq
    %v2555 = vshrl.u32 %v2554, 7
    %v2556 = vsub.s32 0, %v2555
    %v2557 = vrot.slane %v2552, %v2556
    %vm2559 = vcmask 64512
    %v2561 = vsel %vm2559, %v2550, 0
    %2563 = vmatprep.subr.mxu0 0.0
    %2564 = vmatpush1.msra.mxu0 %v2551
    %2565 = vmatprep.subr.mxu0 0.0
    %2566 = vmatpush1.msra.mxu0 0.0
    %2567 = vmatprep.subr.mxu0 0.0
    %2568 = vmatpush1.msra.mxu0 0.0
    %2569 = vmatprep.subr.mxu0 0.0
    %2570 = vmatpush1.msra.mxu0 0.0
    %2571 = vmatprep.subr.mxu0 0.0
    %2572 = vmatpush1.msra.mxu0 0.0
    %2573 = vmatprep.subr.mxu0 0.0
    %2574 = vmatpush1.msra.mxu0 0.0
    %2575 = vmatprep.subr.mxu0 0.0
    %2576 = vmatpush1.msra.mxu0 0.0
    %2577 = vmatprep.subr.mxu0 0.0
    %2578 = vmatpush1.msra.mxu0 0.0
    %2579 = vmatprep.subr.mxu0 0.0
    %2580 = vmatpush1.msra.mxu0 0.0
    %2581 = vmatprep.subr.mxu0 0.0
    %2582 = vmatpush1.msra.mxu0 0.0
    %2583 = vmatprep.subr.mxu0 0.0
    %2584 = vmatpush1.msra.mxu0 0.0
    %2585 = vmatprep.subr.mxu0 0.0
    %2586 = vmatpush1.msra.mxu0 0.0
    %2587 = vmatprep.subr.mxu0 0.0
    %2588 = vmatpush1.msra.mxu0 0.0
    %2589 = vmatprep.subr.mxu0 0.0
    %2590 = vmatpush1.msra.mxu0 0.0
    %2591 = vmatprep.subr.mxu0 0.0
    %2592 = vmatpush1.msra.mxu0 0.0
    %2593 = vmatprep.subr.mxu0 0.0
    %2594 = vmatpush1.msra.mxu0 0.0
    %2595 = vmatprep.subr.mxu0 0.0
    %2596 = vmatpush1.msra.mxu0 0.0
    %2597 = vmatprep.subr.mxu0 0.0
    %2598 = vmatpush1.msra.mxu0 0.0
    %2599 = vmatprep.subr.mxu0 0.0
    %2600 = vmatpush1.msra.mxu0 0.0
    %2601 = vmatprep.subr.mxu0 0.0
    %2602 = vmatpush1.msra.mxu0 0.0
    %2603 = vmatprep.subr.mxu0 0.0
    %2604 = vmatpush1.msra.mxu0 0.0
    %2605 = vmatprep.subr.mxu0 0.0
    %2606 = vmatpush1.msra.mxu0 0.0
    %2607 = vmatprep.subr.mxu0 0.0
    %2608 = vmatpush1.msra.mxu0 0.0
    %2609 = vmatprep.subr.mxu0 0.0
    %2610 = vmatpush1.msra.mxu0 0.0
    %2611 = vmatprep.subr.mxu0 0.0
    %2612 = vmatpush1.msra.mxu0 0.0
    %2613 = vmatprep.subr.mxu0 0.0
    %2614 = vmatpush1.msra.mxu0 0.0
    %2615 = vmatprep.subr.mxu0 0.0
    %2616 = vmatpush1.msra.mxu0 0.0
    %2617 = vmatprep.subr.mxu0 0.0
    %2618 = vmatpush1.msra.mxu0 0.0
    %2619 = vmatprep.subr.mxu0 0.0
    %2620 = vmatpush1.msra.mxu0 0.0
    %2621 = vmatprep.subr.mxu0 0.0
    %2622 = vmatpush1.msra.mxu0 0.0
    %2623 = vmatprep.subr.mxu0 0.0
    %2624 = vmatpush1.msra.mxu0 0.0
    %2625 = vmatprep.subr.mxu0 0.0
    %2626 = vmatpush1.msra.mxu0 0.0
    %2627 = vmatprep.mubr.f32.mxu0 0.0
    %2628 = vmatmul.mubr.f32.gmra.mrb[0].mxu0 %v2561
    %v2629 = vpop.f32.mrb[0].mxu0
    %v2630 = vadd.f32 %v2557, %v2629
    %v2631 = vpop.f32.mrb[0].mxu0
    %2632 = vdwg.mxu0
    %v2633 = vmax.f32 %v2630, 0.0
    %v2634 = vld [vmem:[%s41] sm:$0xff]
    %v2635 = vld [vmem:[%s41 + $0x8] sm:$0xff]
    %v2636 = vld [vmem:[%s41 + $0x10] sm:$0xff]
    %v2637 = vld [vmem:[%s41 + $0x18] sm:$0xff]
    %v2638 = vld [vmem:[%s41 + $0x20] sm:$0xff]
    %v2639 = vld [vmem:[%s41 + $0x28] sm:$0xff]
    %v2640 = vld [vmem:[%s41 + $0x30] sm:$0xff]
    %v2641 = vld [vmem:[%s41 + $0x38] sm:$0xff]
    %v2642 = vld [vmem:[%s43] sm:$0x1]
    %v2644 = vlaneseq
    %v2645 = vshrl.u32 %v2644, 7
    %v2646 = vsub.s32 0, %v2645
    %v2647 = vrot.slane %v2642, %v2646
    %vm2649 = vcmask 523264
    %v2651 = vsel %vm2649, %v2633, 0
    %2653 = vmatprep.subr.mxu0 0.0
    %2654 = vmatpush1.msra.mxu0 %v2634
    %2655 = vmatprep.subr.mxu0 0.0
    %2656 = vmatpush1.msra.mxu0 %v2635
    %2657 = vmatprep.subr.mxu0 0.0
    %2658 = vmatpush1.msra.mxu0 %v2636
    %2659 = vmatprep.subr.mxu0 0.0
    %2660 = vmatpush1.msra.mxu0 %v2637
    %2661 = vmatprep.subr.mxu0 0.0
    %2662 = vmatpush1.msra.mxu0 %v2638
    %2663 = vmatprep.subr.mxu0 0.0
    %2664 = vmatpush1.msra.mxu0 %v2639
    %2665 = vmatprep.subr.mxu0 0.0
    %2666 = vmatpush1.msra.mxu0 %v2640
    %2667 = vmatprep.subr.mxu0 0.0
    %2668 = vmatpush1.msra.mxu0 %v2641
    %2669 = vmatprep.subr.mxu0 0.0
    %2670 = vmatpush1.msra.mxu0 0.0
    %2671 = vmatprep.subr.mxu0 0.0
    %2672 = vmatpush1.msra.mxu0 0.0
    %2673 = vmatprep.subr.mxu0 0.0
    %2674 = vmatpush1.msra.mxu0 0.0
    %2675 = vmatprep.subr.mxu0 0.0
    %2676 = vmatpush1.msra.mxu0 0.0
    %2677 = vmatprep.subr.mxu0 0.0
    %2678 = vmatpush1.msra.mxu0 0.0
    %2679 = vmatprep.subr.mxu0 0.0
    %2680 = vmatpush1.msra.mxu0 0.0
    %2681 = vmatprep.subr.mxu0 0.0
    %2682 = vmatpush1.msra.mxu0 0.0
    %2683 = vmatprep.subr.mxu0 0.0
    %2684 = vmatpush1.msra.mxu0 0.0
    %2685 = vmatprep.subr.mxu0 0.0
    %2686 = vmatpush1.msra.mxu0 0.0
    %2687 = vmatprep.subr.mxu0 0.0
    %2688 = vmatpush1.msra.mxu0 0.0
    %2689 = vmatprep.subr.mxu0 0.0
    %2690 = vmatpush1.msra.mxu0 0.0
    %2691 = vmatprep.subr.mxu0 0.0
    %2692 = vmatpush1.msra.mxu0 0.0
    %2693 = vmatprep.subr.mxu0 0.0
    %2694 = vmatpush1.msra.mxu0 0.0
    %2695 = vmatprep.subr.mxu0 0.0
    %2696 = vmatpush1.msra.mxu0 0.0
    %2697 = vmatprep.subr.mxu0 0.0
    %2698 = vmatpush1.msra.mxu0 0.0
    %2699 = vmatprep.subr.mxu0 0.0
    %2700 = vmatpush1.msra.mxu0 0.0
    %2701 = vmatprep.subr.mxu0 0.0
    %2702 = vmatpush1.msra.mxu0 0.0
    %2703 = vmatprep.subr.mxu0 0.0
    %2704 = vmatpush1.msra.mxu0 0.0
    %2705 = vmatprep.subr.mxu0 0.0
    %2706 = vmatpush1.msra.mxu0 0.0
    %2707 = vmatprep.subr.mxu0 0.0
    %2708 = vmatpush1.msra.mxu0 0.0
    %2709 = vmatprep.subr.mxu0 0.0
    %2710 = vmatpush1.msra.mxu0 0.0
    %2711 = vmatprep.subr.mxu0 0.0
    %2712 = vmatpush1.msra.mxu0 0.0
    %2713 = vmatprep.subr.mxu0 0.0
    %2714 = vmatpush1.msra.mxu0 0.0
    %2715 = vmatprep.subr.mxu0 0.0
    %2716 = vmatpush1.msra.mxu0 0.0
    %2717 = vmatprep.mubr.f32.mxu0 0.0
    %2718 = vmatmul.mubr.f32.gmra.mrb[0].mxu0 %v2651
    %v2719 = vpop.f32.mrb[0].mxu0
    %v2720 = vadd.f32 %v2647, %v2719
    %v2721 = vpop.f32.mrb[0].mxu0
    %2722 = vdwg.mxu0
    %v2723 = vmax.f32 %v2720, 0.0
    %v2724 = vld [vmem:[%s45] sm:$0x3f]
    %s2725 = scalar_lea.vmem %s41, 64
    %v2726 = vld [vmem:[%s2725] sm:$0xff]
    %v2727 = vld [vmem:[%s2725 + $0x8] sm:$0xff]
    %v2728 = vld [vmem:[%s2725 + $0x10] sm:$0xff]
    %v2729 = vld [vmem:[%s2725 + $0x18] sm:$0xff]
    %v2730 = vld [vmem:[%s2725 + $0x20] sm:$0xff]
    %v2731 = vld [vmem:[%s2725 + $0x28] sm:$0xff]
    %v2732 = vld [vmem:[%s2725 + $0x30] sm:$0xff]
    %v2733 = vld [vmem:[%s2725 + $0x38] sm:$0xff]
    %s2734 = scalar_lea.vmem %s43, 1
    %v2735 = vld [vmem:[%s2734] sm:$0x1]
    %v2737 = vlaneseq
    %v2738 = vshrl.u32 %v2737, 7
    %v2739 = vsub.s32 0, %v2738
    %v2740 = vrot.slane %v2735, %v2739
    %2742 = vmatprep.subr.mxu0 0.0
    %2743 = vmatpush1.msra.mxu0 %v2726
    %2744 = vmatprep.subr.mxu0 0.0
    %2745 = vmatpush1.msra.mxu0 %v2727
    %2746 = vmatprep.subr.mxu0 0.0
    %2747 = vmatpush1.msra.mxu0 %v2728
    %2748 = vmatprep.subr.mxu0 0.0
    %2749 = vmatpush1.msra.mxu0 %v2729
    %2750 = vmatprep.subr.mxu0 0.0
    %2751 = vmatpush1.msra.mxu0 %v2730
    %2752 = vmatprep.subr.mxu0 0.0
    %2753 = vmatpush1.msra.mxu0 %v2731
    %2754 = vmatprep.subr.mxu0 0.0
    %2755 = vmatpush1.msra.mxu0 %v2732
    %2756 = vmatprep.subr.mxu0 0.0
    %2757 = vmatpush1.msra.mxu0 %v2733
    %2758 = vmatprep.subr.mxu0 0.0
    %2759 = vmatpush1.msra.mxu0 0.0
    %2760 = vmatprep.subr.mxu0 0.0
    %2761 = vmatpush1.msra.mxu0 0.0
    %2762 = vmatprep.subr.mxu0 0.0
    %2763 = vmatpush1.msra.mxu0 0.0
    %2764 = vmatprep.subr.mxu0 0.0
    %2765 = vmatpush1.msra.mxu0 0.0
    %2766 = vmatprep.subr.mxu0 0.0
    %2767 = vmatpush1.msra.mxu0 0.0
    %2768 = vmatprep.subr.mxu0 0.0
    %2769 = vmatpush1.msra.mxu0 0.0
    %2770 = vmatprep.subr.mxu0 0.0
    %2771 = vmatpush1.msra.mxu0 0.0
    %2772 = vmatprep.subr.mxu0 0.0
    %2773 = vmatpush1.msra.mxu0 0.0
    %2774 = vmatprep.subr.mxu0 0.0
    %2775 = vmatpush1.msra.mxu0 0.0
    %2776 = vmatprep.subr.mxu0 0.0
    %2777 = vmatpush1.msra.mxu0 0.0
    %2778 = vmatprep.subr.mxu0 0.0
    %2779 = vmatpush1.msra.mxu0 0.0
    %2780 = vmatprep.subr.mxu0 0.0
    %2781 = vmatpush1.msra.mxu0 0.0
    %2782 = vmatprep.subr.mxu0 0.0
    %2783 = vmatpush1.msra.mxu0 0.0
    %2784 = vmatprep.subr.mxu0 0.0
    %2785 = vmatpush1.msra.mxu0 0.0
    %2786 = vmatprep.subr.mxu0 0.0
    %2787 = vmatpush1.msra.mxu0 0.0
    %2788 = vmatprep.subr.mxu0 0.0
    %2789 = vmatpush1.msra.mxu0 0.0
    %2790 = vmatprep.subr.mxu0 0.0
    %2791 = vmatpush1.msra.mxu0 0.0
    %2792 = vmatprep.subr.mxu0 0.0
    %2793 = vmatpush1.msra.mxu0 0.0
    %2794 = vmatprep.subr.mxu0 0.0
    %2795 = vmatpush1.msra.mxu0 0.0
    %2796 = vmatprep.subr.mxu0 0.0
    %2797 = vmatpush1.msra.mxu0 0.0
    %2798 = vmatprep.subr.mxu0 0.0
    %2799 = vmatpush1.msra.mxu0 0.0
    %2800 = vmatprep.subr.mxu0 0.0
    %2801 = vmatpush1.msra.mxu0 0.0
    %2802 = vmatprep.subr.mxu0 0.0
    %2803 = vmatpush1.msra.mxu0 0.0
    %2804 = vmatprep.subr.mxu0 0.0
    %2805 = vmatpush1.msra.mxu0 0.0
    %2806 = vmatprep.mubr.f32.mxu0 0.0
    %2807 = vmatmul.mubr.f32.gmra.mrb[0].mxu0 %v2651
    %v2808 = vpop.f32.mrb[0].mxu0
    %v2809 = vadd.f32 %v2740, %v2808
    %v2810 = vpop.f32.mrb[0].mxu0
    %2811 = vdwg.mxu0
    %v2812 = vmax.f32 %v2809, 0.0
    %s2813 = scalar_lea.vmem %s45, 8
    %v2814 = vld [vmem:[%s2813] sm:$0x3f]
    %vm2815 = vcmask 15360
    %v2817 = vsel %vm2815, %v2814, 0
    %vm2819 = vcmask 1041408
    %v2821 = vsel %vm2819, %v2812, 0
    %2823 = vmatprep.subr.mxu0 0.0
    %2824 = vmatpush1.msra.mxu0 %v2821
    %2825 = vmatprep.subr.mxu0 0.0
    %2826 = vmatpush1.msra.mxu0 0.0
    %2827 = vmatprep.subr.mxu0 0.0
    %2828 = vmatpush1.msra.mxu0 0.0
    %2829 = vmatprep.subr.mxu0 0.0
    %2830 = vmatpush1.msra.mxu0 0.0
    %2831 = vmatprep.subr.mxu0 0.0
    %2832 = vmatpush1.msra.mxu0 0.0
    %2833 = vmatprep.subr.mxu0 0.0
    %2834 = vmatpush1.msra.mxu0 0.0
    %2835 = vmatprep.subr.mxu0 0.0
    %2836 = vmatpush1.msra.mxu0 0.0
    %2837 = vmatprep.subr.mxu0 0.0
    %2838 = vmatpush1.msra.mxu0 0.0
    %2839 = vmatprep.subr.mxu0 0.0
    %2840 = vmatpush1.msra.mxu0 0.0
    %2841 = vmatprep.subr.mxu0 0.0
    %2842 = vmatpush1.msra.mxu0 0.0
    %2843 = vmatprep.subr.mxu0 0.0
    %2844 = vmatpush1.msra.mxu0 0.0
    %2845 = vmatprep.subr.mxu0 0.0
    %2846 = vmatpush1.msra.mxu0 0.0
    %2847 = vmatprep.subr.mxu0 0.0
    %2848 = vmatpush1.msra.mxu0 0.0
    %2849 = vmatprep.subr.mxu0 0.0
    %2850 = vmatpush1.msra.mxu0 0.0
    %2851 = vmatprep.subr.mxu0 0.0
    %2852 = vmatpush1.msra.mxu0 0.0
    %2853 = vmatprep.subr.mxu0 0.0
    %2854 = vmatpush1.msra.mxu0 0.0
    %2855 = vmatprep.subr.mxu0 0.0
    %2856 = vmatpush1.msra.mxu0 0.0
    %2857 = vmatprep.subr.mxu0 0.0
    %2858 = vmatpush1.msra.mxu0 0.0
    %2859 = vmatprep.subr.mxu0 0.0
    %2860 = vmatpush1.msra.mxu0 0.0
    %2861 = vmatprep.subr.mxu0 0.0
    %2862 = vmatpush1.msra.mxu0 0.0
    %2863 = vmatprep.subr.mxu0 0.0
    %2864 = vmatpush1.msra.mxu0 0.0
    %2865 = vmatprep.subr.mxu0 0.0
    %2866 = vmatpush1.msra.mxu0 0.0
    %2867 = vmatprep.subr.mxu0 0.0
    %2868 = vmatpush1.msra.mxu0 0.0
    %2869 = vmatprep.subr.mxu0 0.0
    %2870 = vmatpush1.msra.mxu0 0.0
    %2871 = vmatprep.subr.mxu0 0.0
    %2872 = vmatpush1.msra.mxu0 0.0
    %2873 = vmatprep.subr.mxu0 0.0
    %2874 = vmatpush1.msra.mxu0 0.0
    %2875 = vmatprep.subr.mxu0 0.0
    %2876 = vmatpush1.msra.mxu0 0.0
    %2877 = vmatprep.subr.mxu0 0.0
    %2878 = vmatpush1.msra.mxu0 0.0
    %2879 = vmatprep.subr.mxu0 0.0
    %2880 = vmatpush1.msra.mxu0 0.0
    %2881 = vmatprep.subr.mxu0 0.0
    %2882 = vmatpush1.msra.mxu0 0.0
    %2883 = vmatprep.subr.mxu0 0.0
    %2884 = vmatpush1.msra.mxu0 0.0
    %2885 = vmatprep.subr.mxu0 0.0
    %2886 = vmatpush1.msra.mxu0 0.0
    %2887 = vmatprep.mubr.f32.mxu0 0.0
    %2888 = vmatmul.mubr.f32.gmra.mrb[0].mxu0 %v2817
    %v2889 = vpop.f32.mrb[0].mxu0
    %v2890 = vadd.f32 0.0, %v2889
    %v2891 = vpop.f32.mrb[0].mxu0
    %2892 = vdwg.mxu0
    %v2894 = vsel %vm2815, %v2724, 0
    %v2897 = vsel %vm2819, %v2723, 0
    %2899 = vmatprep.subr.mxu0 0.0
    %2900 = vmatpush1.msra.mxu0 %v2897
    %2901 = vmatprep.subr.mxu0 0.0
    %2902 = vmatpush1.msra.mxu0 0.0
    %2903 = vmatprep.subr.mxu0 0.0
    %2904 = vmatpush1.msra.mxu0 0.0
    %2905 = vmatprep.subr.mxu0 0.0
    %2906 = vmatpush1.msra.mxu0 0.0
    %2907 = vmatprep.subr.mxu0 0.0
    %2908 = vmatpush1.msra.mxu0 0.0
    %2909 = vmatprep.subr.mxu0 0.0
    %2910 = vmatpush1.msra.mxu0 0.0
    %2911 = vmatprep.subr.mxu0 0.0
    %2912 = vmatpush1.msra.mxu0 0.0
    %2913 = vmatprep.subr.mxu0 0.0
    %2914 = vmatpush1.msra.mxu0 0.0
    %2915 = vmatprep.subr.mxu0 0.0
    %2916 = vmatpush1.msra.mxu0 0.0
    %2917 = vmatprep.subr.mxu0 0.0
    %2918 = vmatpush1.msra.mxu0 0.0
    %2919 = vmatprep.subr.mxu0 0.0
    %2920 = vmatpush1.msra.mxu0 0.0
    %2921 = vmatprep.subr.mxu0 0.0
    %2922 = vmatpush1.msra.mxu0 0.0
    %2923 = vmatprep.subr.mxu0 0.0
    %2924 = vmatpush1.msra.mxu0 0.0
    %2925 = vmatprep.subr.mxu0 0.0
    %2926 = vmatpush1.msra.mxu0 0.0
    %2927 = vmatprep.subr.mxu0 0.0
    %2928 = vmatpush1.msra.mxu0 0.0
    %2929 = vmatprep.subr.mxu0 0.0
    %2930 = vmatpush1.msra.mxu0 0.0
    %2931 = vmatprep.subr.mxu0 0.0
    %2932 = vmatpush1.msra.mxu0 0.0
    %2933 = vmatprep.subr.mxu0 0.0
    %2934 = vmatpush1.msra.mxu0 0.0
    %2935 = vmatprep.subr.mxu0 0.0
    %2936 = vmatpush1.msra.mxu0 0.0
    %2937 = vmatprep.subr.mxu0 0.0
    %2938 = vmatpush1.msra.mxu0 0.0
    %2939 = vmatprep.subr.mxu0 0.0
    %2940 = vmatpush1.msra.mxu0 0.0
    %2941 = vmatprep.subr.mxu0 0.0
    %2942 = vmatpush1.msra.mxu0 0.0
    %2943 = vmatprep.subr.mxu0 0.0
    %2944 = vmatpush1.msra.mxu0 0.0
    %2945 = vmatprep.subr.mxu0 0.0
    %2946 = vmatpush1.msra.mxu0 0.0
    %2947 = vmatprep.subr.mxu0 0.0
    %2948 = vmatpush1.msra.mxu0 0.0
    %2949 = vmatprep.subr.mxu0 0.0
    %2950 = vmatpush1.msra.mxu0 0.0
    %2951 = vmatprep.subr.mxu0 0.0
    %2952 = vmatpush1.msra.mxu0 0.0
    %2953 = vmatprep.subr.mxu0 0.0
    %2954 = vmatpush1.msra.mxu0 0.0
    %2955 = vmatprep.subr.mxu0 0.0
    %2956 = vmatpush1.msra.mxu0 0.0
    %2957 = vmatprep.subr.mxu0 0.0
    %2958 = vmatpush1.msra.mxu0 0.0
    %2959 = vmatprep.subr.mxu0 0.0
    %2960 = vmatpush1.msra.mxu0 0.0
    %2961 = vmatprep.subr.mxu0 0.0
    %2962 = vmatpush1.msra.mxu0 0.0
    %2963 = vmatprep.mubr.f32.mxu0 0.0
    %2964 = vmatmul.mubr.f32.gmra.mrb[0].mxu0 %v2894
    %v2965 = vpop.f32.mrb[0].mxu0
    %v2966 = vadd.f32 %v2890, %v2965
    %v2967 = vpop.f32.mrb[0].mxu0
    %2968 = vdwg.mxu0
    %s2969 = scalar_lea.vmem %s41, 128
    %v2970 = vld [vmem:[%s2969] sm:$0xff]
    %v2971 = vld [vmem:[%s2969 + $0x8] sm:$0xff]
    %v2972 = vld [vmem:[%s2969 + $0x10] sm:$0xff]
    %v2973 = vld [vmem:[%s2969 + $0x18] sm:$0xff]
    %v2974 = vld [vmem:[%s2969 + $0x20] sm:$0xff]
    %v2975 = vld [vmem:[%s2969 + $0x28] sm:$0xff]
    %v2976 = vld [vmem:[%s2969 + $0x30] sm:$0xff]
    %v2977 = vld [vmem:[%s2969 + $0x38] sm:$0xff]
    %s2978 = scalar_lea.vmem %s43, 2
    %v2979 = vld [vmem:[%s2978] sm:$0x1]
    %v2981 = vlaneseq
    %v2982 = vshrl.u32 %v2981, 7
    %v2983 = vsub.s32 0, %v2982
    %v2984 = vrot.slane %v2979, %v2983
    %2986 = vmatprep.subr.mxu0 0.0
    %2987 = vmatpush1.msra.mxu0 %v2970
    %2988 = vmatprep.subr.mxu0 0.0
    %2989 = vmatpush1.msra.mxu0 %v2971
    %2990 = vmatprep.subr.mxu0 0.0
    %2991 = vmatpush1.msra.mxu0 %v2972
    %2992 = vmatprep.subr.mxu0 0.0
    %2993 = vmatpush1.msra.mxu0 %v2973
    %2994 = vmatprep.subr.mxu0 0.0
    %2995 = vmatpush1.msra.mxu0 %v2974
    %2996 = vmatprep.subr.mxu0 0.0
    %2997 = vmatpush1.msra.mxu0 %v2975
    %2998 = vmatprep.subr.mxu0 0.0
    %2999 = vmatpush1.msra.mxu0 %v2976
    %3000 = vmatprep.subr.mxu0 0.0
    %3001 = vmatpush1.msra.mxu0 %v2977
    %3002 = vmatprep.subr.mxu0 0.0
    %3003 = vmatpush1.msra.mxu0 0.0
    %3004 = vmatprep.subr.mxu0 0.0
    %3005 = vmatpush1.msra.mxu0 0.0
    %3006 = vmatprep.subr.mxu0 0.0
    %3007 = vmatpush1.msra.mxu0 0.0
    %3008 = vmatprep.subr.mxu0 0.0
    %3009 = vmatpush1.msra.mxu0 0.0
    %3010 = vmatprep.subr.mxu0 0.0
    %3011 = vmatpush1.msra.mxu0 0.0
    %3012 = vmatprep.subr.mxu0 0.0
    %3013 = vmatpush1.msra.mxu0 0.0
    %3014 = vmatprep.subr.mxu0 0.0
    %3015 = vmatpush1.msra.mxu0 0.0
    %3016 = vmatprep.subr.mxu0 0.0
    %3017 = vmatpush1.msra.mxu0 0.0
    %3018 = vmatprep.subr.mxu0 0.0
    %3019 = vmatpush1.msra.mxu0 0.0
    %3020 = vmatprep.subr.mxu0 0.0
    %3021 = vmatpush1.msra.mxu0 0.0
    %3022 = vmatprep.subr.mxu0 0.0
    %3023 = vmatpush1.msra.mxu0 0.0
    %3024 = vmatprep.subr.mxu0 0.0
    %3025 = vmatpush1.msra.mxu0 0.0
    %3026 = vmatprep.subr.mxu0 0.0
    %3027 = vmatpush1.msra.mxu0 0.0
    %3028 = vmatprep.subr.mxu0 0.0
    %3029 = vmatpush1.msra.mxu0 0.0
    %3030 = vmatprep.subr.mxu0 0.0
    %3031 = vmatpush1.msra.mxu0 0.0
    %3032 = vmatprep.subr.mxu0 0.0
    %3033 = vmatpush1.msra.mxu0 0.0
    %3034 = vmatprep.subr.mxu0 0.0
    %3035 = vmatpush1.msra.mxu0 0.0
    %3036 = vmatprep.subr.mxu0 0.0
    %3037 = vmatpush1.msra.mxu0 0.0
    %3038 = vmatprep.subr.mxu0 0.0
    %3039 = vmatpush1.msra.mxu0 0.0
    %3040 = vmatprep.subr.mxu0 0.0
    %3041 = vmatpush1.msra.mxu0 0.0
    %3042 = vmatprep.subr.mxu0 0.0
    %3043 = vmatpush1.msra.mxu0 0.0
    %3044 = vmatprep.subr.mxu0 0.0
    %3045 = vmatpush1.msra.mxu0 0.0
    %3046 = vmatprep.subr.mxu0 0.0
    %3047 = vmatpush1.msra.mxu0 0.0
    %3048 = vmatprep.subr.mxu0 0.0
    %3049 = vmatpush1.msra.mxu0 0.0
    %3050 = vmatprep.mubr.f32.mxu0 0.0
    %3051 = vmatmul.mubr.f32.gmra.mrb[0].mxu0 %v2651
    %v3052 = vpop.f32.mrb[0].mxu0
    %v3053 = vadd.f32 %v2984, %v3052
    %v3054 = vpop.f32.mrb[0].mxu0
    %3055 = vdwg.mxu0
    %v3056 = vmax.f32 %v3053, 0.0
    %s3057 = scalar_lea.vmem %s45, 16
    %v3058 = vld [vmem:[%s3057] sm:$0x3f]
    %v3060 = vsel %vm2815, %v3058, 0
    %v3063 = vsel %vm2819, %v3056, 0
    %3065 = vmatprep.subr.mxu0 0.0
    %3066 = vmatpush1.msra.mxu0 %v3063
    %3067 = vmatprep.subr.mxu0 0.0
    %3068 = vmatpush1.msra.mxu0 0.0
    %3069 = vmatprep.subr.mxu0 0.0
    %3070 = vmatpush1.msra.mxu0 0.0
    %3071 = vmatprep.subr.mxu0 0.0
    %3072 = vmatpush1.msra.mxu0 0.0
    %3073 = vmatprep.subr.mxu0 0.0
    %3074 = vmatpush1.msra.mxu0 0.0
    %3075 = vmatprep.subr.mxu0 0.0
    %3076 = vmatpush1.msra.mxu0 0.0
    %3077 = vmatprep.subr.mxu0 0.0
    %3078 = vmatpush1.msra.mxu0 0.0
    %3079 = vmatprep.subr.mxu0 0.0
    %3080 = vmatpush1.msra.mxu0 0.0
    %3081 = vmatprep.subr.mxu0 0.0
    %3082 = vmatpush1.msra.mxu0 0.0
    %3083 = vmatprep.subr.mxu0 0.0
    %3084 = vmatpush1.msra.mxu0 0.0
    %3085 = vmatprep.subr.mxu0 0.0
    %3086 = vmatpush1.msra.mxu0 0.0
    %3087 = vmatprep.subr.mxu0 0.0
    %3088 = vmatpush1.msra.mxu0 0.0
    %3089 = vmatprep.subr.mxu0 0.0
    %3090 = vmatpush1.msra.mxu0 0.0
    %3091 = vmatprep.subr.mxu0 0.0
    %3092 = vmatpush1.msra.mxu0 0.0
    %3093 = vmatprep.subr.mxu0 0.0
    %3094 = vmatpush1.msra.mxu0 0.0
    %3095 = vmatprep.subr.mxu0 0.0
    %3096 = vmatpush1.msra.mxu0 0.0
    %3097 = vmatprep.subr.mxu0 0.0
    %3098 = vmatpush1.msra.mxu0 0.0
    %3099 = vmatprep.subr.mxu0 0.0
    %3100 = vmatpush1.msra.mxu0 0.0
    %3101 = vmatprep.subr.mxu0 0.0
    %3102 = vmatpush1.msra.mxu0 0.0
    %3103 = vmatprep.subr.mxu0 0.0
    %3104 = vmatpush1.msra.mxu0 0.0
    %3105 = vmatprep.subr.mxu0 0.0
    %3106 = vmatpush1.msra.mxu0 0.0
    %3107 = vmatprep.subr.mxu0 0.0
    %3108 = vmatpush1.msra.mxu0 0.0
    %3109 = vmatprep.subr.mxu0 0.0
    %3110 = vmatpush1.msra.mxu0 0.0
    %3111 = vmatprep.subr.mxu0 0.0
    %3112 = vmatpush1.msra.mxu0 0.0
    %3113 = vmatprep.subr.mxu0 0.0
    %3114 = vmatpush1.msra.mxu0 0.0
    %3115 = vmatprep.subr.mxu0 0.0
    %3116 = vmatpush1.msra.mxu0 0.0
    %3117 = vmatprep.subr.mxu0 0.0
    %3118 = vmatpush1.msra.mxu0 0.0
    %3119 = vmatprep.subr.mxu0 0.0
    %3120 = vmatpush1.msra.mxu0 0.0
    %3121 = vmatprep.subr.mxu0 0.0
    %3122 = vmatpush1.msra.mxu0 0.0
    %3123 = vmatprep.subr.mxu0 0.0
    %3124 = vmatpush1.msra.mxu0 0.0
    %3125 = vmatprep.subr.mxu0 0.0
    %3126 = vmatpush1.msra.mxu0 0.0
    %3127 = vmatprep.subr.mxu0 0.0
    %3128 = vmatpush1.msra.mxu0 0.0
    %3129 = vmatprep.mubr.f32.mxu0 0.0
    %3130 = vmatmul.mubr.f32.gmra.mrb[0].mxu0 %v3060
    %v3131 = vpop.f32.mrb[0].mxu0
    %v3132 = vadd.f32 0.0, %v3131
    %v3133 = vpop.f32.mrb[0].mxu0
    %3134 = vdwg.mxu0
    %v3135 = vadd.f32 %v2966, %v3132
    %v3136 = vld [vmem:[%s47] sm:$0xff]
    %v3137 = vld [vmem:[%s47 + $0x8] sm:$0xff]
    %v3138 = vld [vmem:[%s47 + $0x10] sm:$0xff]
    %v3139 = vld [vmem:[%s47 + $0x18] sm:$0xff]
    %v3140 = vld [vmem:[%s47 + $0x20] sm:$0xff]
    %v3141 = vld [vmem:[%s47 + $0x28] sm:$0xff]
    %v3143 = vsel %vm2047, %v3135, 0
    %3145 = vmatprep.subr.mxu0 0.0
    %3146 = vmatpush1.msra.mxu0 %v3136
    %3147 = vmatprep.subr.mxu0 0.0
    %3148 = vmatpush1.msra.mxu0 %v3137
    %3149 = vmatprep.subr.mxu0 0.0
    %3150 = vmatpush1.msra.mxu0 %v3138
    %3151 = vmatprep.subr.mxu0 0.0
    %3152 = vmatpush1.msra.mxu0 %v3139
    %3153 = vmatprep.subr.mxu0 0.0
    %3154 = vmatpush1.msra.mxu0 %v3140
    %3155 = vmatprep.subr.mxu0 0.0
    %3156 = vmatpush1.msra.mxu0 %v3141
    %3157 = vmatprep.subr.mxu0 0.0
    %3158 = vmatpush1.msra.mxu0 0.0
    %3159 = vmatprep.subr.mxu0 0.0
    %3160 = vmatpush1.msra.mxu0 0.0
    %3161 = vmatprep.subr.mxu0 0.0
    %3162 = vmatpush1.msra.mxu0 0.0
    %3163 = vmatprep.subr.mxu0 0.0
    %3164 = vmatpush1.msra.mxu0 0.0
    %3165 = vmatprep.subr.mxu0 0.0
    %3166 = vmatpush1.msra.mxu0 0.0
    %3167 = vmatprep.subr.mxu0 0.0
    %3168 = vmatpush1.msra.mxu0 0.0
    %3169 = vmatprep.subr.mxu0 0.0
    %3170 = vmatpush1.msra.mxu0 0.0
    %3171 = vmatprep.subr.mxu0 0.0
    %3172 = vmatpush1.msra.mxu0 0.0
    %3173 = vmatprep.subr.mxu0 0.0
    %3174 = vmatpush1.msra.mxu0 0.0
    %3175 = vmatprep.subr.mxu0 0.0
    %3176 = vmatpush1.msra.mxu0 0.0
    %3177 = vmatprep.subr.mxu0 0.0
    %3178 = vmatpush1.msra.mxu0 0.0
    %3179 = vmatprep.subr.mxu0 0.0
    %3180 = vmatpush1.msra.mxu0 0.0
    %3181 = vmatprep.subr.mxu0 0.0
    %3182 = vmatpush1.msra.mxu0 0.0
    %3183 = vmatprep.subr.mxu0 0.0
    %3184 = vmatpush1.msra.mxu0 0.0
    %3185 = vmatprep.subr.mxu0 0.0
    %3186 = vmatpush1.msra.mxu0 0.0
    %3187 = vmatprep.subr.mxu0 0.0
    %3188 = vmatpush1.msra.mxu0 0.0
    %3189 = vmatprep.subr.mxu0 0.0
    %3190 = vmatpush1.msra.mxu0 0.0
    %3191 = vmatprep.subr.mxu0 0.0
    %3192 = vmatpush1.msra.mxu0 0.0
    %3193 = vmatprep.subr.mxu0 0.0
    %3194 = vmatpush1.msra.mxu0 0.0
    %3195 = vmatprep.subr.mxu0 0.0
    %3196 = vmatpush1.msra.mxu0 0.0
    %3197 = vmatprep.subr.mxu0 0.0
    %3198 = vmatpush1.msra.mxu0 0.0
    %3199 = vmatprep.subr.mxu0 0.0
    %3200 = vmatpush1.msra.mxu0 0.0
    %3201 = vmatprep.subr.mxu0 0.0
    %3202 = vmatpush1.msra.mxu0 0.0
    %3203 = vmatprep.subr.mxu0 0.0
    %3204 = vmatpush1.msra.mxu0 0.0
    %3205 = vmatprep.subr.mxu0 0.0
    %3206 = vmatpush1.msra.mxu0 0.0
    %3207 = vmatprep.subr.mxu0 0.0
    %3208 = vmatpush1.msra.mxu0 0.0
    %3209 = vmatprep.mubr.f32.mxu0 0.0
    %3210 = vmatmul.mubr.f32.gmra.mrb[0].mxu0 %v3143
    %v3211 = vpop.f32.mrb[0].mxu0
    %v3212 = vadd.f32 0.0, %v3211
    %v3213 = vpop.f32.mrb[0].mxu0
    %3214 = vdwg.mxu0
    %v3215 = vld [vmem:[%s49] sm:$0xff]
    %v3216 = vld [vmem:[%s49 + $0x8] sm:$0x3f]
    %s3217 = scalar_lea.vmem %s47, 48
    %v3218 = vld [vmem:[%s3217] sm:$0xff]
    %v3219 = vld [vmem:[%s3217 + $0x8] sm:$0xff]
    %v3220 = vld [vmem:[%s3217 + $0x10] sm:$0xff]
    %v3221 = vld [vmem:[%s3217 + $0x18] sm:$0xff]
    %v3222 = vld [vmem:[%s3217 + $0x20] sm:$0xff]
    %v3223 = vld [vmem:[%s3217 + $0x28] sm:$0xff]
    %3224 = vmatprep.subr.mxu0 0.0
    %3225 = vmatpush1.msra.mxu0 %v3218
    %3226 = vmatprep.subr.mxu0 0.0
    %3227 = vmatpush1.msra.mxu0 %v3219
    %3228 = vmatprep.subr.mxu0 0.0
    %3229 = vmatpush1.msra.mxu0 %v3220
    %3230 = vmatprep.subr.mxu0 0.0
    %3231 = vmatpush1.msra.mxu0 %v3221
    %3232 = vmatprep.subr.mxu0 0.0
    %3233 = vmatpush1.msra.mxu0 %v3222
    %3234 = vmatprep.subr.mxu0 0.0
    %3235 = vmatpush1.msra.mxu0 %v3223
    %3236 = vmatprep.subr.mxu0 0.0
    %3237 = vmatpush1.msra.mxu0 0.0
    %3238 = vmatprep.subr.mxu0 0.0
    %3239 = vmatpush1.msra.mxu0 0.0
    %3240 = vmatprep.subr.mxu0 0.0
    %3241 = vmatpush1.msra.mxu0 0.0
    %3242 = vmatprep.subr.mxu0 0.0
    %3243 = vmatpush1.msra.mxu0 0.0
    %3244 = vmatprep.subr.mxu0 0.0
    %3245 = vmatpush1.msra.mxu0 0.0
    %3246 = vmatprep.subr.mxu0 0.0
    %3247 = vmatpush1.msra.mxu0 0.0
    %3248 = vmatprep.subr.mxu0 0.0
    %3249 = vmatpush1.msra.mxu0 0.0
    %3250 = vmatprep.subr.mxu0 0.0
    %3251 = vmatpush1.msra.mxu0 0.0
    %3252 = vmatprep.subr.mxu0 0.0
    %3253 = vmatpush1.msra.mxu0 0.0
    %3254 = vmatprep.subr.mxu0 0.0
    %3255 = vmatpush1.msra.mxu0 0.0
    %3256 = vmatprep.subr.mxu0 0.0
    %3257 = vmatpush1.msra.mxu0 0.0
    %3258 = vmatprep.subr.mxu0 0.0
    %3259 = vmatpush1.msra.mxu0 0.0
    %3260 = vmatprep.subr.mxu0 0.0
    %3261 = vmatpush1.msra.mxu0 0.0
    %3262 = vmatprep.subr.mxu0 0.0
    %3263 = vmatpush1.msra.mxu0 0.0
    %3264 = vmatprep.subr.mxu0 0.0
    %3265 = vmatpush1.msra.mxu0 0.0
    %3266 = vmatprep.subr.mxu0 0.0
    %3267 = vmatpush1.msra.mxu0 0.0
    %3268 = vmatprep.subr.mxu0 0.0
    %3269 = vmatpush1.msra.mxu0 0.0
    %3270 = vmatprep.subr.mxu0 0.0
    %3271 = vmatpush1.msra.mxu0 0.0
    %3272 = vmatprep.subr.mxu0 0.0
    %3273 = vmatpush1.msra.mxu0 0.0
    %3274 = vmatprep.subr.mxu0 0.0
    %3275 = vmatpush1.msra.mxu0 0.0
    %3276 = vmatprep.subr.mxu0 0.0
    %3277 = vmatpush1.msra.mxu0 0.0
    %3278 = vmatprep.subr.mxu0 0.0
    %3279 = vmatpush1.msra.mxu0 0.0
    %3280 = vmatprep.subr.mxu0 0.0
    %3281 = vmatpush1.msra.mxu0 0.0
    %3282 = vmatprep.subr.mxu0 0.0
    %3283 = vmatpush1.msra.mxu0 0.0
    %3284 = vmatprep.subr.mxu0 0.0
    %3285 = vmatpush1.msra.mxu0 0.0
    %3286 = vmatprep.subr.mxu0 0.0
    %3287 = vmatpush1.msra.mxu0 0.0
    %3288 = vmatprep.mubr.f32.mxu0 0.0
    %3289 = vmatmul.mubr.f32.gmra.mrb[0].mxu0 %v3143
    %v3290 = vpop.f32.mrb[0].mxu0
    %v3291 = vadd.f32 0.0, %v3290
    %v3292 = vpop.f32.mrb[0].mxu0
    %3293 = vdwg.mxu0
    %s3294 = scalar_lea.vmem %s49, 16
    %v3295 = vld [vmem:[%s3294] sm:$0xff]
    %v3296 = vld [vmem:[%s3294 + $0x8] sm:$0x3f]
    %v3298 = vsel %vm1882, %v3295, 0
    %v3301 = vsel %vm1882, %v3296, 0
    %v3304 = vsel %vm1560, %v3291, 0
    %3306 = vmatprep.subr.mxu0 0.0
    %3307 = vmatpush1.msra.mxu0 %v3304
    %3308 = vmatprep.subr.mxu0 0.0
    %3309 = vmatpush1.msra.mxu0 0.0
    %3310 = vmatprep.subr.mxu0 0.0
    %3311 = vmatpush1.msra.mxu0 0.0
    %3312 = vmatprep.subr.mxu0 0.0
    %3313 = vmatpush1.msra.mxu0 0.0
    %3314 = vmatprep.subr.mxu0 0.0
    %3315 = vmatpush1.msra.mxu0 0.0
    %3316 = vmatprep.subr.mxu0 0.0
    %3317 = vmatpush1.msra.mxu0 0.0
    %3318 = vmatprep.subr.mxu0 0.0
    %3319 = vmatpush1.msra.mxu0 0.0
    %3320 = vmatprep.subr.mxu0 0.0
    %3321 = vmatpush1.msra.mxu0 0.0
    %3322 = vmatprep.subr.mxu0 0.0
    %3323 = vmatpush1.msra.mxu0 0.0
    %3324 = vmatprep.subr.mxu0 0.0
    %3325 = vmatpush1.msra.mxu0 0.0
    %3326 = vmatprep.subr.mxu0 0.0
    %3327 = vmatpush1.msra.mxu0 0.0
    %3328 = vmatprep.subr.mxu0 0.0
    %3329 = vmatpush1.msra.mxu0 0.0
    %3330 = vmatprep.subr.mxu0 0.0
    %3331 = vmatpush1.msra.mxu0 0.0
    %3332 = vmatprep.subr.mxu0 0.0
    %3333 = vmatpush1.msra.mxu0 0.0
    %3334 = vmatprep.subr.mxu0 0.0
    %3335 = vmatpush1.msra.mxu0 0.0
    %3336 = vmatprep.subr.mxu0 0.0
    %3337 = vmatpush1.msra.mxu0 0.0
    %3338 = vmatprep.subr.mxu0 0.0
    %3339 = vmatpush1.msra.mxu0 0.0
    %3340 = vmatprep.subr.mxu0 0.0
    %3341 = vmatpush1.msra.mxu0 0.0
    %3342 = vmatprep.subr.mxu0 0.0
    %3343 = vmatpush1.msra.mxu0 0.0
    %3344 = vmatprep.subr.mxu0 0.0
    %3345 = vmatpush1.msra.mxu0 0.0
    %3346 = vmatprep.subr.mxu0 0.0
    %3347 = vmatpush1.msra.mxu0 0.0
    %3348 = vmatprep.subr.mxu0 0.0
    %3349 = vmatpush1.msra.mxu0 0.0
    %3350 = vmatprep.subr.mxu0 0.0
    %3351 = vmatpush1.msra.mxu0 0.0
    %3352 = vmatprep.subr.mxu0 0.0
    %3353 = vmatpush1.msra.mxu0 0.0
    %3354 = vmatprep.subr.mxu0 0.0
    %3355 = vmatpush1.msra.mxu0 0.0
    %3356 = vmatprep.subr.mxu0 0.0
    %3357 = vmatpush1.msra.mxu0 0.0
    %3358 = vmatprep.subr.mxu0 0.0
    %3359 = vmatpush1.msra.mxu0 0.0
    %3360 = vmatprep.subr.mxu0 0.0
    %3361 = vmatpush1.msra.mxu0 0.0
    %3362 = vmatprep.subr.mxu0 0.0
    %3363 = vmatpush1.msra.mxu0 0.0
    %3364 = vmatprep.subr.mxu0 0.0
    %3365 = vmatpush1.msra.mxu0 0.0
    %3366 = vmatprep.subr.mxu0 0.0
    %3367 = vmatpush1.msra.mxu0 0.0
    %3368 = vmatprep.subr.mxu0 0.0
    %3369 = vmatpush1.msra.mxu0 0.0
    %3370 = vmatprep.mubr.f32.mxu0 0.0
    %3371 = vmatmul.mubr.f32.gmra.mrb[0].mxu0 %v3298
    %v3372 = vpop.f32.mrb[0].mxu0
    %v3373 = vadd.f32 0.0, %v3372
    %v3374 = vpop.f32.mrb[0].mxu0
    %3375 = vmatprep.mubr.f32.mxu0 0.0
    %3376 = vmatmul.mubr.f32.gmra.mrb[0].mxu0 %v3301
    %v3377 = vpop.f32.mrb[0].mxu0
    %v3378 = vadd.f32 0.0, %v3377
    %v3379 = vpop.f32.mrb[0].mxu0
    %3380 = vdwg.mxu0
    %v3382 = vsel %vm1882, %v3215, 0
    %v3385 = vsel %vm1882, %v3216, 0
    %v3388 = vsel %vm1560, %v3212, 0
    %3390 = vmatprep.subr.mxu0 0.0
    %3391 = vmatpush1.msra.mxu0 %v3388
    %3392 = vmatprep.subr.mxu0 0.0
    %3393 = vmatpush1.msra.mxu0 0.0
    %3394 = vmatprep.subr.mxu0 0.0
    %3395 = vmatpush1.msra.mxu0 0.0
    %3396 = vmatprep.subr.mxu0 0.0
    %3397 = vmatpush1.msra.mxu0 0.0
    %3398 = vmatprep.subr.mxu0 0.0
    %3399 = vmatpush1.msra.mxu0 0.0
    %3400 = vmatprep.subr.mxu0 0.0
    %3401 = vmatpush1.msra.mxu0 0.0
    %3402 = vmatprep.subr.mxu0 0.0
    %3403 = vmatpush1.msra.mxu0 0.0
    %3404 = vmatprep.subr.mxu0 0.0
    %3405 = vmatpush1.msra.mxu0 0.0
    %3406 = vmatprep.subr.mxu0 0.0
    %3407 = vmatpush1.msra.mxu0 0.0
    %3408 = vmatprep.subr.mxu0 0.0
    %3409 = vmatpush1.msra.mxu0 0.0
    %3410 = vmatprep.subr.mxu0 0.0
    %3411 = vmatpush1.msra.mxu0 0.0
    %3412 = vmatprep.subr.mxu0 0.0
    %3413 = vmatpush1.msra.mxu0 0.0
    %3414 = vmatprep.subr.mxu0 0.0
    %3415 = vmatpush1.msra.mxu0 0.0
    %3416 = vmatprep.subr.mxu0 0.0
    %3417 = vmatpush1.msra.mxu0 0.0
    %3418 = vmatprep.subr.mxu0 0.0
    %3419 = vmatpush1.msra.mxu0 0.0
    %3420 = vmatprep.subr.mxu0 0.0
    %3421 = vmatpush1.msra.mxu0 0.0
    %3422 = vmatprep.subr.mxu0 0.0
    %3423 = vmatpush1.msra.mxu0 0.0
    %3424 = vmatprep.subr.mxu0 0.0
    %3425 = vmatpush1.msra.mxu0 0.0
    %3426 = vmatprep.subr.mxu0 0.0
    %3427 = vmatpush1.msra.mxu0 0.0
    %3428 = vmatprep.subr.mxu0 0.0
    %3429 = vmatpush1.msra.mxu0 0.0
    %3430 = vmatprep.subr.mxu0 0.0
    %3431 = vmatpush1.msra.mxu0 0.0
    %3432 = vmatprep.subr.mxu0 0.0
    %3433 = vmatpush1.msra.mxu0 0.0
    %3434 = vmatprep.subr.mxu0 0.0
    %3435 = vmatpush1.msra.mxu0 0.0
    %3436 = vmatprep.subr.mxu0 0.0
    %3437 = vmatpush1.msra.mxu0 0.0
    %3438 = vmatprep.subr.mxu0 0.0
    %3439 = vmatpush1.msra.mxu0 0.0
    %3440 = vmatprep.subr.mxu0 0.0
    %3441 = vmatpush1.msra.mxu0 0.0
    %3442 = vmatprep.subr.mxu0 0.0
    %3443 = vmatpush1.msra.mxu0 0.0
    %3444 = vmatprep.subr.mxu0 0.0
    %3445 = vmatpush1.msra.mxu0 0.0
    %3446 = vmatprep.subr.mxu0 0.0
    %3447 = vmatpush1.msra.mxu0 0.0
    %3448 = vmatprep.subr.mxu0 0.0
    %3449 = vmatpush1.msra.mxu0 0.0
    %3450 = vmatprep.subr.mxu0 0.0
    %3451 = vmatpush1.msra.mxu0 0.0
    %3452 = vmatprep.subr.mxu0 0.0
    %3453 = vmatpush1.msra.mxu0 0.0
    %3454 = vmatprep.mubr.f32.mxu0 0.0
    %3455 = vmatmul.mubr.f32.gmra.mrb[0].mxu0 %v3382
    %v3456 = vpop.f32.mrb[0].mxu0
    %v3457 = vadd.f32 %v3373, %v3456
    %v3458 = vpop.f32.mrb[0].mxu0
    %3459 = vmatprep.mubr.f32.mxu0 0.0
    %3460 = vmatmul.mubr.f32.gmra.mrb[0].mxu0 %v3385
    %v3461 = vpop.f32.mrb[0].mxu0
    %v3462 = vadd.f32 %v3378, %v3461
    %v3463 = vpop.f32.mrb[0].mxu0
    %3464 = vdwg.mxu0
    %s3465 = scalar_lea.vmem %s47, 96
    %v3466 = vld [vmem:[%s3465] sm:$0xff]
    %v3467 = vld [vmem:[%s3465 + $0x8] sm:$0xff]
    %v3468 = vld [vmem:[%s3465 + $0x10] sm:$0xff]
    %v3469 = vld [vmem:[%s3465 + $0x18] sm:$0xff]
    %v3470 = vld [vmem:[%s3465 + $0x20] sm:$0xff]
    %v3471 = vld [vmem:[%s3465 + $0x28] sm:$0xff]
    %3472 = vmatprep.subr.mxu0 0.0
    %3473 = vmatpush1.msra.mxu0 %v3466
    %3474 = vmatprep.subr.mxu0 0.0
    %3475 = vmatpush1.msra.mxu0 %v3467
    %3476 = vmatprep.subr.mxu0 0.0
    %3477 = vmatpush1.msra.mxu0 %v3468
    %3478 = vmatprep.subr.mxu0 0.0
    %3479 = vmatpush1.msra.mxu0 %v3469
    %3480 = vmatprep.subr.mxu0 0.0
    %3481 = vmatpush1.msra.mxu0 %v3470
    %3482 = vmatprep.subr.mxu0 0.0
    %3483 = vmatpush1.msra.mxu0 %v3471
    %3484 = vmatprep.subr.mxu0 0.0
    %3485 = vmatpush1.msra.mxu0 0.0
    %3486 = vmatprep.subr.mxu0 0.0
    %3487 = vmatpush1.msra.mxu0 0.0
    %3488 = vmatprep.subr.mxu0 0.0
    %3489 = vmatpush1.msra.mxu0 0.0
    %3490 = vmatprep.subr.mxu0 0.0
    %3491 = vmatpush1.msra.mxu0 0.0
    %3492 = vmatprep.subr.mxu0 0.0
    %3493 = vmatpush1.msra.mxu0 0.0
    %3494 = vmatprep.subr.mxu0 0.0
    %3495 = vmatpush1.msra.mxu0 0.0
    %3496 = vmatprep.subr.mxu0 0.0
    %3497 = vmatpush1.msra.mxu0 0.0
    %3498 = vmatprep.subr.mxu0 0.0
    %3499 = vmatpush1.msra.mxu0 0.0
    %3500 = vmatprep.subr.mxu0 0.0
    %3501 = vmatpush1.msra.mxu0 0.0
    %3502 = vmatprep.subr.mxu0 0.0
    %3503 = vmatpush1.msra.mxu0 0.0
    %3504 = vmatprep.subr.mxu0 0.0
    %3505 = vmatpush1.msra.mxu0 0.0
    %3506 = vmatprep.subr.mxu0 0.0
    %3507 = vmatpush1.msra.mxu0 0.0
    %3508 = vmatprep.subr.mxu0 0.0
    %3509 = vmatpush1.msra.mxu0 0.0
    %3510 = vmatprep.subr.mxu0 0.0
    %3511 = vmatpush1.msra.mxu0 0.0
    %3512 = vmatprep.subr.mxu0 0.0
    %3513 = vmatpush1.msra.mxu0 0.0
    %3514 = vmatprep.subr.mxu0 0.0
    %3515 = vmatpush1.msra.mxu0 0.0
    %3516 = vmatprep.subr.mxu0 0.0
    %3517 = vmatpush1.msra.mxu0 0.0
    %3518 = vmatprep.subr.mxu0 0.0
    %3519 = vmatpush1.msra.mxu0 0.0
    %3520 = vmatprep.subr.mxu0 0.0
    %3521 = vmatpush1.msra.mxu0 0.0
    %3522 = vmatprep.subr.mxu0 0.0
    %3523 = vmatpush1.msra.mxu0 0.0
    %3524 = vmatprep.subr.mxu0 0.0
    %3525 = vmatpush1.msra.mxu0 0.0
    %3526 = vmatprep.subr.mxu0 0.0
    %3527 = vmatpush1.msra.mxu0 0.0
    %3528 = vmatprep.subr.mxu0 0.0
    %3529 = vmatpush1.msra.mxu0 0.0
    %3530 = vmatprep.subr.mxu0 0.0
    %3531 = vmatpush1.msra.mxu0 0.0
    %3532 = vmatprep.subr.mxu0 0.0
    %3533 = vmatpush1.msra.mxu0 0.0
    %3534 = vmatprep.subr.mxu0 0.0
    %3535 = vmatpush1.msra.mxu0 0.0
    %3536 = vmatprep.mubr.f32.mxu0 0.0
    %3537 = vmatmul.mubr.f32.gmra.mrb[0].mxu0 %v3143
    %v3538 = vpop.f32.mrb[0].mxu0
    %v3539 = vadd.f32 0.0, %v3538
    %v3540 = vpop.f32.mrb[0].mxu0
    %3541 = vdwg.mxu0
    %s3542 = scalar_lea.vmem %s49, 32
    %v3543 = vld [vmem:[%s3542] sm:$0xff]
    %v3544 = vld [vmem:[%s3542 + $0x8] sm:$0x3f]
    %v3546 = vsel %vm1882, %v3543, 0
    %v3549 = vsel %vm1882, %v3544, 0
    %v3552 = vsel %vm1560, %v3539, 0
    %3554 = vmatprep.subr.mxu0 0.0
    %3555 = vmatpush1.msra.mxu0 %v3552
    %3556 = vmatprep.subr.mxu0 0.0
    %3557 = vmatpush1.msra.mxu0 0.0
    %3558 = vmatprep.subr.mxu0 0.0
    %3559 = vmatpush1.msra.mxu0 0.0
    %3560 = vmatprep.subr.mxu0 0.0
    %3561 = vmatpush1.msra.mxu0 0.0
    %3562 = vmatprep.subr.mxu0 0.0
    %3563 = vmatpush1.msra.mxu0 0.0
    %3564 = vmatprep.subr.mxu0 0.0
    %3565 = vmatpush1.msra.mxu0 0.0
    %3566 = vmatprep.subr.mxu0 0.0
    %3567 = vmatpush1.msra.mxu0 0.0
    %3568 = vmatprep.subr.mxu0 0.0
    %3569 = vmatpush1.msra.mxu0 0.0
    %3570 = vmatprep.subr.mxu0 0.0
    %3571 = vmatpush1.msra.mxu0 0.0
    %3572 = vmatprep.subr.mxu0 0.0
    %3573 = vmatpush1.msra.mxu0 0.0
    %3574 = vmatprep.subr.mxu0 0.0
    %3575 = vmatpush1.msra.mxu0 0.0
    %3576 = vmatprep.subr.mxu0 0.0
    %3577 = vmatpush1.msra.mxu0 0.0
    %3578 = vmatprep.subr.mxu0 0.0
    %3579 = vmatpush1.msra.mxu0 0.0
    %3580 = vmatprep.subr.mxu0 0.0
    %3581 = vmatpush1.msra.mxu0 0.0
    %3582 = vmatprep.subr.mxu0 0.0
    %3583 = vmatpush1.msra.mxu0 0.0
    %3584 = vmatprep.subr.mxu0 0.0
    %3585 = vmatpush1.msra.mxu0 0.0
    %3586 = vmatprep.subr.mxu0 0.0
    %3587 = vmatpush1.msra.mxu0 0.0
    %3588 = vmatprep.subr.mxu0 0.0
    %3589 = vmatpush1.msra.mxu0 0.0
    %3590 = vmatprep.subr.mxu0 0.0
    %3591 = vmatpush1.msra.mxu0 0.0
    %3592 = vmatprep.subr.mxu0 0.0
    %3593 = vmatpush1.msra.mxu0 0.0
    %3594 = vmatprep.subr.mxu0 0.0
    %3595 = vmatpush1.msra.mxu0 0.0
    %3596 = vmatprep.subr.mxu0 0.0
    %3597 = vmatpush1.msra.mxu0 0.0
    %3598 = vmatprep.subr.mxu0 0.0
    %3599 = vmatpush1.msra.mxu0 0.0
    %3600 = vmatprep.subr.mxu0 0.0
    %3601 = vmatpush1.msra.mxu0 0.0
    %3602 = vmatprep.subr.mxu0 0.0
    %3603 = vmatpush1.msra.mxu0 0.0
    %3604 = vmatprep.subr.mxu0 0.0
    %3605 = vmatpush1.msra.mxu0 0.0
    %3606 = vmatprep.subr.mxu0 0.0
    %3607 = vmatpush1.msra.mxu0 0.0
    %3608 = vmatprep.subr.mxu0 0.0
    %3609 = vmatpush1.msra.mxu0 0.0
    %3610 = vmatprep.subr.mxu0 0.0
    %3611 = vmatpush1.msra.mxu0 0.0
    %3612 = vmatprep.subr.mxu0 0.0
    %3613 = vmatpush1.msra.mxu0 0.0
    %3614 = vmatprep.subr.mxu0 0.0
    %3615 = vmatpush1.msra.mxu0 0.0
    %3616 = vmatprep.subr.mxu0 0.0
    %3617 = vmatpush1.msra.mxu0 0.0
    %3618 = vmatprep.mubr.f32.mxu0 0.0
    %3619 = vmatmul.mubr.f32.gmra.mrb[0].mxu0 %v3546
    %v3620 = vpop.f32.mrb[0].mxu0
    %v3621 = vadd.f32 0.0, %v3620
    %v3622 = vpop.f32.mrb[0].mxu0
    %3623 = vmatprep.mubr.f32.mxu0 0.0
    %3624 = vmatmul.mubr.f32.gmra.mrb[0].mxu0 %v3549
    %v3625 = vpop.f32.mrb[0].mxu0
    %v3626 = vadd.f32 0.0, %v3625
    %v3627 = vpop.f32.mrb[0].mxu0
    %3628 = vdwg.mxu0
    %v3629 = vadd.f32 %v3457, %v3621
    %v3630 = vadd.f32 %v3462, %v3626
    %v3631 = vld [vmem:[%s51] sm:$0x1]
    %v3633 = vlaneseq
    %v3634 = vshrl.u32 %v3633, 7
    %v3635 = vsub.s32 0, %v3634
    %v3636 = vrot.slane %v3631, %v3635
    %v3638 = vadd.f32 %v3629, %v3636
    %v3639 = vadd.f32 %v3630, %v3636
    %v3640 = vmax.f32 %v3638, 0.0
    %v3641 = vmax.f32 %v3639, 0.0
    %v3642 = vld [vmem:[%s53] sm:$0xff]
    %v3643 = vld [vmem:[%s53 + $0x8] sm:$0xff]
    %v3644 = vld [vmem:[%s53 + $0x10] sm:$0xff]
    %v3645 = vld [vmem:[%s53 + $0x18] sm:$0xff]
    %v3646 = vld [vmem:[%s53 + $0x20] sm:$0xff]
    %v3647 = vld [vmem:[%s53 + $0x28] sm:$0xff]
    %v3648 = vld [vmem:[%s53 + $0x30] sm:$0xff]
    %v3650 = vsel %vm395, %v3640, 0
    %v3653 = vsel %vm395, %v3641, 0
    %3655 = vmatprep.subr.mxu0 0.0
    %3656 = vmatpush1.msra.mxu0 %v3642
    %3657 = vmatprep.subr.mxu0 0.0
    %3658 = vmatpush1.msra.mxu0 %v3643
    %3659 = vmatprep.subr.mxu0 0.0
    %3660 = vmatpush1.msra.mxu0 %v3644
    %3661 = vmatprep.subr.mxu0 0.0
    %3662 = vmatpush1.msra.mxu0 %v3645
    %3663 = vmatprep.subr.mxu0 0.0
    %3664 = vmatpush1.msra.mxu0 %v3646
    %3665 = vmatprep.subr.mxu0 0.0
    %3666 = vmatpush1.msra.mxu0 %v3647
    %3667 = vmatprep.subr.mxu0 0.0
    %3668 = vmatpush1.msra.mxu0 %v3648
    %3669 = vmatprep.subr.mxu0 0.0
    %3670 = vmatpush1.msra.mxu0 0.0
    %3671 = vmatprep.subr.mxu0 0.0
    %3672 = vmatpush1.msra.mxu0 0.0
    %3673 = vmatprep.subr.mxu0 0.0
    %3674 = vmatpush1.msra.mxu0 0.0
    %3675 = vmatprep.subr.mxu0 0.0
    %3676 = vmatpush1.msra.mxu0 0.0
    %3677 = vmatprep.subr.mxu0 0.0
    %3678 = vmatpush1.msra.mxu0 0.0
    %3679 = vmatprep.subr.mxu0 0.0
    %3680 = vmatpush1.msra.mxu0 0.0
    %3681 = vmatprep.subr.mxu0 0.0
    %3682 = vmatpush1.msra.mxu0 0.0
    %3683 = vmatprep.subr.mxu0 0.0
    %3684 = vmatpush1.msra.mxu0 0.0
    %3685 = vmatprep.subr.mxu0 0.0
    %3686 = vmatpush1.msra.mxu0 0.0
    %3687 = vmatprep.subr.mxu0 0.0
    %3688 = vmatpush1.msra.mxu0 0.0
    %3689 = vmatprep.subr.mxu0 0.0
    %3690 = vmatpush1.msra.mxu0 0.0
    %3691 = vmatprep.subr.mxu0 0.0
    %3692 = vmatpush1.msra.mxu0 0.0
    %3693 = vmatprep.subr.mxu0 0.0
    %3694 = vmatpush1.msra.mxu0 0.0
    %3695 = vmatprep.subr.mxu0 0.0
    %3696 = vmatpush1.msra.mxu0 0.0
    %3697 = vmatprep.subr.mxu0 0.0
    %3698 = vmatpush1.msra.mxu0 0.0
    %3699 = vmatprep.subr.mxu0 0.0
    %3700 = vmatpush1.msra.mxu0 0.0
    %3701 = vmatprep.subr.mxu0 0.0
    %3702 = vmatpush1.msra.mxu0 0.0
    %3703 = vmatprep.subr.mxu0 0.0
    %3704 = vmatpush1.msra.mxu0 0.0
    %3705 = vmatprep.subr.mxu0 0.0
    %3706 = vmatpush1.msra.mxu0 0.0
    %3707 = vmatprep.subr.mxu0 0.0
    %3708 = vmatpush1.msra.mxu0 0.0
    %3709 = vmatprep.subr.mxu0 0.0
    %3710 = vmatpush1.msra.mxu0 0.0
    %3711 = vmatprep.subr.mxu0 0.0
    %3712 = vmatpush1.msra.mxu0 0.0
    %3713 = vmatprep.subr.mxu0 0.0
    %3714 = vmatpush1.msra.mxu0 0.0
    %3715 = vmatprep.subr.mxu0 0.0
    %3716 = vmatpush1.msra.mxu0 0.0
    %3717 = vmatprep.subr.mxu0 0.0
    %3718 = vmatpush1.msra.mxu0 0.0
    %3719 = vmatprep.mubr.f32.mxu0 0.0
    %3720 = vmatmul.mubr.f32.gmra.mrb[0].mxu0 %v3650
    %v3721 = vpop.f32.mrb[0].mxu0
    %v3722 = vadd.f32 0.0, %v3721
    %v3723 = vpop.f32.mrb[0].mxu0
    %3724 = vmatprep.mubr.f32.mxu0 0.0
    %3725 = vmatmul.mubr.f32.gmra.mrb[0].mxu0 %v3653
    %v3726 = vpop.f32.mrb[0].mxu0
    %v3727 = vadd.f32 0.0, %v3726
    %v3728 = vpop.f32.mrb[0].mxu0
    %3729 = vdwg.mxu0
    %v3730 = vld [vmem:[%s55] sm:$0xff]
    %v3731 = vld [vmem:[%s55 + $0x8] sm:$0xff]
    %v3732 = vld [vmem:[%s55 + $0x10] sm:$0xff]
    %v3733 = vld [vmem:[%s55 + $0x18] sm:$0xf]
    %s3734 = scalar_lea.vmem %s53, 56
    %v3735 = vld [vmem:[%s3734] sm:$0xff]
    %v3736 = vld [vmem:[%s3734 + $0x8] sm:$0xff]
    %v3737 = vld [vmem:[%s3734 + $0x10] sm:$0xff]
    %v3738 = vld [vmem:[%s3734 + $0x18] sm:$0xff]
    %v3739 = vld [vmem:[%s3734 + $0x20] sm:$0xff]
    %v3740 = vld [vmem:[%s3734 + $0x28] sm:$0xff]
    %v3741 = vld [vmem:[%s3734 + $0x30] sm:$0xff]
    %3742 = vmatprep.subr.mxu0 0.0
    %3743 = vmatpush1.msra.mxu0 %v3735
    %3744 = vmatprep.subr.mxu0 0.0
    %3745 = vmatpush1.msra.mxu0 %v3736
    %3746 = vmatprep.subr.mxu0 0.0
    %3747 = vmatpush1.msra.mxu0 %v3737
    %3748 = vmatprep.subr.mxu0 0.0
    %3749 = vmatpush1.msra.mxu0 %v3738
    %3750 = vmatprep.subr.mxu0 0.0
    %3751 = vmatpush1.msra.mxu0 %v3739
    %3752 = vmatprep.subr.mxu0 0.0
    %3753 = vmatpush1.msra.mxu0 %v3740
    %3754 = vmatprep.subr.mxu0 0.0
    %3755 = vmatpush1.msra.mxu0 %v3741
    %3756 = vmatprep.subr.mxu0 0.0
    %3757 = vmatpush1.msra.mxu0 0.0
    %3758 = vmatprep.subr.mxu0 0.0
    %3759 = vmatpush1.msra.mxu0 0.0
    %3760 = vmatprep.subr.mxu0 0.0
    %3761 = vmatpush1.msra.mxu0 0.0
    %3762 = vmatprep.subr.mxu0 0.0
    %3763 = vmatpush1.msra.mxu0 0.0
    %3764 = vmatprep.subr.mxu0 0.0
    %3765 = vmatpush1.msra.mxu0 0.0
    %3766 = vmatprep.subr.mxu0 0.0
    %3767 = vmatpush1.msra.mxu0 0.0
    %3768 = vmatprep.subr.mxu0 0.0
    %3769 = vmatpush1.msra.mxu0 0.0
    %3770 = vmatprep.subr.mxu0 0.0
    %3771 = vmatpush1.msra.mxu0 0.0
    %3772 = vmatprep.subr.mxu0 0.0
    %3773 = vmatpush1.msra.mxu0 0.0
    %3774 = vmatprep.subr.mxu0 0.0
    %3775 = vmatpush1.msra.mxu0 0.0
    %3776 = vmatprep.subr.mxu0 0.0
    %3777 = vmatpush1.msra.mxu0 0.0
    %3778 = vmatprep.subr.mxu0 0.0
    %3779 = vmatpush1.msra.mxu0 0.0
    %3780 = vmatprep.subr.mxu0 0.0
    %3781 = vmatpush1.msra.mxu0 0.0
    %3782 = vmatprep.subr.mxu0 0.0
    %3783 = vmatpush1.msra.mxu0 0.0
    %3784 = vmatprep.subr.mxu0 0.0
    %3785 = vmatpush1.msra.mxu0 0.0
    %3786 = vmatprep.subr.mxu0 0.0
    %3787 = vmatpush1.msra.mxu0 0.0
    %3788 = vmatprep.subr.mxu0 0.0
    %3789 = vmatpush1.msra.mxu0 0.0
    %3790 = vmatprep.subr.mxu0 0.0
    %3791 = vmatpush1.msra.mxu0 0.0
    %3792 = vmatprep.subr.mxu0 0.0
    %3793 = vmatpush1.msra.mxu0 0.0
    %3794 = vmatprep.subr.mxu0 0.0
    %3795 = vmatpush1.msra.mxu0 0.0
    %3796 = vmatprep.subr.mxu0 0.0
    %3797 = vmatpush1.msra.mxu0 0.0
    %3798 = vmatprep.subr.mxu0 0.0
    %3799 = vmatpush1.msra.mxu0 0.0
    %3800 = vmatprep.subr.mxu0 0.0
    %3801 = vmatpush1.msra.mxu0 0.0
    %3802 = vmatprep.subr.mxu0 0.0
    %3803 = vmatpush1.msra.mxu0 0.0
    %3804 = vmatprep.subr.mxu0 0.0
    %3805 = vmatpush1.msra.mxu0 0.0
    %3806 = vmatprep.mubr.f32.mxu0 0.0
    %3807 = vmatmul.mubr.f32.gmra.mrb[0].mxu0 %v3650
    %v3808 = vpop.f32.mrb[0].mxu0
    %v3809 = vadd.f32 0.0, %v3808
    %v3810 = vpop.f32.mrb[0].mxu0
    %3811 = vmatprep.mubr.f32.mxu0 0.0
    %3812 = vmatmul.mubr.f32.gmra.mrb[0].mxu0 %v3653
    %v3813 = vpop.f32.mrb[0].mxu0
    %v3814 = vadd.f32 0.0, %v3813
    %v3815 = vpop.f32.mrb[0].mxu0
    %3816 = vdwg.mxu0
    %s3817 = scalar_lea.vmem %s55, 32
    %v3818 = vld [vmem:[%s3817] sm:$0xff]
    %v3819 = vld [vmem:[%s3817 + $0x8] sm:$0xff]
    %v3820 = vld [vmem:[%s3817 + $0x10] sm:$0xff]
    %v3821 = vld [vmem:[%s3817 + $0x18] sm:$0xf]
    %v3823 = vsel %vm1556, %v3818, 0
    %v3826 = vsel %vm1556, %v3819, 0
    %v3829 = vsel %vm1556, %v3820, 0
    %v3832 = vsel %vm1556, %v3821, 0
    %v3835 = vsel %vm1560, %v3814, 0
    %3837 = vmatprep.subr.mxu0 0.0
    %3838 = vmatpush1.msra.mxu0 %v3809
    %3839 = vmatprep.subr.mxu0 0.0
    %3840 = vmatpush1.msra.mxu0 %v3835
    %3841 = vmatprep.subr.mxu0 0.0
    %3842 = vmatpush1.msra.mxu0 0.0
    %3843 = vmatprep.subr.mxu0 0.0
    %3844 = vmatpush1.msra.mxu0 0.0
    %3845 = vmatprep.subr.mxu0 0.0
    %3846 = vmatpush1.msra.mxu0 0.0
    %3847 = vmatprep.subr.mxu0 0.0
    %3848 = vmatpush1.msra.mxu0 0.0
    %3849 = vmatprep.subr.mxu0 0.0
    %3850 = vmatpush1.msra.mxu0 0.0
    %3851 = vmatprep.subr.mxu0 0.0
    %3852 = vmatpush1.msra.mxu0 0.0
    %3853 = vmatprep.subr.mxu0 0.0
    %3854 = vmatpush1.msra.mxu0 0.0
    %3855 = vmatprep.subr.mxu0 0.0
    %3856 = vmatpush1.msra.mxu0 0.0
    %3857 = vmatprep.subr.mxu0 0.0
    %3858 = vmatpush1.msra.mxu0 0.0
    %3859 = vmatprep.subr.mxu0 0.0
    %3860 = vmatpush1.msra.mxu0 0.0
    %3861 = vmatprep.subr.mxu0 0.0
    %3862 = vmatpush1.msra.mxu0 0.0
    %3863 = vmatprep.subr.mxu0 0.0
    %3864 = vmatpush1.msra.mxu0 0.0
    %3865 = vmatprep.subr.mxu0 0.0
    %3866 = vmatpush1.msra.mxu0 0.0
    %3867 = vmatprep.subr.mxu0 0.0
    %3868 = vmatpush1.msra.mxu0 0.0
    %3869 = vmatprep.subr.mxu0 0.0
    %3870 = vmatpush1.msra.mxu0 0.0
    %3871 = vmatprep.subr.mxu0 0.0
    %3872 = vmatpush1.msra.mxu0 0.0
    %3873 = vmatprep.subr.mxu0 0.0
    %3874 = vmatpush1.msra.mxu0 0.0
    %3875 = vmatprep.subr.mxu0 0.0
    %3876 = vmatpush1.msra.mxu0 0.0
    %3877 = vmatprep.subr.mxu0 0.0
    %3878 = vmatpush1.msra.mxu0 0.0
    %3879 = vmatprep.subr.mxu0 0.0
    %3880 = vmatpush1.msra.mxu0 0.0
    %3881 = vmatprep.subr.mxu0 0.0
    %3882 = vmatpush1.msra.mxu0 0.0
    %3883 = vmatprep.subr.mxu0 0.0
    %3884 = vmatpush1.msra.mxu0 0.0
    %3885 = vmatprep.subr.mxu0 0.0
    %3886 = vmatpush1.msra.mxu0 0.0
    %3887 = vmatprep.subr.mxu0 0.0
    %3888 = vmatpush1.msra.mxu0 0.0
    %3889 = vmatprep.subr.mxu0 0.0
    %3890 = vmatpush1.msra.mxu0 0.0
    %3891 = vmatprep.subr.mxu0 0.0
    %3892 = vmatpush1.msra.mxu0 0.0
    %3893 = vmatprep.subr.mxu0 0.0
    %3894 = vmatpush1.msra.mxu0 0.0
    %3895 = vmatprep.subr.mxu0 0.0
    %3896 = vmatpush1.msra.mxu0 0.0
    %3897 = vmatprep.subr.mxu0 0.0
    %3898 = vmatpush1.msra.mxu0 0.0
    %3899 = vmatprep.subr.mxu0 0.0
    %3900 = vmatpush1.msra.mxu0 0.0
    %3901 = vmatprep.mubr.f32.mxu0 0.0
    %3902 = vmatmul.mubr.f32.gmra.mrb[0].mxu0 %v3823
    %v3903 = vpop.f32.mrb[0].mxu0
    %v3904 = vadd.f32 0.0, %v3903
    %v3905 = vpop.f32.mrb[0].mxu0
    %3906 = vmatprep.mubr.f32.mxu0 0.0
    %3907 = vmatmul.mubr.f32.gmra.mrb[0].mxu0 %v3826
    %v3908 = vpop.f32.mrb[0].mxu0
    %v3909 = vadd.f32 0.0, %v3908
    %v3910 = vpop.f32.mrb[0].mxu0
    %3911 = vmatprep.mubr.f32.mxu0 0.0
    %3912 = vmatmul.mubr.f32.gmra.mrb[0].mxu0 %v3829
    %v3913 = vpop.f32.mrb[0].mxu0
    %v3914 = vadd.f32 0.0, %v3913
    %v3915 = vpop.f32.mrb[0].mxu0
    %3916 = vmatprep.mubr.f32.mxu0 0.0
    %3917 = vmatmul.mubr.f32.gmra.mrb[0].mxu0 %v3832
    %v3918 = vpop.f32.mrb[0].mxu0
    %v3919 = vadd.f32 0.0, %v3918
    %v3920 = vpop.f32.mrb[0].mxu0
    %3921 = vdwg.mxu0
    %v3923 = vsel %vm1556, %v3730, 0
    %v3926 = vsel %vm1556, %v3731, 0
    %v3929 = vsel %vm1556, %v3732, 0
    %v3932 = vsel %vm1556, %v3733, 0
    %v3935 = vsel %vm1560, %v3727, 0
    %3937 = vmatprep.subr.mxu0 0.0
    %3938 = vmatpush1.msra.mxu0 %v3722
    %3939 = vmatprep.subr.mxu0 0.0
    %3940 = vmatpush1.msra.mxu0 %v3935
    %3941 = vmatprep.subr.mxu0 0.0
    %3942 = vmatpush1.msra.mxu0 0.0
    %3943 = vmatprep.subr.mxu0 0.0
    %3944 = vmatpush1.msra.mxu0 0.0
    %3945 = vmatprep.subr.mxu0 0.0
    %3946 = vmatpush1.msra.mxu0 0.0
    %3947 = vmatprep.subr.mxu0 0.0
    %3948 = vmatpush1.msra.mxu0 0.0
    %3949 = vmatprep.subr.mxu0 0.0
    %3950 = vmatpush1.msra.mxu0 0.0
    %3951 = vmatprep.subr.mxu0 0.0
    %3952 = vmatpush1.msra.mxu0 0.0
    %3953 = vmatprep.subr.mxu0 0.0
    %3954 = vmatpush1.msra.mxu0 0.0
    %3955 = vmatprep.subr.mxu0 0.0
    %3956 = vmatpush1.msra.mxu0 0.0
    %3957 = vmatprep.subr.mxu0 0.0
    %3958 = vmatpush1.msra.mxu0 0.0
    %3959 = vmatprep.subr.mxu0 0.0
    %3960 = vmatpush1.msra.mxu0 0.0
    %3961 = vmatprep.subr.mxu0 0.0
    %3962 = vmatpush1.msra.mxu0 0.0
    %3963 = vmatprep.subr.mxu0 0.0
    %3964 = vmatpush1.msra.mxu0 0.0
    %3965 = vmatprep.subr.mxu0 0.0
    %3966 = vmatpush1.msra.mxu0 0.0
    %3967 = vmatprep.subr.mxu0 0.0
    %3968 = vmatpush1.msra.mxu0 0.0
    %3969 = vmatprep.subr.mxu0 0.0
    %3970 = vmatpush1.msra.mxu0 0.0
    %3971 = vmatprep.subr.mxu0 0.0
    %3972 = vmatpush1.msra.mxu0 0.0
    %3973 = vmatprep.subr.mxu0 0.0
    %3974 = vmatpush1.msra.mxu0 0.0
    %3975 = vmatprep.subr.mxu0 0.0
    %3976 = vmatpush1.msra.mxu0 0.0
    %3977 = vmatprep.subr.mxu0 0.0
    %3978 = vmatpush1.msra.mxu0 0.0
    %3979 = vmatprep.subr.mxu0 0.0
    %3980 = vmatpush1.msra.mxu0 0.0
    %3981 = vmatprep.subr.mxu0 0.0
    %3982 = vmatpush1.msra.mxu0 0.0
    %3983 = vmatprep.subr.mxu0 0.0
    %3984 = vmatpush1.msra.mxu0 0.0
    %3985 = vmatprep.subr.mxu0 0.0
    %3986 = vmatpush1.msra.mxu0 0.0
    %3987 = vmatprep.subr.mxu0 0.0
    %3988 = vmatpush1.msra.mxu0 0.0
    %3989 = vmatprep.subr.mxu0 0.0
    %3990 = vmatpush1.msra.mxu0 0.0
    %3991 = vmatprep.subr.mxu0 0.0
    %3992 = vmatpush1.msra.mxu0 0.0
    %3993 = vmatprep.subr.mxu0 0.0
    %3994 = vmatpush1.msra.mxu0 0.0
    %3995 = vmatprep.subr.mxu0 0.0
    %3996 = vmatpush1.msra.mxu0 0.0
    %3997 = vmatprep.subr.mxu0 0.0
    %3998 = vmatpush1.msra.mxu0 0.0
    %3999 = vmatprep.subr.mxu0 0.0
    %4000 = vmatpush1.msra.mxu0 0.0
    %4001 = vmatprep.mubr.f32.mxu0 0.0
    %4002 = vmatmul.mubr.f32.gmra.mrb[0].mxu0 %v3923
    %v4003 = vpop.f32.mrb[0].mxu0
    %v4004 = vadd.f32 %v3904, %v4003
    %v4005 = vpop.f32.mrb[0].mxu0
    %4006 = vmatprep.mubr.f32.mxu0 0.0
    %4007 = vmatmul.mubr.f32.gmra.mrb[0].mxu0 %v3926
    %v4008 = vpop.f32.mrb[0].mxu0
    %v4009 = vadd.f32 %v3909, %v4008
    %v4010 = vpop.f32.mrb[0].mxu0
    %4011 = vmatprep.mubr.f32.mxu0 0.0
    %4012 = vmatmul.mubr.f32.gmra.mrb[0].mxu0 %v3929
    %v4013 = vpop.f32.mrb[0].mxu0
    %v4014 = vadd.f32 %v3914, %v4013
    %v4015 = vpop.f32.mrb[0].mxu0
    %4016 = vmatprep.mubr.f32.mxu0 0.0
    %4017 = vmatmul.mubr.f32.gmra.mrb[0].mxu0 %v3932
    %v4018 = vpop.f32.mrb[0].mxu0
    %v4019 = vadd.f32 %v3919, %v4018
    %v4020 = vpop.f32.mrb[0].mxu0
    %4021 = vdwg.mxu0
    %s4022 = scalar_lea.vmem %s53, 112
    %v4023 = vld [vmem:[%s4022] sm:$0xff]
    %v4024 = vld [vmem:[%s4022 + $0x8] sm:$0xff]
    %v4025 = vld [vmem:[%s4022 + $0x10] sm:$0xff]
    %v4026 = vld [vmem:[%s4022 + $0x18] sm:$0xff]
    %v4027 = vld [vmem:[%s4022 + $0x20] sm:$0xff]
    %v4028 = vld [vmem:[%s4022 + $0x28] sm:$0xff]
    %v4029 = vld [vmem:[%s4022 + $0x30] sm:$0xff]
    %4030 = vmatprep.subr.mxu0 0.0
    %4031 = vmatpush1.msra.mxu0 %v4023
    %4032 = vmatprep.subr.mxu0 0.0
    %4033 = vmatpush1.msra.mxu0 %v4024
    %4034 = vmatprep.subr.mxu0 0.0
    %4035 = vmatpush1.msra.mxu0 %v4025
    %4036 = vmatprep.subr.mxu0 0.0
    %4037 = vmatpush1.msra.mxu0 %v4026
    %4038 = vmatprep.subr.mxu0 0.0
    %4039 = vmatpush1.msra.mxu0 %v4027
    %4040 = vmatprep.subr.mxu0 0.0
    %4041 = vmatpush1.msra.mxu0 %v4028
    %4042 = vmatprep.subr.mxu0 0.0
    %4043 = vmatpush1.msra.mxu0 %v4029
    %4044 = vmatprep.subr.mxu0 0.0
    %4045 = vmatpush1.msra.mxu0 0.0
    %4046 = vmatprep.subr.mxu0 0.0
    %4047 = vmatpush1.msra.mxu0 0.0
    %4048 = vmatprep.subr.mxu0 0.0
    %4049 = vmatpush1.msra.mxu0 0.0
    %4050 = vmatprep.subr.mxu0 0.0
    %4051 = vmatpush1.msra.mxu0 0.0
    %4052 = vmatprep.subr.mxu0 0.0
    %4053 = vmatpush1.msra.mxu0 0.0
    %4054 = vmatprep.subr.mxu0 0.0
    %4055 = vmatpush1.msra.mxu0 0.0
    %4056 = vmatprep.subr.mxu0 0.0
    %4057 = vmatpush1.msra.mxu0 0.0
    %4058 = vmatprep.subr.mxu0 0.0
    %4059 = vmatpush1.msra.mxu0 0.0
    %4060 = vmatprep.subr.mxu0 0.0
    %4061 = vmatpush1.msra.mxu0 0.0
    %4062 = vmatprep.subr.mxu0 0.0
    %4063 = vmatpush1.msra.mxu0 0.0
    %4064 = vmatprep.subr.mxu0 0.0
    %4065 = vmatpush1.msra.mxu0 0.0
    %4066 = vmatprep.subr.mxu0 0.0
    %4067 = vmatpush1.msra.mxu0 0.0
    %4068 = vmatprep.subr.mxu0 0.0
    %4069 = vmatpush1.msra.mxu0 0.0
    %4070 = vmatprep.subr.mxu0 0.0
    %4071 = vmatpush1.msra.mxu0 0.0
    %4072 = vmatprep.subr.mxu0 0.0
    %4073 = vmatpush1.msra.mxu0 0.0
    %4074 = vmatprep.subr.mxu0 0.0
    %4075 = vmatpush1.msra.mxu0 0.0
    %4076 = vmatprep.subr.mxu0 0.0
    %4077 = vmatpush1.msra.mxu0 0.0
    %4078 = vmatprep.subr.mxu0 0.0
    %4079 = vmatpush1.msra.mxu0 0.0
    %4080 = vmatprep.subr.mxu0 0.0
    %4081 = vmatpush1.msra.mxu0 0.0
    %4082 = vmatprep.subr.mxu0 0.0
    %4083 = vmatpush1.msra.mxu0 0.0
    %4084 = vmatprep.subr.mxu0 0.0
    %4085 = vmatpush1.msra.mxu0 0.0
    %4086 = vmatprep.subr.mxu0 0.0
    %4087 = vmatpush1.msra.mxu0 0.0
    %4088 = vmatprep.subr.mxu0 0.0
    %4089 = vmatpush1.msra.mxu0 0.0
    %4090 = vmatprep.subr.mxu0 0.0
    %4091 = vmatpush1.msra.mxu0 0.0
    %4092 = vmatprep.subr.mxu0 0.0
    %4093 = vmatpush1.msra.mxu0 0.0
    %4094 = vmatprep.mubr.f32.mxu0 0.0
    %4095 = vmatmul.mubr.f32.gmra.mrb[0].mxu0 %v3650
    %v4096 = vpop.f32.mrb[0].mxu0
    %v4097 = vadd.f32 0.0, %v4096
    %v4098 = vpop.f32.mrb[0].mxu0
    %4099 = vmatprep.mubr.f32.mxu0 0.0
    %4100 = vmatmul.mubr.f32.gmra.mrb[0].mxu0 %v3653
    %v4101 = vpop.f32.mrb[0].mxu0
    %v4102 = vadd.f32 0.0, %v4101
    %v4103 = vpop.f32.mrb[0].mxu0
    %4104 = vdwg.mxu0
    %s4105 = scalar_lea.vmem %s55, 64
    %v4106 = vld [vmem:[%s4105] sm:$0xff]
    %v4107 = vld [vmem:[%s4105 + $0x8] sm:$0xff]
    %v4108 = vld [vmem:[%s4105 + $0x10] sm:$0xff]
    %v4109 = vld [vmem:[%s4105 + $0x18] sm:$0xf]
    %v4111 = vsel %vm1556, %v4106, 0
    %v4114 = vsel %vm1556, %v4107, 0
    %v4117 = vsel %vm1556, %v4108, 0
    %v4120 = vsel %vm1556, %v4109, 0
    %v4123 = vsel %vm1560, %v4102, 0
    %4125 = vmatprep.subr.mxu0 0.0
    %4126 = vmatpush1.msra.mxu0 %v4097
    %4127 = vmatprep.subr.mxu0 0.0
    %4128 = vmatpush1.msra.mxu0 %v4123
    %4129 = vmatprep.subr.mxu0 0.0
    %4130 = vmatpush1.msra.mxu0 0.0
    %4131 = vmatprep.subr.mxu0 0.0
    %4132 = vmatpush1.msra.mxu0 0.0
    %4133 = vmatprep.subr.mxu0 0.0
    %4134 = vmatpush1.msra.mxu0 0.0
    %4135 = vmatprep.subr.mxu0 0.0
    %4136 = vmatpush1.msra.mxu0 0.0
    %4137 = vmatprep.subr.mxu0 0.0
    %4138 = vmatpush1.msra.mxu0 0.0
    %4139 = vmatprep.subr.mxu0 0.0
    %4140 = vmatpush1.msra.mxu0 0.0
    %4141 = vmatprep.subr.mxu0 0.0
    %4142 = vmatpush1.msra.mxu0 0.0
    %4143 = vmatprep.subr.mxu0 0.0
    %4144 = vmatpush1.msra.mxu0 0.0
    %4145 = vmatprep.subr.mxu0 0.0
    %4146 = vmatpush1.msra.mxu0 0.0
    %4147 = vmatprep.subr.mxu0 0.0
    %4148 = vmatpush1.msra.mxu0 0.0
    %4149 = vmatprep.subr.mxu0 0.0
    %4150 = vmatpush1.msra.mxu0 0.0
    %4151 = vmatprep.subr.mxu0 0.0
    %4152 = vmatpush1.msra.mxu0 0.0
    %4153 = vmatprep.subr.mxu0 0.0
    %4154 = vmatpush1.msra.mxu0 0.0
    %4155 = vmatprep.subr.mxu0 0.0
    %4156 = vmatpush1.msra.mxu0 0.0
    %4157 = vmatprep.subr.mxu0 0.0
    %4158 = vmatpush1.msra.mxu0 0.0
    %4159 = vmatprep.subr.mxu0 0.0
    %4160 = vmatpush1.msra.mxu0 0.0
    %4161 = vmatprep.subr.mxu0 0.0
    %4162 = vmatpush1.msra.mxu0 0.0
    %4163 = vmatprep.subr.mxu0 0.0
    %4164 = vmatpush1.msra.mxu0 0.0
    %4165 = vmatprep.subr.mxu0 0.0
    %4166 = vmatpush1.msra.mxu0 0.0
    %4167 = vmatprep.subr.mxu0 0.0
    %4168 = vmatpush1.msra.mxu0 0.0
    %4169 = vmatprep.subr.mxu0 0.0
    %4170 = vmatpush1.msra.mxu0 0.0
    %4171 = vmatprep.subr.mxu0 0.0
    %4172 = vmatpush1.msra.mxu0 0.0
    %4173 = vmatprep.subr.mxu0 0.0
    %4174 = vmatpush1.msra.mxu0 0.0
    %4175 = vmatprep.subr.mxu0 0.0
    %4176 = vmatpush1.msra.mxu0 0.0
    %4177 = vmatprep.subr.mxu0 0.0
    %4178 = vmatpush1.msra.mxu0 0.0
    %4179 = vmatprep.subr.mxu0 0.0
    %4180 = vmatpush1.msra.mxu0 0.0
    %4181 = vmatprep.subr.mxu0 0.0
    %4182 = vmatpush1.msra.mxu0 0.0
    %4183 = vmatprep.subr.mxu0 0.0
    %4184 = vmatpush1.msra.mxu0 0.0
    %4185 = vmatprep.subr.mxu0 0.0
    %4186 = vmatpush1.msra.mxu0 0.0
    %4187 = vmatprep.subr.mxu0 0.0
    %4188 = vmatpush1.msra.mxu0 0.0
    %4189 = vmatprep.mubr.f32.mxu0 0.0
    %4190 = vmatmul.mubr.f32.gmra.mrb[0].mxu0 %v4111
    %v4191 = vpop.f32.mrb[0].mxu0
    %v4192 = vadd.f32 0.0, %v4191
    %v4193 = vpop.f32.mrb[0].mxu0
    %4194 = vmatprep.mubr.f32.mxu0 0.0
    %4195 = vmatmul.mubr.f32.gmra.mrb[0].mxu0 %v4114
    %v4196 = vpop.f32.mrb[0].mxu0
    %v4197 = vadd.f32 0.0, %v4196
    %v4198 = vpop.f32.mrb[0].mxu0
    %4199 = vmatprep.mubr.f32.mxu0 0.0
    %4200 = vmatmul.mubr.f32.gmra.mrb[0].mxu0 %v4117
    %v4201 = vpop.f32.mrb[0].mxu0
    %v4202 = vadd.f32 0.0, %v4201
    %v4203 = vpop.f32.mrb[0].mxu0
    %4204 = vmatprep.mubr.f32.mxu0 0.0
    %4205 = vmatmul.mubr.f32.gmra.mrb[0].mxu0 %v4120
    %v4206 = vpop.f32.mrb[0].mxu0
    %v4207 = vadd.f32 0.0, %v4206
    %v4208 = vpop.f32.mrb[0].mxu0
    %4209 = vdwg.mxu0
    %v4210 = vadd.f32 %v4004, %v4192
    %v4211 = vadd.f32 %v4009, %v4197
    %v4212 = vadd.f32 %v4014, %v4202
    %v4213 = vadd.f32 %v4019, %v4207
    %v4214 = vld [vmem:[%s57] sm:$0x1]
    %v4216 = vlaneseq
    %v4217 = vshrl.u32 %v4216, 7
    %v4218 = vsub.s32 0, %v4217
    %v4219 = vrot.slane %v4214, %v4218
    %v4221 = vadd.f32 %v4210, %v4219
    %v4222 = vadd.f32 %v4211, %v4219
    %v4223 = vadd.f32 %v4212, %v4219
    %v4224 = vadd.f32 %v4213, %v4219
    %v4225 = vmax.f32 %v4221, 0.0
    %v4226 = vmax.f32 %v4222, 0.0
    %v4227 = vmax.f32 %v4223, 0.0
    %v4228 = vmax.f32 %v4224, 0.0
    %v4229 = vld [vmem:[%s59] sm:$0xff]
    %v4230 = vld [vmem:[%s59 + $0x8] sm:$0xff]
    %v4231 = vld [vmem:[%s59 + $0x10] sm:$0xff]
    %v4232 = vld [vmem:[%s59 + $0x18] sm:$0xff]
    %v4233 = vld [vmem:[%s59 + $0x20] sm:$0xff]
    %v4234 = vld [vmem:[%s59 + $0x28] sm:$0xff]
    %v4235 = vld [vmem:[%s59 + $0x30] sm:$0xff]
    %v4237 = vsel %vm395, %v4225, 0
    %v4240 = vsel %vm395, %v4226, 0
    %v4243 = vsel %vm395, %v4227, 0
    %v4246 = vsel %vm395, %v4228, 0
    %4248 = vmatprep.subr.mxu0 0.0
    %4249 = vmatpush1.msra.mxu0 %v4229
    %4250 = vmatprep.subr.mxu0 0.0
    %4251 = vmatpush1.msra.mxu0 %v4230
    %4252 = vmatprep.subr.mxu0 0.0
    %4253 = vmatpush1.msra.mxu0 %v4231
    %4254 = vmatprep.subr.mxu0 0.0
    %4255 = vmatpush1.msra.mxu0 %v4232
    %4256 = vmatprep.subr.mxu0 0.0
    %4257 = vmatpush1.msra.mxu0 %v4233
    %4258 = vmatprep.subr.mxu0 0.0
    %4259 = vmatpush1.msra.mxu0 %v4234
    %4260 = vmatprep.subr.mxu0 0.0
    %4261 = vmatpush1.msra.mxu0 %v4235
    %4262 = vmatprep.subr.mxu0 0.0
    %4263 = vmatpush1.msra.mxu0 0.0
    %4264 = vmatprep.subr.mxu0 0.0
    %4265 = vmatpush1.msra.mxu0 0.0
    %4266 = vmatprep.subr.mxu0 0.0
    %4267 = vmatpush1.msra.mxu0 0.0
    %4268 = vmatprep.subr.mxu0 0.0
    %4269 = vmatpush1.msra.mxu0 0.0
    %4270 = vmatprep.subr.mxu0 0.0
    %4271 = vmatpush1.msra.mxu0 0.0
    %4272 = vmatprep.subr.mxu0 0.0
    %4273 = vmatpush1.msra.mxu0 0.0
    %4274 = vmatprep.subr.mxu0 0.0
    %4275 = vmatpush1.msra.mxu0 0.0
    %4276 = vmatprep.subr.mxu0 0.0
    %4277 = vmatpush1.msra.mxu0 0.0
    %4278 = vmatprep.subr.mxu0 0.0
    %4279 = vmatpush1.msra.mxu0 0.0
    %4280 = vmatprep.subr.mxu0 0.0
    %4281 = vmatpush1.msra.mxu0 0.0
    %4282 = vmatprep.subr.mxu0 0.0
    %4283 = vmatpush1.msra.mxu0 0.0
    %4284 = vmatprep.subr.mxu0 0.0
    %4285 = vmatpush1.msra.mxu0 0.0
    %4286 = vmatprep.subr.mxu0 0.0
    %4287 = vmatpush1.msra.mxu0 0.0
    %4288 = vmatprep.subr.mxu0 0.0
    %4289 = vmatpush1.msra.mxu0 0.0
    %4290 = vmatprep.subr.mxu0 0.0
    %4291 = vmatpush1.msra.mxu0 0.0
    %4292 = vmatprep.subr.mxu0 0.0
    %4293 = vmatpush1.msra.mxu0 0.0
    %4294 = vmatprep.subr.mxu0 0.0
    %4295 = vmatpush1.msra.mxu0 0.0
    %4296 = vmatprep.subr.mxu0 0.0
    %4297 = vmatpush1.msra.mxu0 0.0
    %4298 = vmatprep.subr.mxu0 0.0
    %4299 = vmatpush1.msra.mxu0 0.0
    %4300 = vmatprep.subr.mxu0 0.0
    %4301 = vmatpush1.msra.mxu0 0.0
    %4302 = vmatprep.subr.mxu0 0.0
    %4303 = vmatpush1.msra.mxu0 0.0
    %4304 = vmatprep.subr.mxu0 0.0
    %4305 = vmatpush1.msra.mxu0 0.0
    %4306 = vmatprep.subr.mxu0 0.0
    %4307 = vmatpush1.msra.mxu0 0.0
    %4308 = vmatprep.subr.mxu0 0.0
    %4309 = vmatpush1.msra.mxu0 0.0
    %4310 = vmatprep.subr.mxu0 0.0
    %4311 = vmatpush1.msra.mxu0 0.0
    %4312 = vmatprep.mubr.f32.mxu0 0.0
    %4313 = vmatmul.mubr.f32.gmra.mrb[0].mxu0 %v4237
    %v4314 = vpop.f32.mrb[0].mxu0
    %v4315 = vadd.f32 0.0, %v4314
    %v4316 = vpop.f32.mrb[0].mxu0
    %4317 = vmatprep.mubr.f32.mxu0 0.0
    %4318 = vmatmul.mubr.f32.gmra.mrb[0].mxu0 %v4240
    %v4319 = vpop.f32.mrb[0].mxu0
    %v4320 = vadd.f32 0.0, %v4319
    %v4321 = vpop.f32.mrb[0].mxu0
    %4322 = vmatprep.mubr.f32.mxu0 0.0
    %4323 = vmatmul.mubr.f32.gmra.mrb[0].mxu0 %v4243
    %v4324 = vpop.f32.mrb[0].mxu0
    %v4325 = vadd.f32 0.0, %v4324
    %v4326 = vpop.f32.mrb[0].mxu0
    %4327 = vmatprep.mubr.f32.mxu0 0.0
    %4328 = vmatmul.mubr.f32.gmra.mrb[0].mxu0 %v4246
    %v4329 = vpop.f32.mrb[0].mxu0
    %v4330 = vadd.f32 0.0, %v4329
    %v4331 = vpop.f32.mrb[0].mxu0
    %4332 = vdwg.mxu0
    %v4333 = vld [vmem:[%s61] sm:$0xff]
    %v4334 = vld [vmem:[%s61 + $0x8] sm:$0xff]
    %v4335 = vld [vmem:[%s61 + $0x10] sm:$0xff]
    %v4336 = vld [vmem:[%s61 + $0x18] sm:$0xff]
    %v4337 = vld [vmem:[%s61 + $0x20] sm:$0xff]
    %v4338 = vld [vmem:[%s61 + $0x28] sm:$0xff]
    %v4339 = vld [vmem:[%s61 + $0x30] sm:$0xff]
    %s4340 = scalar_lea.vmem %s59, 56
    %v4341 = vld [vmem:[%s4340] sm:$0xff]
    %v4342 = vld [vmem:[%s4340 + $0x8] sm:$0xff]
    %v4343 = vld [vmem:[%s4340 + $0x10] sm:$0xff]
    %v4344 = vld [vmem:[%s4340 + $0x18] sm:$0xff]
    %v4345 = vld [vmem:[%s4340 + $0x20] sm:$0xff]
    %v4346 = vld [vmem:[%s4340 + $0x28] sm:$0xff]
    %v4347 = vld [vmem:[%s4340 + $0x30] sm:$0xff]
    %4348 = vmatprep.subr.mxu0 0.0
    %4349 = vmatpush1.msra.mxu0 %v4341
    %4350 = vmatprep.subr.mxu0 0.0
    %4351 = vmatpush1.msra.mxu0 %v4342
    %4352 = vmatprep.subr.mxu0 0.0
    %4353 = vmatpush1.msra.mxu0 %v4343
    %4354 = vmatprep.subr.mxu0 0.0
    %4355 = vmatpush1.msra.mxu0 %v4344
    %4356 = vmatprep.subr.mxu0 0.0
    %4357 = vmatpush1.msra.mxu0 %v4345
    %4358 = vmatprep.subr.mxu0 0.0
    %4359 = vmatpush1.msra.mxu0 %v4346
    %4360 = vmatprep.subr.mxu0 0.0
    %4361 = vmatpush1.msra.mxu0 %v4347
    %4362 = vmatprep.subr.mxu0 0.0
    %4363 = vmatpush1.msra.mxu0 0.0
    %4364 = vmatprep.subr.mxu0 0.0
    %4365 = vmatpush1.msra.mxu0 0.0
    %4366 = vmatprep.subr.mxu0 0.0
    %4367 = vmatpush1.msra.mxu0 0.0
    %4368 = vmatprep.subr.mxu0 0.0
    %4369 = vmatpush1.msra.mxu0 0.0
    %4370 = vmatprep.subr.mxu0 0.0
    %4371 = vmatpush1.msra.mxu0 0.0
    %4372 = vmatprep.subr.mxu0 0.0
    %4373 = vmatpush1.msra.mxu0 0.0
    %4374 = vmatprep.subr.mxu0 0.0
    %4375 = vmatpush1.msra.mxu0 0.0
    %4376 = vmatprep.subr.mxu0 0.0
    %4377 = vmatpush1.msra.mxu0 0.0
    %4378 = vmatprep.subr.mxu0 0.0
    %4379 = vmatpush1.msra.mxu0 0.0
    %4380 = vmatprep.subr.mxu0 0.0
    %4381 = vmatpush1.msra.mxu0 0.0
    %4382 = vmatprep.subr.mxu0 0.0
    %4383 = vmatpush1.msra.mxu0 0.0
    %4384 = vmatprep.subr.mxu0 0.0
    %4385 = vmatpush1.msra.mxu0 0.0
    %4386 = vmatprep.subr.mxu0 0.0
    %4387 = vmatpush1.msra.mxu0 0.0
    %4388 = vmatprep.subr.mxu0 0.0
    %4389 = vmatpush1.msra.mxu0 0.0
    %4390 = vmatprep.subr.mxu0 0.0
    %4391 = vmatpush1.msra.mxu0 0.0
    %4392 = vmatprep.subr.mxu0 0.0
    %4393 = vmatpush1.msra.mxu0 0.0
    %4394 = vmatprep.subr.mxu0 0.0
    %4395 = vmatpush1.msra.mxu0 0.0
    %4396 = vmatprep.subr.mxu0 0.0
    %4397 = vmatpush1.msra.mxu0 0.0
    %4398 = vmatprep.subr.mxu0 0.0
    %4399 = vmatpush1.msra.mxu0 0.0
    %4400 = vmatprep.subr.mxu0 0.0
    %4401 = vmatpush1.msra.mxu0 0.0
    %4402 = vmatprep.subr.mxu0 0.0
    %4403 = vmatpush1.msra.mxu0 0.0
    %4404 = vmatprep.subr.mxu0 0.0
    %4405 = vmatpush1.msra.mxu0 0.0
    %4406 = vmatprep.subr.mxu0 0.0
    %4407 = vmatpush1.msra.mxu0 0.0
    %4408 = vmatprep.subr.mxu0 0.0
    %4409 = vmatpush1.msra.mxu0 0.0
    %4410 = vmatprep.subr.mxu0 0.0
    %4411 = vmatpush1.msra.mxu0 0.0
    %4412 = vmatprep.mubr.f32.mxu0 0.0
    %4413 = vmatmul.mubr.f32.gmra.mrb[0].mxu0 %v4237
    %v4414 = vpop.f32.mrb[0].mxu0
    %v4415 = vadd.f32 0.0, %v4414
    %v4416 = vpop.f32.mrb[0].mxu0
    %4417 = vmatprep.mubr.f32.mxu0 0.0
    %4418 = vmatmul.mubr.f32.gmra.mrb[0].mxu0 %v4240
    %v4419 = vpop.f32.mrb[0].mxu0
    %v4420 = vadd.f32 0.0, %v4419
    %v4421 = vpop.f32.mrb[0].mxu0
    %4422 = vmatprep.mubr.f32.mxu0 0.0
    %4423 = vmatmul.mubr.f32.gmra.mrb[0].mxu0 %v4243
    %v4424 = vpop.f32.mrb[0].mxu0
    %v4425 = vadd.f32 0.0, %v4424
    %v4426 = vpop.f32.mrb[0].mxu0
    %4427 = vmatprep.mubr.f32.mxu0 0.0
    %4428 = vmatmul.mubr.f32.gmra.mrb[0].mxu0 %v4246
    %v4429 = vpop.f32.mrb[0].mxu0
    %v4430 = vadd.f32 0.0, %v4429
    %v4431 = vpop.f32.mrb[0].mxu0
    %4432 = vdwg.mxu0
    %s4433 = scalar_lea.vmem %s61, 56
    %v4434 = vld [vmem:[%s4433] sm:$0xff]
    %v4435 = vld [vmem:[%s4433 + $0x8] sm:$0xff]
    %v4436 = vld [vmem:[%s4433 + $0x10] sm:$0xff]
    %v4437 = vld [vmem:[%s4433 + $0x18] sm:$0xff]
    %v4438 = vld [vmem:[%s4433 + $0x20] sm:$0xff]
    %v4439 = vld [vmem:[%s4433 + $0x28] sm:$0xff]
    %v4440 = vld [vmem:[%s4433 + $0x30] sm:$0xff]
    %v4442 = vsel %vm152, %v4434, 0
    %v4445 = vsel %vm152, %v4435, 0
    %v4448 = vsel %vm152, %v4436, 0
    %v4451 = vsel %vm152, %v4437, 0
    %v4454 = vsel %vm152, %v4438, 0
    %v4457 = vsel %vm152, %v4439, 0
    %v4460 = vsel %vm152, %v4440, 0
    %v4463 = vsel %vm174, %v4430, 0
    %4465 = vmatprep.subr.mxu0 0.0
    %4466 = vmatpush1.msra.mxu0 %v4415
    %4467 = vmatprep.subr.mxu0 0.0
    %4468 = vmatpush1.msra.mxu0 %v4420
    %4469 = vmatprep.subr.mxu0 0.0
    %4470 = vmatpush1.msra.mxu0 %v4425
    %4471 = vmatprep.subr.mxu0 0.0
    %4472 = vmatpush1.msra.mxu0 %v4463
    %4473 = vmatprep.subr.mxu0 0.0
    %4474 = vmatpush1.msra.mxu0 0.0
    %4475 = vmatprep.subr.mxu0 0.0
    %4476 = vmatpush1.msra.mxu0 0.0
    %4477 = vmatprep.subr.mxu0 0.0
    %4478 = vmatpush1.msra.mxu0 0.0
    %4479 = vmatprep.subr.mxu0 0.0
    %4480 = vmatpush1.msra.mxu0 0.0
    %4481 = vmatprep.subr.mxu0 0.0
    %4482 = vmatpush1.msra.mxu0 0.0
    %4483 = vmatprep.subr.mxu0 0.0
    %4484 = vmatpush1.msra.mxu0 0.0
    %4485 = vmatprep.subr.mxu0 0.0
    %4486 = vmatpush1.msra.mxu0 0.0
    %4487 = vmatprep.subr.mxu0 0.0
    %4488 = vmatpush1.msra.mxu0 0.0
    %4489 = vmatprep.subr.mxu0 0.0
    %4490 = vmatpush1.msra.mxu0 0.0
    %4491 = vmatprep.subr.mxu0 0.0
    %4492 = vmatpush1.msra.mxu0 0.0
    %4493 = vmatprep.subr.mxu0 0.0
    %4494 = vmatpush1.msra.mxu0 0.0
    %4495 = vmatprep.subr.mxu0 0.0
    %4496 = vmatpush1.msra.mxu0 0.0
    %4497 = vmatprep.subr.mxu0 0.0
    %4498 = vmatpush1.msra.mxu0 0.0
    %4499 = vmatprep.subr.mxu0 0.0
    %4500 = vmatpush1.msra.mxu0 0.0
    %4501 = vmatprep.subr.mxu0 0.0
    %4502 = vmatpush1.msra.mxu0 0.0
    %4503 = vmatprep.subr.mxu0 0.0
    %4504 = vmatpush1.msra.mxu0 0.0
    %4505 = vmatprep.subr.mxu0 0.0
    %4506 = vmatpush1.msra.mxu0 0.0
    %4507 = vmatprep.subr.mxu0 0.0
    %4508 = vmatpush1.msra.mxu0 0.0
    %4509 = vmatprep.subr.mxu0 0.0
    %4510 = vmatpush1.msra.mxu0 0.0
    %4511 = vmatprep.subr.mxu0 0.0
    %4512 = vmatpush1.msra.mxu0 0.0
    %4513 = vmatprep.subr.mxu0 0.0
    %4514 = vmatpush1.msra.mxu0 0.0
    %4515 = vmatprep.subr.mxu0 0.0
    %4516 = vmatpush1.msra.mxu0 0.0
    %4517 = vmatprep.subr.mxu0 0.0
    %4518 = vmatpush1.msra.mxu0 0.0
    %4519 = vmatprep.subr.mxu0 0.0
    %4520 = vmatpush1.msra.mxu0 0.0
    %4521 = vmatprep.subr.mxu0 0.0
    %4522 = vmatpush1.msra.mxu0 0.0
    %4523 = vmatprep.subr.mxu0 0.0
    %4524 = vmatpush1.msra.mxu0 0.0
    %4525 = vmatprep.subr.mxu0 0.0
    %4526 = vmatpush1.msra.mxu0 0.0
    %4527 = vmatprep.subr.mxu0 0.0
    %4528 = vmatpush1.msra.mxu0 0.0
    %4529 = vmatprep.mubr.f32.mxu0 0.0
    %4530 = vmatmul.mubr.f32.gmra.mrb[0].mxu0 %v4442
    %v4531 = vpop.f32.mrb[0].mxu0
    %v4532 = vadd.f32 0.0, %v4531
    %v4533 = vpop.f32.mrb[0].mxu0
    %4534 = vmatprep.mubr.f32.mxu0 0.0
    %4535 = vmatmul.mubr.f32.gmra.mrb[0].mxu0 %v4445
    %v4536 = vpop.f32.mrb[0].mxu0
    %v4537 = vadd.f32 0.0, %v4536
    %v4538 = vpop.f32.mrb[0].mxu0
    %4539 = vmatprep.mubr.f32.mxu0 0.0
    %4540 = vmatmul.mubr.f32.gmra.mrb[0].mxu0 %v4448
    %v4541 = vpop.f32.mrb[0].mxu0
    %v4542 = vadd.f32 0.0, %v4541
    %v4543 = vpop.f32.mrb[0].mxu0
    %4544 = vmatprep.mubr.f32.mxu0 0.0
    %4545 = vmatmul.mubr.f32.gmra.mrb[0].mxu0 %v4451
    %v4546 = vpop.f32.mrb[0].mxu0
    %v4547 = vadd.f32 0.0, %v4546
    %v4548 = vpop.f32.mrb[0].mxu0
    %4549 = vmatprep.mubr.f32.mxu0 0.0
    %4550 = vmatmul.mubr.f32.gmra.mrb[0].mxu0 %v4454
    %v4551 = vpop.f32.mrb[0].mxu0
    %v4552 = vadd.f32 0.0, %v4551
    %v4553 = vpop.f32.mrb[0].mxu0
    %4554 = vmatprep.mubr.f32.mxu0 0.0
    %4555 = vmatmul.mubr.f32.gmra.mrb[0].mxu0 %v4457
    %v4556 = vpop.f32.mrb[0].mxu0
    %v4557 = vadd.f32 0.0, %v4556
    %v4558 = vpop.f32.mrb[0].mxu0
    %4559 = vmatprep.mubr.f32.mxu0 0.0
    %4560 = vmatmul.mubr.f32.gmra.mrb[0].mxu0 %v4460
    %v4561 = vpop.f32.mrb[0].mxu0
    %v4562 = vadd.f32 0.0, %v4561
    %v4563 = vpop.f32.mrb[0].mxu0
    %4564 = vdwg.mxu0
    %v4566 = vsel %vm152, %v4333, 0
    %v4569 = vsel %vm152, %v4334, 0
    %v4572 = vsel %vm152, %v4335, 0
    %v4575 = vsel %vm152, %v4336, 0
    %v4578 = vsel %vm152, %v4337, 0
    %v4581 = vsel %vm152, %v4338, 0
    %v4584 = vsel %vm152, %v4339, 0
    %v4587 = vsel %vm174, %v4330, 0
    %4589 = vmatprep.subr.mxu0 0.0
    %4590 = vmatpush1.msra.mxu0 %v4315
    %4591 = vmatprep.subr.mxu0 0.0
    %4592 = vmatpush1.msra.mxu0 %v4320
    %4593 = vmatprep.subr.mxu0 0.0
    %4594 = vmatpush1.msra.mxu0 %v4325
    %4595 = vmatprep.subr.mxu0 0.0
    %4596 = vmatpush1.msra.mxu0 %v4587
    %4597 = vmatprep.subr.mxu0 0.0
    %4598 = vmatpush1.msra.mxu0 0.0
    %4599 = vmatprep.subr.mxu0 0.0
    %4600 = vmatpush1.msra.mxu0 0.0
    %4601 = vmatprep.subr.mxu0 0.0
    %4602 = vmatpush1.msra.mxu0 0.0
    %4603 = vmatprep.subr.mxu0 0.0
    %4604 = vmatpush1.msra.mxu0 0.0
    %4605 = vmatprep.subr.mxu0 0.0
    %4606 = vmatpush1.msra.mxu0 0.0
    %4607 = vmatprep.subr.mxu0 0.0
    %4608 = vmatpush1.msra.mxu0 0.0
    %4609 = vmatprep.subr.mxu0 0.0
    %4610 = vmatpush1.msra.mxu0 0.0
    %4611 = vmatprep.subr.mxu0 0.0
    %4612 = vmatpush1.msra.mxu0 0.0
    %4613 = vmatprep.subr.mxu0 0.0
    %4614 = vmatpush1.msra.mxu0 0.0
    %4615 = vmatprep.subr.mxu0 0.0
    %4616 = vmatpush1.msra.mxu0 0.0
    %4617 = vmatprep.subr.mxu0 0.0
    %4618 = vmatpush1.msra.mxu0 0.0
    %4619 = vmatprep.subr.mxu0 0.0
    %4620 = vmatpush1.msra.mxu0 0.0
    %4621 = vmatprep.subr.mxu0 0.0
    %4622 = vmatpush1.msra.mxu0 0.0
    %4623 = vmatprep.subr.mxu0 0.0
    %4624 = vmatpush1.msra.mxu0 0.0
    %4625 = vmatprep.subr.mxu0 0.0
    %4626 = vmatpush1.msra.mxu0 0.0
    %4627 = vmatprep.subr.mxu0 0.0
    %4628 = vmatpush1.msra.mxu0 0.0
    %4629 = vmatprep.subr.mxu0 0.0
    %4630 = vmatpush1.msra.mxu0 0.0
    %4631 = vmatprep.subr.mxu0 0.0
    %4632 = vmatpush1.msra.mxu0 0.0
    %4633 = vmatprep.subr.mxu0 0.0
    %4634 = vmatpush1.msra.mxu0 0.0
    %4635 = vmatprep.subr.mxu0 0.0
    %4636 = vmatpush1.msra.mxu0 0.0
    %4637 = vmatprep.subr.mxu0 0.0
    %4638 = vmatpush1.msra.mxu0 0.0
    %4639 = vmatprep.subr.mxu0 0.0
    %4640 = vmatpush1.msra.mxu0 0.0
    %4641 = vmatprep.subr.mxu0 0.0
    %4642 = vmatpush1.msra.mxu0 0.0
    %4643 = vmatprep.subr.mxu0 0.0
    %4644 = vmatpush1.msra.mxu0 0.0
    %4645 = vmatprep.subr.mxu0 0.0
    %4646 = vmatpush1.msra.mxu0 0.0
    %4647 = vmatprep.subr.mxu0 0.0
    %4648 = vmatpush1.msra.mxu0 0.0
    %4649 = vmatprep.subr.mxu0 0.0
    %4650 = vmatpush1.msra.mxu0 0.0
    %4651 = vmatprep.subr.mxu0 0.0
    %4652 = vmatpush1.msra.mxu0 0.0
    %4653 = vmatprep.mubr.f32.mxu0 0.0
    %4654 = vmatmul.mubr.f32.gmra.mrb[0].mxu0 %v4566
    %v4655 = vpop.f32.mrb[0].mxu0
    %v4656 = vadd.f32 %v4532, %v4655
    %v4657 = vpop.f32.mrb[0].mxu0
    %4658 = vmatprep.mubr.f32.mxu0 0.0
    %4659 = vmatmul.mubr.f32.gmra.mrb[0].mxu0 %v4569
    %v4660 = vpop.f32.mrb[0].mxu0
    %v4661 = vadd.f32 %v4537, %v4660
    %v4662 = vpop.f32.mrb[0].mxu0
    %4663 = vmatprep.mubr.f32.mxu0 0.0
    %4664 = vmatmul.mubr.f32.gmra.mrb[0].mxu0 %v4572
    %v4665 = vpop.f32.mrb[0].mxu0
    %v4666 = vadd.f32 %v4542, %v4665
    %v4667 = vpop.f32.mrb[0].mxu0
    %4668 = vmatprep.mubr.f32.mxu0 0.0
    %4669 = vmatmul.mubr.f32.gmra.mrb[0].mxu0 %v4575
    %v4670 = vpop.f32.mrb[0].mxu0
    %v4671 = vadd.f32 %v4547, %v4670
    %v4672 = vpop.f32.mrb[0].mxu0
    %4673 = vmatprep.mubr.f32.mxu0 0.0
    %4674 = vmatmul.mubr.f32.gmra.mrb[0].mxu0 %v4578
    %v4675 = vpop.f32.mrb[0].mxu0
    %v4676 = vadd.f32 %v4552, %v4675
    %v4677 = vpop.f32.mrb[0].mxu0
    %4678 = vmatprep.mubr.f32.mxu0 0.0
    %4679 = vmatmul.mubr.f32.gmra.mrb[0].mxu0 %v4581
    %v4680 = vpop.f32.mrb[0].mxu0
    %v4681 = vadd.f32 %v4557, %v4680
    %v4682 = vpop.f32.mrb[0].mxu0
    %4683 = vmatprep.mubr.f32.mxu0 0.0
    %4684 = vmatmul.mubr.f32.gmra.mrb[0].mxu0 %v4584
    %v4685 = vpop.f32.mrb[0].mxu0
    %v4686 = vadd.f32 %v4562, %v4685
    %v4687 = vpop.f32.mrb[0].mxu0
    %4688 = vdwg.mxu0
    %s4689 = scalar_lea.vmem %s59, 112
    %v4690 = vld [vmem:[%s4689] sm:$0xff]
    %v4691 = vld [vmem:[%s4689 + $0x8] sm:$0xff]
    %v4692 = vld [vmem:[%s4689 + $0x10] sm:$0xff]
    %v4693 = vld [vmem:[%s4689 + $0x18] sm:$0xff]
    %v4694 = vld [vmem:[%s4689 + $0x20] sm:$0xff]
    %v4695 = vld [vmem:[%s4689 + $0x28] sm:$0xff]
    %v4696 = vld [vmem:[%s4689 + $0x30] sm:$0xff]
    %4697 = vmatprep.subr.mxu0 0.0
    %4698 = vmatpush1.msra.mxu0 %v4690
    %4699 = vmatprep.subr.mxu0 0.0
    %4700 = vmatpush1.msra.mxu0 %v4691
    %4701 = vmatprep.subr.mxu0 0.0
    %4702 = vmatpush1.msra.mxu0 %v4692
    %4703 = vmatprep.subr.mxu0 0.0
    %4704 = vmatpush1.msra.mxu0 %v4693
    %4705 = vmatprep.subr.mxu0 0.0
    %4706 = vmatpush1.msra.mxu0 %v4694
    %4707 = vmatprep.subr.mxu0 0.0
    %4708 = vmatpush1.msra.mxu0 %v4695
    %4709 = vmatprep.subr.mxu0 0.0
    %4710 = vmatpush1.msra.mxu0 %v4696
    %4711 = vmatprep.subr.mxu0 0.0
    %4712 = vmatpush1.msra.mxu0 0.0
    %4713 = vmatprep.subr.mxu0 0.0
    %4714 = vmatpush1.msra.mxu0 0.0
    %4715 = vmatprep.subr.mxu0 0.0
    %4716 = vmatpush1.msra.mxu0 0.0
    %4717 = vmatprep.subr.mxu0 0.0
    %4718 = vmatpush1.msra.mxu0 0.0
    %4719 = vmatprep.subr.mxu0 0.0
    %4720 = vmatpush1.msra.mxu0 0.0
    %4721 = vmatprep.subr.mxu0 0.0
    %4722 = vmatpush1.msra.mxu0 0.0
    %4723 = vmatprep.subr.mxu0 0.0
    %4724 = vmatpush1.msra.mxu0 0.0
    %4725 = vmatprep.subr.mxu0 0.0
    %4726 = vmatpush1.msra.mxu0 0.0
    %4727 = vmatprep.subr.mxu0 0.0
    %4728 = vmatpush1.msra.mxu0 0.0
    %4729 = vmatprep.subr.mxu0 0.0
    %4730 = vmatpush1.msra.mxu0 0.0
    %4731 = vmatprep.subr.mxu0 0.0
    %4732 = vmatpush1.msra.mxu0 0.0
    %4733 = vmatprep.subr.mxu0 0.0
    %4734 = vmatpush1.msra.mxu0 0.0
    %4735 = vmatprep.subr.mxu0 0.0
    %4736 = vmatpush1.msra.mxu0 0.0
    %4737 = vmatprep.subr.mxu0 0.0
    %4738 = vmatpush1.msra.mxu0 0.0
    %4739 = vmatprep.subr.mxu0 0.0
    %4740 = vmatpush1.msra.mxu0 0.0
    %4741 = vmatprep.subr.mxu0 0.0
    %4742 = vmatpush1.msra.mxu0 0.0
    %4743 = vmatprep.subr.mxu0 0.0
    %4744 = vmatpush1.msra.mxu0 0.0
    %4745 = vmatprep.subr.mxu0 0.0
    %4746 = vmatpush1.msra.mxu0 0.0
    %4747 = vmatprep.subr.mxu0 0.0
    %4748 = vmatpush1.msra.mxu0 0.0
    %4749 = vmatprep.subr.mxu0 0.0
    %4750 = vmatpush1.msra.mxu0 0.0
    %4751 = vmatprep.subr.mxu0 0.0
    %4752 = vmatpush1.msra.mxu0 0.0
    %4753 = vmatprep.subr.mxu0 0.0
    %4754 = vmatpush1.msra.mxu0 0.0
    %4755 = vmatprep.subr.mxu0 0.0
    %4756 = vmatpush1.msra.mxu0 0.0
    %4757 = vmatprep.subr.mxu0 0.0
    %4758 = vmatpush1.msra.mxu0 0.0
    %4759 = vmatprep.subr.mxu0 0.0
    %4760 = vmatpush1.msra.mxu0 0.0
    %4761 = vmatprep.mubr.f32.mxu0 0.0
    %4762 = vmatmul.mubr.f32.gmra.mrb[0].mxu0 %v4237
    %v4763 = vpop.f32.mrb[0].mxu0
    %v4764 = vadd.f32 0.0, %v4763
    %v4765 = vpop.f32.mrb[0].mxu0
    %4766 = vmatprep.mubr.f32.mxu0 0.0
    %4767 = vmatmul.mubr.f32.gmra.mrb[0].mxu0 %v4240
    %v4768 = vpop.f32.mrb[0].mxu0
    %v4769 = vadd.f32 0.0, %v4768
    %v4770 = vpop.f32.mrb[0].mxu0
    %4771 = vmatprep.mubr.f32.mxu0 0.0
    %4772 = vmatmul.mubr.f32.gmra.mrb[0].mxu0 %v4243
    %v4773 = vpop.f32.mrb[0].mxu0
    %v4774 = vadd.f32 0.0, %v4773
    %v4775 = vpop.f32.mrb[0].mxu0
    %4776 = vmatprep.mubr.f32.mxu0 0.0
    %4777 = vmatmul.mubr.f32.gmra.mrb[0].mxu0 %v4246
    %v4778 = vpop.f32.mrb[0].mxu0
    %v4779 = vadd.f32 0.0, %v4778
    %v4780 = vpop.f32.mrb[0].mxu0
    %4781 = vdwg.mxu0
    %s4782 = scalar_lea.vmem %s61, 112
    %v4783 = vld [vmem:[%s4782] sm:$0xff]
    %v4784 = vld [vmem:[%s4782 + $0x8] sm:$0xff]
    %v4785 = vld [vmem:[%s4782 + $0x10] sm:$0xff]
    %v4786 = vld [vmem:[%s4782 + $0x18] sm:$0xff]
    %v4787 = vld [vmem:[%s4782 + $0x20] sm:$0xff]
    %v4788 = vld [vmem:[%s4782 + $0x28] sm:$0xff]
    %v4789 = vld [vmem:[%s4782 + $0x30] sm:$0xff]
    %v4791 = vsel %vm152, %v4783, 0
    %v4794 = vsel %vm152, %v4784, 0
    %v4797 = vsel %vm152, %v4785, 0
    %v4800 = vsel %vm152, %v4786, 0
    %v4803 = vsel %vm152, %v4787, 0
    %v4806 = vsel %vm152, %v4788, 0
    %v4809 = vsel %vm152, %v4789, 0
    %v4812 = vsel %vm174, %v4779, 0
    %4814 = vmatprep.subr.mxu0 0.0
    %4815 = vmatpush1.msra.mxu0 %v4764
    %4816 = vmatprep.subr.mxu0 0.0
    %4817 = vmatpush1.msra.mxu0 %v4769
    %4818 = vmatprep.subr.mxu0 0.0
    %4819 = vmatpush1.msra.mxu0 %v4774
    %4820 = vmatprep.subr.mxu0 0.0
    %4821 = vmatpush1.msra.mxu0 %v4812
    %4822 = vmatprep.subr.mxu0 0.0
    %4823 = vmatpush1.msra.mxu0 0.0
    %4824 = vmatprep.subr.mxu0 0.0
    %4825 = vmatpush1.msra.mxu0 0.0
    %4826 = vmatprep.subr.mxu0 0.0
    %4827 = vmatpush1.msra.mxu0 0.0
    %4828 = vmatprep.subr.mxu0 0.0
    %4829 = vmatpush1.msra.mxu0 0.0
    %4830 = vmatprep.subr.mxu0 0.0
    %4831 = vmatpush1.msra.mxu0 0.0
    %4832 = vmatprep.subr.mxu0 0.0
    %4833 = vmatpush1.msra.mxu0 0.0
    %4834 = vmatprep.subr.mxu0 0.0
    %4835 = vmatpush1.msra.mxu0 0.0
    %4836 = vmatprep.subr.mxu0 0.0
    %4837 = vmatpush1.msra.mxu0 0.0
    %4838 = vmatprep.subr.mxu0 0.0
    %4839 = vmatpush1.msra.mxu0 0.0
    %4840 = vmatprep.subr.mxu0 0.0
    %4841 = vmatpush1.msra.mxu0 0.0
    %4842 = vmatprep.subr.mxu0 0.0
    %4843 = vmatpush1.msra.mxu0 0.0
    %4844 = vmatprep.subr.mxu0 0.0
    %4845 = vmatpush1.msra.mxu0 0.0
    %4846 = vmatprep.subr.mxu0 0.0
    %4847 = vmatpush1.msra.mxu0 0.0
    %4848 = vmatprep.subr.mxu0 0.0
    %4849 = vmatpush1.msra.mxu0 0.0
    %4850 = vmatprep.subr.mxu0 0.0
    %4851 = vmatpush1.msra.mxu0 0.0
    %4852 = vmatprep.subr.mxu0 0.0
    %4853 = vmatpush1.msra.mxu0 0.0
    %4854 = vmatprep.subr.mxu0 0.0
    %4855 = vmatpush1.msra.mxu0 0.0
    %4856 = vmatprep.subr.mxu0 0.0
    %4857 = vmatpush1.msra.mxu0 0.0
    %4858 = vmatprep.subr.mxu0 0.0
    %4859 = vmatpush1.msra.mxu0 0.0
    %4860 = vmatprep.subr.mxu0 0.0
    %4861 = vmatpush1.msra.mxu0 0.0
    %4862 = vmatprep.subr.mxu0 0.0
    %4863 = vmatpush1.msra.mxu0 0.0
    %4864 = vmatprep.subr.mxu0 0.0
    %4865 = vmatpush1.msra.mxu0 0.0
    %4866 = vmatprep.subr.mxu0 0.0
    %4867 = vmatpush1.msra.mxu0 0.0
    %4868 = vmatprep.subr.mxu0 0.0
    %4869 = vmatpush1.msra.mxu0 0.0
    %4870 = vmatprep.subr.mxu0 0.0
    %4871 = vmatpush1.msra.mxu0 0.0
    %4872 = vmatprep.subr.mxu0 0.0
    %4873 = vmatpush1.msra.mxu0 0.0
    %4874 = vmatprep.subr.mxu0 0.0
    %4875 = vmatpush1.msra.mxu0 0.0
    %4876 = vmatprep.subr.mxu0 0.0
    %4877 = vmatpush1.msra.mxu0 0.0
    %4878 = vmatprep.mubr.f32.mxu0 0.0
    %4879 = vmatmul.mubr.f32.gmra.mrb[0].mxu0 %v4791
    %v4880 = vpop.f32.mrb[0].mxu0
    %v4881 = vadd.f32 0.0, %v4880
    %v4882 = vpop.f32.mrb[0].mxu0
    %4883 = vmatprep.mubr.f32.mxu0 0.0
    %4884 = vmatmul.mubr.f32.gmra.mrb[0].mxu0 %v4794
    %v4885 = vpop.f32.mrb[0].mxu0
    %v4886 = vadd.f32 0.0, %v4885
    %v4887 = vpop.f32.mrb[0].mxu0
    %4888 = vmatprep.mubr.f32.mxu0 0.0
    %4889 = vmatmul.mubr.f32.gmra.mrb[0].mxu0 %v4797
    %v4890 = vpop.f32.mrb[0].mxu0
    %v4891 = vadd.f32 0.0, %v4890
    %v4892 = vpop.f32.mrb[0].mxu0
    %4893 = vmatprep.mubr.f32.mxu0 0.0
    %4894 = vmatmul.mubr.f32.gmra.mrb[0].mxu0 %v4800
    %v4895 = vpop.f32.mrb[0].mxu0
    %v4896 = vadd.f32 0.0, %v4895
    %v4897 = vpop.f32.mrb[0].mxu0
    %4898 = vmatprep.mubr.f32.mxu0 0.0
    %4899 = vmatmul.mubr.f32.gmra.mrb[0].mxu0 %v4803
    %v4900 = vpop.f32.mrb[0].mxu0
    %v4901 = vadd.f32 0.0, %v4900
    %v4902 = vpop.f32.mrb[0].mxu0
    %4903 = vmatprep.mubr.f32.mxu0 0.0
    %4904 = vmatmul.mubr.f32.gmra.mrb[0].mxu0 %v4806
    %v4905 = vpop.f32.mrb[0].mxu0
    %v4906 = vadd.f32 0.0, %v4905
    %v4907 = vpop.f32.mrb[0].mxu0
    %4908 = vmatprep.mubr.f32.mxu0 0.0
    %4909 = vmatmul.mubr.f32.gmra.mrb[0].mxu0 %v4809
    %v4910 = vpop.f32.mrb[0].mxu0
    %v4911 = vadd.f32 0.0, %v4910
    %v4912 = vpop.f32.mrb[0].mxu0
    %4913 = vdwg.mxu0
    %v4914 = vadd.f32 %v4656, %v4881
    %v4915 = vadd.f32 %v4661, %v4886
    %v4916 = vadd.f32 %v4666, %v4891
    %v4917 = vadd.f32 %v4671, %v4896
    %v4918 = vadd.f32 %v4676, %v4901
    %v4919 = vadd.f32 %v4681, %v4906
    %v4920 = vadd.f32 %v4686, %v4911
    %v4921 = vld [vmem:[%s63] sm:$0x1]
    %v4923 = vlaneseq
    %v4924 = vshrl.u32 %v4923, 7
    %v4925 = vsub.s32 0, %v4924
    %v4926 = vrot.slane %v4921, %v4925
    %v4928 = vadd.f32 %v4914, %v4926
    %v4929 = vadd.f32 %v4915, %v4926
    %v4930 = vadd.f32 %v4916, %v4926
    %v4931 = vadd.f32 %v4917, %v4926
    %v4932 = vadd.f32 %v4918, %v4926
    %v4933 = vadd.f32 %v4919, %v4926
    %v4934 = vadd.f32 %v4920, %v4926
    %4935 = vst.msk [vmem:[#allocation2] sm:$0xff] %vm152, %v4928
    %4936 = vst.msk [vmem:[#allocation2 + $0x8] sm:$0xff] %vm152, %v4929
    %4937 = vst.msk [vmem:[#allocation2 + $0x10] sm:$0xff] %vm152, %v4930
    %4938 = vst.msk [vmem:[#allocation2 + $0x18] sm:$0xff] %vm152, %v4931
    %4939 = vst.msk [vmem:[#allocation2 + $0x20] sm:$0xff] %vm152, %v4932
    %4940 = vst.msk [vmem:[#allocation2 + $0x28] sm:$0xff] %vm152, %v4933
    %4941 = vst.msk [vmem:[#allocation2 + $0x30] sm:$0xff] %vm152, %v4934
    %vm4942 = vcmask 58368
    %4943 = vst.msk [vmem:[#allocation4] sm:$0x3] %vm4942, %v2449
    %4944 = vst.msk [vmem:[#allocation6] sm:$0x3] %vm4942, %v2542
    // Predicated region
    $region130: #{vae_forward.1} parent=1 // pred_check
      _
    $region131: #{vae_forward.1} parent=1 // pred_check_branch
      %4946 = sbr.rel (0) target = $region133
    $region132: #{vae_forward.1} parent=1 // pred_region
      %s4948 = ssub.s32 896, 896
      %4949 = vsyncadd [#allocation3], %s4948
      %s4950 = sshll.u32 [#allocation2], 4
      %s4951 = int_to_ptr.vmem [resolvable:$true] %s4950
      %4956 = dma.vmem_to_hbm [thread:$0]  %s4951, 896, %s65, [#allocation3], 128, 128, 8
    $region133: #{vae_forward.1} parent=1 // pred_fallthru
      _
    // Predicated region
    $region134: #{vae_forward.1} parent=1 // pred_check
      _
    $region135: #{vae_forward.1} parent=1 // pred_check_branch
      %4958 = sbr.rel (0) target = $region137
    $region136: #{vae_forward.1} parent=1 // pred_region
      %s4960 = ssub.s32 32, 32
      %4961 = vsyncadd [#allocation5], %s4960
      %s4963 = sshll.u32 [#allocation4], 4
      %s4964 = int_to_ptr.vmem [resolvable:$true] %s4963
      %4966 = dma.vmem_to_hbm [thread:$0]  %s4964, 32, %s67, [#allocation5]
    $region137: #{vae_forward.1} parent=1 // pred_fallthru
      _
    // Predicated region
    $region138: #{vae_forward.1} parent=1 // pred_check
      _
    $region139: #{vae_forward.1} parent=1 // pred_check_branch
      %4968 = sbr.rel (0) target = $region141
    $region140: #{vae_forward.1} parent=1 // pred_region
      %s4970 = ssub.s32 32, 32
      %4971 = vsyncadd [#allocation5], %s4970
      %s4973 = sshll.u32 [#allocation6], 4
      %s4974 = int_to_ptr.vmem [resolvable:$true] %s4973
      %4976 = dma.vmem_to_hbm [thread:$0]  %s4974, 32, %s69, [#allocation5]
    $region141: #{vae_forward.1} parent=1 // pred_fallthru
      _
    // Predicated region
    $region142: #{vae_forward.1} parent=1 // pred_check
      _
    $region143: #{vae_forward.1} parent=1 // pred_check_branch
      %4978 = sbr.rel (0) target = $region145
    $region144: #{vae_forward.1} parent=1 // pred_region
      %4979 = dma.done [#allocation3], 896
    $region145: #{vae_forward.1} parent=1 // pred_fallthru
      _
    // Predicated region
    $region146: #{vae_forward.1} parent=1 // pred_check
      _
    $region147: #{vae_forward.1} parent=1 // pred_check_branch
      %4981 = sbr.rel (0) target = $region149
    $region148: #{vae_forward.1} parent=1 // pred_region
      %4982 = dma.done [#allocation5], 32
    $region149: #{vae_forward.1} parent=1 // pred_fallthru
      _
    // Predicated region
    $region150: #{vae_forward.1} parent=1 // pred_check
      _
    $region151: #{vae_forward.1} parent=1 // pred_check_branch
      %4984 = sbr.rel (0) target = $region153
    $region152: #{vae_forward.1} parent=1 // pred_region
      %4985 = dma.done [#allocation5], 32
    $region153: #{vae_forward.1} parent=1 // pred_fallthru
      _
    %4986 = vsyncpa [#allocation3], 1
    %4987 = vsyncpa [#allocation5], 1

</llo_original>
